<compile_context>
chip_gen: v6e
topology: v6e:2x2x1
jax: 0.10.0
libtpu: 0.0.40
codegen_flags: <defaults>
</compile_context>

<pallas_src>
import functools
import math

import jax
import jax.numpy as jnp
import numpy as np
from jax import lax
from jax.experimental import pallas as pl
from jax.experimental.pallas import tpu as pltpu


def dds_conv_kernel(x_ref, m_ref, dww_ref, dwb_ref, pww_ref, pwb_ref,
                    g1_ref, b1_ref, g2_ref, b2_ref, o_ref,
                    *, kernel_size, n_layers, seq_len, eps,
                    approx_gelu, ln_reduce_on_mxu):
    """One block of `bt` full (padded) sequences per grid step, flattened to (M, C).

    x_ref   : (M, C)        input rows (M = bt * seq_len)
    m_ref   : (M, 1)        length mask
    dww_ref : (L, K, 1, C)  depthwise conv weights
    dwb_ref : (L, 1, C)     depthwise conv bias
    pww_ref : (L, C, C)     1x1 conv weight as (C_in, C_out)  (bf16 or f32)
    pwb_ref : (L, 1, C)     1x1 conv bias
    g1/b1, g2/b2 : (L, 1, C)  LayerNorm affine params
    """
    M, C = x_ref.shape
    T = seq_len
    inv_c = 1.0 / C
    center = (kernel_size - 1) // 2  # odd kernel_size enforced in wrapper

    # Structural time index per flat row, derived in-kernel (no DMA / no VMEM
    # input).  Float trick avoids integer div/rem: exact for M << 2^21.
    row = lax.broadcasted_iota(jnp.int32, (M, 1), 0).astype(jnp.float32)
    seq = jnp.floor((row + 0.5) * (1.0 / T))
    t = row - seq * T                     # integer-valued f32 in [0, T)

    if ln_reduce_on_mxu:
        ones_c = jnp.ones((C, 1), jnp.float32)

        def _rsum(v):                     # lane reduction on the MXU (frees XLU)
            return jnp.dot(v, ones_c, preferred_element_type=jnp.float32)
    else:
        def _rsum(v):
            return jnp.sum(v, axis=-1, keepdims=True)

    def layer_norm(v, gamma, beta):
        # two-pass: centered-variance, robust against cancellation
        mu = _rsum(v) * inv_c
        d = v - mu
        var = _rsum(d * d) * inv_c
        return d * lax.rsqrt(var + eps) * gamma + beta

    def gelu(v):
        # approximate=True -> tanh form on the EUP slot; False = exact erf
        # (matches PyTorch F.gelu default, more VALU work).
        return jax.nn.gelu(v, approximate=approx_gelu)

    x = x_ref[...]        # (M, C) f32
    mask = m_ref[...]     # (M, 1) f32

    for i in range(n_layers):                       # static unrolled layer loop
        dilation = kernel_size ** i
        # hoist per-layer parameter reads into locals (one VMEM read per layer)
        w_dw = dww_ref[i]                           # (K, 1, C)
        b_dw = dwb_ref[i]                           # (1, C)
        w_pw = pww_ref[i]                           # (C, C), bf16 or f32
        b_pw = pwb_ref[i]                           # (1, C)
        gam1, bet1 = g1_ref[i], b1_ref[i]
        gam2, bet2 = g2_ref[i], b2_ref[i]

        xm = x * mask

        # --- depthwise dilated conv along time ("same" zero padding) ---
        acc = b_dw + xm * w_dw[center]              # center tap: no roll, no mask
        for k in range(kernel_size):
            if k == center:
                continue
            off = (k - center) * dilation
            if abs(off) >= T:
                continue                            # tap entirely outside every sequence
            shifted = pltpu.roll(xm, shift=(-off) % M, axis=0)   # XLU sublane roll
            # validity of source position t+off within [0, T): one compare suffices
            if off > 0:
                tap_mask = jnp.where(t < float(T - off), 1.0, 0.0)
            else:
                tap_mask = jnp.where(t >= float(-off), 1.0, 0.0)
            acc = acc + (shifted * tap_mask) * w_dw[k]
        # TODO(synk): bf16 tap accumulation (v6e/v7x VPU) skipped to keep f32 precision.

        # --- LayerNorm over channels + gelu ---
        y = gelu(layer_norm(acc, gam1, bet1))

        # --- 1x1 conv == dense channel mix on the MXU (bf16 in, f32 acc) ---
        y = jnp.dot(y.astype(w_pw.dtype), w_pw,
                    preferred_element_type=jnp.float32) + b_pw

        # --- LayerNorm over channels + gelu ---
        y = gelu(layer_norm(y, gam2, bet2))

        # TODO(synk): dropout omitted (p_dropout=0.0 default -> identity).
        x = x + y

    o_ref[...] = x * mask


def _round_up(a, b):
    return (a + b - 1) // b * b


def _vmem_capacity_bytes(default=64 << 20):
    try:
        info = pltpu.get_tpu_info()
        cap = getattr(info, "vmem_capacity_bytes", None)
        return int(cap) if cap else default
    except Exception:
        return default


def _pick_batch_tile(B, T, C, max_block_bytes):
    """T is already a multiple of 8, so any bt keeps the (8,128) rule.
    Prefer >=2 (and even) grid steps so both v7x TensorCores get work."""
    candidates = [bt for bt in range(1, B + 1) if B % bt == 0]
    fitting = [bt for bt in candidates if bt * T * C * 4 <= max_block_bytes] or [1]
    even = [bt for bt in fitting if (B // bt) >= 2 and (B // bt) % 2 == 0]
    multi = [bt for bt in fitting if (B // bt) >= 2]
    pool = even or multi or fitting
    return max(pool)


def _estimate_vmem_bytes(M, C, L, K, pw_itemsize):
    lane = max(C, 128)
    blk = M * C * 4                          # one (M, C) f32 block
    mask_blk = M * 128 * 4                   # (M, 1) lane-pads to 128 lanes
    small = (K + 5) * L * 8 * lane * 4       # dww + 5x(L,1,C), sublane-padded to 8
    pw = L * C * lane * pw_itemsize
    # double-buffered x/out blocks + mask + params (pipeline reserves 2 buffers
    # even for constant-index specs) + ~6 live (M,C) f32 in-kernel temporaries.
    return 2 * (2 * blk) + 2 * mask_blk + 2 * (small + pw) + 6 * blk


def dds_conv_btc(x_btc, mask_bt1, params, *, kernel_size, n_layers, eps=1e-5,
                 batch_tile=None, use_bf16_matmul=True, approx_gelu=True,
                 ln_reduce_on_mxu=True):
    """Pallas call on (B, T, C) data."""
    B, T, C = x_btc.shape
    if kernel_size % 2 != 1:
        raise ValueError("DDSConv kernel assumes odd kernel_size (center = (K-1)//2).")
    L, K = n_layers, kernel_size
    dww, dwb, pww, pwb, g1, b1, g2, b2 = params
    if use_bf16_matmul:
        pww = pww.astype(jnp.bfloat16)       # pre-cast once, outside the kernel

    # Pad T to a multiple of 8 (padded rows get mask=0 -> behave as zero padding)
    Tp = _round_up(T, 8)
    if Tp != T:
        pad = Tp - T
        x_btc = jnp.pad(x_btc, ((0, 0), (0, pad), (0, 0)))
        mask_bt1 = jnp.pad(mask_bt1, ((0, 0), (0, pad), (0, 0)))

    # Generation-aware sizing (v7x: 64 MiB VMEM per TC -> smaller blocks/limit)
    cap = _vmem_capacity_bytes()
    small_vmem = cap <= (96 << 20)
    max_block_bytes = (3 << 20) if small_vmem else (6 << 20)
    limit_ceiling = (40 << 20) if small_vmem else (80 << 20)

    bt = batch_tile if batch_tile is not None else _pick_batch_tile(B, Tp, C, max_block_bytes)
    assert B % bt == 0
    M = bt * Tp

    x_flat = x_btc.reshape(B * Tp, C)
    m_flat = mask_bt1.reshape(B * Tp, 1)

    def const(shape):
        return pl.BlockSpec(shape, lambda r, _n=len(shape): (0,) * _n)

    kern = functools.partial(dds_conv_kernel, kernel_size=K, n_layers=L,
                             seq_len=Tp, eps=eps, approx_gelu=approx_gelu,
                             ln_reduce_on_mxu=ln_reduce_on_mxu)

    est = _estimate_vmem_bytes(M, C, L, K, pww.dtype.itemsize)
    vmem_limit = int(max(16 << 20,
                         min(limit_ceiling, cap - (8 << 20), max(32 << 20, est))))

    out_flat = pl.pallas_call(
        kern,
        out_shape=jax.ShapeDtypeStruct((B * Tp, C), jnp.float32),
        grid=(B // bt,),
        in_specs=[
            pl.BlockSpec((M, C), lambda r: (r, 0)),     # x (flat rows)
            pl.BlockSpec((M, 1), lambda r: (r, 0)),     # length mask
            const((L, K, 1, C)),                        # depthwise weight
            const((L, 1, C)),                           # depthwise bias
            const((L, C, C)),                           # 1x1 weight (C_in, C_out)
            const((L, 1, C)),                           # 1x1 bias
            const((L, 1, C)), const((L, 1, C)),         # LN1 gamma/beta
            const((L, 1, C)), const((L, 1, C)),         # LN2 gamma/beta
        ],
        out_specs=pl.BlockSpec((M, C), lambda r: (r, 0)),
        compiler_params=pltpu.CompilerParams(
            dimension_semantics=("parallel",),
            vmem_limit_bytes=vmem_limit),
    )(x_flat, m_flat, dww, dwb, pww, pwb, g1, b1, g2, b2)

    out = out_flat.reshape(B, Tp, C)
    if Tp != T:
        out = out[:, :T, :]
    return out


def dds_conv(x, x_mask, params, *, kernel_size, n_layers, g=None,
             use_bf16_matmul=True, approx_gelu=True, ln_reduce_on_mxu=True):
    """Mirror of DDSConv.forward with PyTorch NCW layout.

    x : (B, C, T), x_mask : (B, 1, T), g : optional (B, C, T)
    Set approx_gelu=False / use_bf16_matmul=False for exact PyTorch parity.
    """
    if g is not None:
        x = x + g                                   # glue, stays in plain JAX
    x_btc = jnp.transpose(x, (0, 2, 1))             # (B, T, C)
    mask_bt1 = jnp.transpose(x_mask, (0, 2, 1))     # (B, T, 1)
    out = dds_conv_btc(x_btc, mask_bt1, params,
                       kernel_size=kernel_size, n_layers=n_layers,
                       use_bf16_matmul=use_bf16_matmul,
                       approx_gelu=approx_gelu,
                       ln_reduce_on_mxu=ln_reduce_on_mxu)
    return jnp.transpose(out, (0, 2, 1))            # back to (B, C, T)


def dds_conv_reference(x, x_mask, params, *, kernel_size, n_layers, g=None,
                       eps=1e-5, use_bf16_matmul=False, approx_gelu=False):
    """Pure-JAX reference matching the PyTorch forward semantics (default flags)."""
    dww, dwb, pww, pwb, g1, b1, g2, b2 = params
    if g is not None:
        x = x + g
    xb = jnp.transpose(x, (0, 2, 1))                # (B, T, C)
    m = jnp.transpose(x_mask, (0, 2, 1))            # (B, T, 1)
    T = xb.shape[1]
    for i in range(n_layers):
        d = kernel_size ** i
        pad = d * (kernel_size - 1) // 2
        xm = xb * m
        xp = jnp.pad(xm, ((0, 0), (pad, pad), (0, 0)))
        acc = jnp.zeros_like(xb) + dwb[i]
        for k in range(kernel_size):
            acc = acc + xp[:, k * d:k * d + T, :] * dww[i, k]
        mu = jnp.mean(acc, axis=-1, keepdims=True)
        var = jnp.mean((acc - mu) ** 2, axis=-1, keepdims=True)
        y = (acc - mu) * lax.rsqrt(var + eps) * g1[i] + b1[i]
        y = jax.nn.gelu(y, approximate=approx_gelu)
        if use_bf16_matmul:
            y = jnp.einsum("btc,cd->btd", y.astype(jnp.bfloat16),
                           pww[i].astype(jnp.bfloat16),
                           preferred_element_type=jnp.float32) + pwb[i]
        else:
            y = jnp.einsum("btc,cd->btd", y, pww[i]) + pwb[i]
        mu = jnp.mean(y, axis=-1, keepdims=True)
        var = jnp.mean((y - mu) ** 2, axis=-1, keepdims=True)
        y = (y - mu) * lax.rsqrt(var + eps) * g2[i] + b2[i]
        y = jax.nn.gelu(y, approximate=approx_gelu)
        xb = xb + y
    return jnp.transpose(xb * m, (0, 2, 1))


def init_params(key, channels, kernel_size, n_layers):
    L, C, K = n_layers, channels, kernel_size
    ks = jax.random.split(key, 8)
    dww = 0.1 * jax.random.normal(ks[0], (L, K, 1, C), jnp.float32)
    dwb = 0.1 * jax.random.normal(ks[1], (L, 1, C), jnp.float32)
    # PyTorch Conv1d(C, C, 1) weight is (C_out, C_in, 1); stored here as (C_in, C_out)
    pww = (0.1 * jax.random.normal(ks[2], (L, C, C), jnp.float32) / math.sqrt(C))
    pwb = 0.1 * jax.random.normal(ks[3], (L, 1, C), jnp.float32)
    g1 = 1.0 + 0.1 * jax.random.normal(ks[4], (L, 1, C), jnp.float32)
    b1 = 0.05 * jax.random.normal(ks[5], (L, 1, C), jnp.float32)
    g2 = 1.0 + 0.1 * jax.random.normal(ks[6], (L, 1, C), jnp.float32)
    b2 = 0.05 * jax.random.normal(ks[7], (L, 1, C), jnp.float32)
    return (dww, dwb, pww, pwb, g1, b1, g2, b2)


if __name__ == "__main__":
    B, C, T = 2, 128, 32
    kernel_size, n_layers = 3, 3

    key = jax.random.PRNGKey(0)
    kx, kg, km, kp = jax.random.split(key, 4)
    x = jax.random.normal(kx, (B, C, T), jnp.float32)
    gcond = 0.5 * jax.random.normal(kg, (B, C, T), jnp.float32)
    # binary length mask: first sequence full, second 3/4 valid
    lengths = jnp.array([T, 3 * T // 4])
    x_mask = (jnp.arange(T)[None, None, :] < lengths[:, None, None]).astype(jnp.float32)
    params = init_params(kp, C, kernel_size, n_layers)

    out = dds_conv(x, x_mask, params, kernel_size=kernel_size,
                   n_layers=n_layers, g=gcond)          # fast defaults (bf16 + tanh gelu)
    out = jax.block_until_ready(out)

    # reference run with matching numerics flags
    ref = dds_conv_reference(x, x_mask, params, kernel_size=kernel_size,
                             n_layers=n_layers, g=gcond,
                             use_bf16_matmul=True, approx_gelu=True)
    np.testing.assert_allclose(np.asarray(out), np.asarray(ref),
                               rtol=2e-3, atol=2e-3)
    print("KERNEL_OK")
</pallas_src>

<mosaic_0001>
module attributes {stable_mosaic.version = 11 : i64} {
  func.func @dds_conv_kernel(%arg0: i32, %arg1: memref<32x128xf32, #tpu.memory_space<vmem>>, %arg2: memref<32x1xf32, #tpu.memory_space<vmem>>, %arg3: memref<3x3x1x128xf32, #tpu.memory_space<vmem>>, %arg4: memref<3x1x128xf32, #tpu.memory_space<vmem>>, %arg5: memref<3x128x128xbf16, #tpu.memory_space<vmem>>, %arg6: memref<3x1x128xf32, #tpu.memory_space<vmem>>, %arg7: memref<3x1x128xf32, #tpu.memory_space<vmem>>, %arg8: memref<3x1x128xf32, #tpu.memory_space<vmem>>, %arg9: memref<3x1x128xf32, #tpu.memory_space<vmem>>, %arg10: memref<3x1x128xf32, #tpu.memory_space<vmem>>, %arg11: memref<32x128xf32, #tpu.memory_space<vmem>>) attributes {dimension_semantics = [#tpu.dimension_semantics<parallel>], iteration_bounds = array<i64: 2>, scalar_prefetch = 0 : i64, scratch_operands = 0 : i64, tpu.core_type = #tpu.core_type<tc>, window_params = [{transform_indices = @transform_0, window_bounds = array<i64: 32, 128>}, {transform_indices = @transform_1, window_bounds = array<i64: 32, 1>}, {pipeline_mode = #tpu.pipeline_mode<synchronous>, transform_indices = @transform_2, window_bounds = array<i64: 3, 3, 1, 128>}, {pipeline_mode = #tpu.pipeline_mode<synchronous>, transform_indices = @transform_3, window_bounds = array<i64: 3, 1, 128>}, {pipeline_mode = #tpu.pipeline_mode<synchronous>, transform_indices = @transform_4, window_bounds = array<i64: 3, 128, 128>}, {pipeline_mode = #tpu.pipeline_mode<synchronous>, transform_indices = @transform_5, window_bounds = array<i64: 3, 1, 128>}, {pipeline_mode = #tpu.pipeline_mode<synchronous>, transform_indices = @transform_6, window_bounds = array<i64: 3, 1, 128>}, {pipeline_mode = #tpu.pipeline_mode<synchronous>, transform_indices = @transform_7, window_bounds = array<i64: 3, 1, 128>}, {pipeline_mode = #tpu.pipeline_mode<synchronous>, transform_indices = @transform_8, window_bounds = array<i64: 3, 1, 128>}, {pipeline_mode = #tpu.pipeline_mode<synchronous>, transform_indices = @transform_9, window_bounds = array<i64: 3, 1, 128>}, {transform_indices = @transform_10, window_bounds = array<i64: 32, 128>}]} {
    %0 = tpu.iota {dimensions = array<i32: 0>} : vector<32x1xi32>
    %1 = arith.sitofp %0 : vector<32x1xi32> to vector<32x1xf32>
    %cst = arith.constant 5.000000e-01 : f32
    %2 = vector.broadcast %cst : f32 to vector<32x1xf32>
    %3 = arith.addf %1, %2 : vector<32x1xf32>
    %cst_0 = arith.constant 3.125000e-02 : f32
    %4 = vector.broadcast %cst_0 : f32 to vector<32x1xf32>
    %5 = arith.mulf %3, %4 : vector<32x1xf32>
    %6 = math.floor %5 : vector<32x1xf32>
    %cst_1 = arith.constant 3.200000e+01 : f32
    %7 = vector.broadcast %cst_1 : f32 to vector<32x1xf32>
    %8 = arith.mulf %6, %7 : vector<32x1xf32>
    %9 = arith.subf %1, %8 : vector<32x1xf32>
    %cst_2 = arith.constant 1.000000e+00 : f32
    %10 = vector.broadcast %cst_2 : f32 to vector<128x1xf32>
    %c0 = arith.constant 0 : index
    %c0_3 = arith.constant 0 : index
    %11 = vector.load %arg1[%c0, %c0_3] : memref<32x128xf32, #tpu.memory_space<vmem>>, vector<32x128xf32>
    %c0_4 = arith.constant 0 : index
    %c0_5 = arith.constant 0 : index
    %12 = vector.load %arg2[%c0_4, %c0_5] : memref<32x1xf32, #tpu.memory_space<vmem>>, vector<32x1xf32>
    %c0_6 = arith.constant 0 : index
    %c0_7 = arith.constant 0 : index
    %c0_8 = arith.constant 0 : index
    %c0_9 = arith.constant 0 : index
    %13 = vector.load %arg3[%c0_6, %c0_7, %c0_8, %c0_9] : memref<3x3x1x128xf32, #tpu.memory_space<vmem>>, vector<1x3x1x128xf32>
    %14 = vector.shape_cast %13 : vector<1x3x1x128xf32> to vector<3x1x128xf32>
    %c0_10 = arith.constant 0 : index
    %c0_11 = arith.constant 0 : index
    %c0_12 = arith.constant 0 : index
    %15 = vector.load %arg4[%c0_10, %c0_11, %c0_12] : memref<3x1x128xf32, #tpu.memory_space<vmem>>, vector<1x1x128xf32>
    %16 = vector.shape_cast %15 : vector<1x1x128xf32> to vector<1x128xf32>
    %c0_13 = arith.constant 0 : index
    %c0_14 = arith.constant 0 : index
    %c0_15 = arith.constant 0 : index
    %17 = vector.load %arg5[%c0_13, %c0_14, %c0_15] : memref<3x128x128xbf16, #tpu.memory_space<vmem>>, vector<1x128x128xbf16>
    %18 = vector.shape_cast %17 : vector<1x128x128xbf16> to vector<128x128xbf16>
    %c0_16 = arith.constant 0 : index
    %c0_17 = arith.constant 0 : index
    %c0_18 = arith.constant 0 : index
    %19 = vector.load %arg6[%c0_16, %c0_17, %c0_18] : memref<3x1x128xf32, #tpu.memory_space<vmem>>, vector<1x1x128xf32>
    %20 = vector.shape_cast %19 : vector<1x1x128xf32> to vector<1x128xf32>
    %c0_19 = arith.constant 0 : index
    %c0_20 = arith.constant 0 : index
    %c0_21 = arith.constant 0 : index
    %21 = vector.load %arg7[%c0_19, %c0_20, %c0_21] : memref<3x1x128xf32, #tpu.memory_space<vmem>>, vector<1x1x128xf32>
    %22 = vector.shape_cast %21 : vector<1x1x128xf32> to vector<1x128xf32>
    %c0_22 = arith.constant 0 : index
    %c0_23 = arith.constant 0 : index
    %c0_24 = arith.constant 0 : index
    %23 = vector.load %arg8[%c0_22, %c0_23, %c0_24] : memref<3x1x128xf32, #tpu.memory_space<vmem>>, vector<1x1x128xf32>
    %24 = vector.shape_cast %23 : vector<1x1x128xf32> to vector<1x128xf32>
    %c0_25 = arith.constant 0 : index
    %c0_26 = arith.constant 0 : index
    %c0_27 = arith.constant 0 : index
    %25 = vector.load %arg9[%c0_25, %c0_26, %c0_27] : memref<3x1x128xf32, #tpu.memory_space<vmem>>, vector<1x1x128xf32>
    %26 = vector.shape_cast %25 : vector<1x1x128xf32> to vector<1x128xf32>
    %c0_28 = arith.constant 0 : index
    %c0_29 = arith.constant 0 : index
    %c0_30 = arith.constant 0 : index
    %27 = vector.load %arg10[%c0_28, %c0_29, %c0_30] : memref<3x1x128xf32, #tpu.memory_space<vmem>>, vector<1x1x128xf32>
    %28 = vector.shape_cast %27 : vector<1x1x128xf32> to vector<1x128xf32>
    %29 = vector.broadcast %12 : vector<32x1xf32> to vector<32x128xf32>
    %30 = arith.mulf %11, %29 : vector<32x128xf32>
    %31 = vector.extract_strided_slice %14 {offsets = [1, 0, 0], sizes = [1, 1, 128], strides = [1, 1, 1]} : vector<3x1x128xf32> to vector<1x1x128xf32>
    %32 = vector.shape_cast %31 : vector<1x1x128xf32> to vector<1x128xf32>
    %33 = vector.broadcast %32 : vector<1x128xf32> to vector<32x128xf32>
    %34 = arith.mulf %30, %33 : vector<32x128xf32>
    %35 = vector.broadcast %16 : vector<1x128xf32> to vector<32x128xf32>
    %36 = arith.addf %35, %34 : vector<32x128xf32>
    %c1_i32 = arith.constant 1 : i32
    %37 = tpu.dynamic_rotate %30 by %c1_i32 dim 0 : vector<32x128xf32>, i32 -> vector<32x128xf32>
    %cst_31 = arith.constant 1.000000e+00 : f32
    %38 = vector.broadcast %cst_31 : f32 to vector<32x1xf32>
    %39 = arith.cmpf oge, %9, %38 : vector<32x1xf32>
    %cst_32 = arith.constant 1.000000e+00 : f32
    %cst_33 = arith.constant 0.000000e+00 : f32
    %40 = vector.broadcast %cst_32 : f32 to vector<32x1xf32>
    %41 = vector.broadcast %cst_33 : f32 to vector<32x1xf32>
    %42 = arith.select %39, %40, %41 : vector<32x1xi1>, vector<32x1xf32>
    %43 = vector.broadcast %42 : vector<32x1xf32> to vector<32x128xf32>
    %44 = arith.mulf %37, %43 : vector<32x128xf32>
    %45 = vector.extract_strided_slice %14 {offsets = [0, 0, 0], sizes = [1, 1, 128], strides = [1, 1, 1]} : vector<3x1x128xf32> to vector<1x1x128xf32>
    %46 = vector.shape_cast %45 : vector<1x1x128xf32> to vector<1x128xf32>
    %47 = vector.broadcast %46 : vector<1x128xf32> to vector<32x128xf32>
    %48 = arith.mulf %44, %47 : vector<32x128xf32>
    %49 = arith.addf %36, %48 : vector<32x128xf32>
    %c31_i32 = arith.constant 31 : i32
    %50 = tpu.dynamic_rotate %30 by %c31_i32 dim 0 : vector<32x128xf32>, i32 -> vector<32x128xf32>
    %cst_34 = arith.constant 3.100000e+01 : f32
    %51 = vector.broadcast %cst_34 : f32 to vector<32x1xf32>
    %52 = arith.cmpf olt, %9, %51 : vector<32x1xf32>
    %cst_35 = arith.constant 1.000000e+00 : f32
    %cst_36 = arith.constant 0.000000e+00 : f32
    %53 = vector.broadcast %cst_35 : f32 to vector<32x1xf32>
    %54 = vector.broadcast %cst_36 : f32 to vector<32x1xf32>
    %55 = arith.select %52, %53, %54 : vector<32x1xi1>, vector<32x1xf32>
    %56 = vector.broadcast %55 : vector<32x1xf32> to vector<32x128xf32>
    %57 = arith.mulf %50, %56 : vector<32x128xf32>
    %58 = vector.extract_strided_slice %14 {offsets = [2, 0, 0], sizes = [1, 1, 128], strides = [1, 1, 1]} : vector<3x1x128xf32> to vector<1x1x128xf32>
    %59 = vector.shape_cast %58 : vector<1x1x128xf32> to vector<1x128xf32>
    %60 = vector.broadcast %59 : vector<1x128xf32> to vector<32x128xf32>
    %61 = arith.mulf %57, %60 : vector<32x128xf32>
    %62 = arith.addf %49, %61 : vector<32x128xf32>
    %cst_37 = arith.constant dense<0.000000e+00> : vector<32x1xf32>
    %63 = tpu.matmul %62, %10, %cst_37 {dimension_numbers = #tpu.dot_dimension_numbers<[1], [0], [0], [1], [0, 0, 1, 1], [], []>} : vector<32x128xf32>, vector<128x1xf32>, vector<32x1xf32> -> vector<32x1xf32>
    %cst_38 = arith.constant 7.812500e-03 : f32
    %64 = vector.broadcast %cst_38 : f32 to vector<32x1xf32>
    %65 = arith.mulf %63, %64 : vector<32x1xf32>
    %66 = vector.broadcast %65 : vector<32x1xf32> to vector<32x128xf32>
    %67 = arith.subf %62, %66 : vector<32x128xf32>
    %68 = arith.mulf %67, %67 : vector<32x128xf32>
    %cst_39 = arith.constant dense<0.000000e+00> : vector<32x1xf32>
    %69 = tpu.matmul %68, %10, %cst_39 {dimension_numbers = #tpu.dot_dimension_numbers<[1], [0], [0], [1], [0, 0, 1, 1], [], []>} : vector<32x128xf32>, vector<128x1xf32>, vector<32x1xf32> -> vector<32x1xf32>
    %cst_40 = arith.constant 7.812500e-03 : f32
    %70 = vector.broadcast %cst_40 : f32 to vector<32x1xf32>
    %71 = arith.mulf %69, %70 : vector<32x1xf32>
    %cst_41 = arith.constant 9.99999974E-6 : f32
    %72 = vector.broadcast %cst_41 : f32 to vector<32x1xf32>
    %73 = arith.addf %71, %72 : vector<32x1xf32>
    %74 = math.rsqrt %73 : vector<32x1xf32>
    %75 = vector.broadcast %74 : vector<32x1xf32> to vector<32x128xf32>
    %76 = arith.mulf %67, %75 : vector<32x128xf32>
    %77 = vector.broadcast %22 : vector<1x128xf32> to vector<32x128xf32>
    %78 = arith.mulf %76, %77 : vector<32x128xf32>
    %79 = vector.broadcast %24 : vector<1x128xf32> to vector<32x128xf32>
    %80 = arith.addf %78, %79 : vector<32x128xf32>
    %81 = arith.mulf %80, %80 : vector<32x128xf32>
    %82 = arith.mulf %80, %81 : vector<32x128xf32>
    %cst_42 = arith.constant 4.471500e-02 : f32
    %83 = vector.broadcast %cst_42 : f32 to vector<32x128xf32>
    %84 = arith.mulf %83, %82 : vector<32x128xf32>
    %85 = arith.addf %80, %84 : vector<32x128xf32>
    %cst_43 = arith.constant 0.797884583 : f32
    %86 = vector.broadcast %cst_43 : f32 to vector<32x128xf32>
    %87 = arith.mulf %86, %85 : vector<32x128xf32>
    %88 = math.tanh %87 : vector<32x128xf32>
    %cst_44 = arith.constant 1.000000e+00 : f32
    %89 = vector.broadcast %cst_44 : f32 to vector<32x128xf32>
    %90 = arith.addf %89, %88 : vector<32x128xf32>
    %cst_45 = arith.constant 5.000000e-01 : f32
    %91 = vector.broadcast %cst_45 : f32 to vector<32x128xf32>
    %92 = arith.mulf %91, %90 : vector<32x128xf32>
    %93 = arith.mulf %80, %92 : vector<32x128xf32>
    %94 = arith.truncf %93 : vector<32x128xf32> to vector<32x128xbf16>
    %cst_46 = arith.constant dense<0.000000e+00> : vector<32x128xf32>
    %95 = tpu.matmul %94, %18, %cst_46 {dimension_numbers = #tpu.dot_dimension_numbers<[1], [0], [0], [1], [0, 0, 1, 1], [], []>} : vector<32x128xbf16>, vector<128x128xbf16>, vector<32x128xf32> -> vector<32x128xf32>
    %96 = vector.broadcast %20 : vector<1x128xf32> to vector<32x128xf32>
    %97 = arith.addf %95, %96 : vector<32x128xf32>
    %cst_47 = arith.constant dense<0.000000e+00> : vector<32x1xf32>
    %98 = tpu.matmul %97, %10, %cst_47 {dimension_numbers = #tpu.dot_dimension_numbers<[1], [0], [0], [1], [0, 0, 1, 1], [], []>} : vector<32x128xf32>, vector<128x1xf32>, vector<32x1xf32> -> vector<32x1xf32>
    %cst_48 = arith.constant 7.812500e-03 : f32
    %99 = vector.broadcast %cst_48 : f32 to vector<32x1xf32>
    %100 = arith.mulf %98, %99 : vector<32x1xf32>
    %101 = vector.broadcast %100 : vector<32x1xf32> to vector<32x128xf32>
    %102 = arith.subf %97, %101 : vector<32x128xf32>
    %103 = arith.mulf %102, %102 : vector<32x128xf32>
    %cst_49 = arith.constant dense<0.000000e+00> : vector<32x1xf32>
    %104 = tpu.matmul %103, %10, %cst_49 {dimension_numbers = #tpu.dot_dimension_numbers<[1], [0], [0], [1], [0, 0, 1, 1], [], []>} : vector<32x128xf32>, vector<128x1xf32>, vector<32x1xf32> -> vector<32x1xf32>
    %cst_50 = arith.constant 7.812500e-03 : f32
    %105 = vector.broadcast %cst_50 : f32 to vector<32x1xf32>
    %106 = arith.mulf %104, %105 : vector<32x1xf32>
    %cst_51 = arith.constant 9.99999974E-6 : f32
    %107 = vector.broadcast %cst_51 : f32 to vector<32x1xf32>
    %108 = arith.addf %106, %107 : vector<32x1xf32>
    %109 = math.rsqrt %108 : vector<32x1xf32>
    %110 = vector.broadcast %109 : vector<32x1xf32> to vector<32x128xf32>
    %111 = arith.mulf %102, %110 : vector<32x128xf32>
    %112 = vector.broadcast %26 : vector<1x128xf32> to vector<32x128xf32>
    %113 = arith.mulf %111, %112 : vector<32x128xf32>
    %114 = vector.broadcast %28 : vector<1x128xf32> to vector<32x128xf32>
    %115 = arith.addf %113, %114 : vector<32x128xf32>
    %116 = arith.mulf %115, %115 : vector<32x128xf32>
    %117 = arith.mulf %115, %116 : vector<32x128xf32>
    %cst_52 = arith.constant 4.471500e-02 : f32
    %118 = vector.broadcast %cst_52 : f32 to vector<32x128xf32>
    %119 = arith.mulf %118, %117 : vector<32x128xf32>
    %120 = arith.addf %115, %119 : vector<32x128xf32>
    %cst_53 = arith.constant 0.797884583 : f32
    %121 = vector.broadcast %cst_53 : f32 to vector<32x128xf32>
    %122 = arith.mulf %121, %120 : vector<32x128xf32>
    %123 = math.tanh %122 : vector<32x128xf32>
    %cst_54 = arith.constant 1.000000e+00 : f32
    %124 = vector.broadcast %cst_54 : f32 to vector<32x128xf32>
    %125 = arith.addf %124, %123 : vector<32x128xf32>
    %cst_55 = arith.constant 5.000000e-01 : f32
    %126 = vector.broadcast %cst_55 : f32 to vector<32x128xf32>
    %127 = arith.mulf %126, %125 : vector<32x128xf32>
    %128 = arith.mulf %115, %127 : vector<32x128xf32>
    %129 = arith.addf %11, %128 : vector<32x128xf32>
    %c1 = arith.constant 1 : index
    %c0_56 = arith.constant 0 : index
    %c0_57 = arith.constant 0 : index
    %c0_58 = arith.constant 0 : index
    %130 = vector.load %arg3[%c1, %c0_56, %c0_57, %c0_58] : memref<3x3x1x128xf32, #tpu.memory_space<vmem>>, vector<1x3x1x128xf32>
    %131 = vector.shape_cast %130 : vector<1x3x1x128xf32> to vector<3x1x128xf32>
    %c1_59 = arith.constant 1 : index
    %c0_60 = arith.constant 0 : index
    %c0_61 = arith.constant 0 : index
    %132 = vector.load %arg4[%c1_59, %c0_60, %c0_61] : memref<3x1x128xf32, #tpu.memory_space<vmem>>, vector<1x1x128xf32>
    %133 = vector.shape_cast %132 : vector<1x1x128xf32> to vector<1x128xf32>
    %c1_62 = arith.constant 1 : index
    %c0_63 = arith.constant 0 : index
    %c0_64 = arith.constant 0 : index
    %134 = vector.load %arg5[%c1_62, %c0_63, %c0_64] : memref<3x128x128xbf16, #tpu.memory_space<vmem>>, vector<1x128x128xbf16>
    %135 = vector.shape_cast %134 : vector<1x128x128xbf16> to vector<128x128xbf16>
    %c1_65 = arith.constant 1 : index
    %c0_66 = arith.constant 0 : index
    %c0_67 = arith.constant 0 : index
    %136 = vector.load %arg6[%c1_65, %c0_66, %c0_67] : memref<3x1x128xf32, #tpu.memory_space<vmem>>, vector<1x1x128xf32>
    %137 = vector.shape_cast %136 : vector<1x1x128xf32> to vector<1x128xf32>
    %c1_68 = arith.constant 1 : index
    %c0_69 = arith.constant 0 : index
    %c0_70 = arith.constant 0 : index
    %138 = vector.load %arg7[%c1_68, %c0_69, %c0_70] : memref<3x1x128xf32, #tpu.memory_space<vmem>>, vector<1x1x128xf32>
    %139 = vector.shape_cast %138 : vector<1x1x128xf32> to vector<1x128xf32>
    %c1_71 = arith.constant 1 : index
    %c0_72 = arith.constant 0 : index
    %c0_73 = arith.constant 0 : index
    %140 = vector.load %arg8[%c1_71, %c0_72, %c0_73] : memref<3x1x128xf32, #tpu.memory_space<vmem>>, vector<1x1x128xf32>
    %141 = vector.shape_cast %140 : vector<1x1x128xf32> to vector<1x128xf32>
    %c1_74 = arith.constant 1 : index
    %c0_75 = arith.constant 0 : index
    %c0_76 = arith.constant 0 : index
    %142 = vector.load %arg9[%c1_74, %c0_75, %c0_76] : memref<3x1x128xf32, #tpu.memory_space<vmem>>, vector<1x1x128xf32>
    %143 = vector.shape_cast %142 : vector<1x1x128xf32> to vector<1x128xf32>
    %c1_77 = arith.constant 1 : index
    %c0_78 = arith.constant 0 : index
    %c0_79 = arith.constant 0 : index
    %144 = vector.load %arg10[%c1_77, %c0_78, %c0_79] : memref<3x1x128xf32, #tpu.memory_space<vmem>>, vector<1x1x128xf32>
    %145 = vector.shape_cast %144 : vector<1x1x128xf32> to vector<1x128xf32>
    %146 = vector.broadcast %12 : vector<32x1xf32> to vector<32x128xf32>
    %147 = arith.mulf %129, %146 : vector<32x128xf32>
    %148 = vector.extract_strided_slice %131 {offsets = [1, 0, 0], sizes = [1, 1, 128], strides = [1, 1, 1]} : vector<3x1x128xf32> to vector<1x1x128xf32>
    %149 = vector.shape_cast %148 : vector<1x1x128xf32> to vector<1x128xf32>
    %150 = vector.broadcast %149 : vector<1x128xf32> to vector<32x128xf32>
    %151 = arith.mulf %147, %150 : vector<32x128xf32>
    %152 = vector.broadcast %133 : vector<1x128xf32> to vector<32x128xf32>
    %153 = arith.addf %152, %151 : vector<32x128xf32>
    %c3_i32 = arith.constant 3 : i32
    %154 = tpu.dynamic_rotate %147 by %c3_i32 dim 0 : vector<32x128xf32>, i32 -> vector<32x128xf32>
    %cst_80 = arith.constant 3.000000e+00 : f32
    %155 = vector.broadcast %cst_80 : f32 to vector<32x1xf32>
    %156 = arith.cmpf oge, %9, %155 : vector<32x1xf32>
    %cst_81 = arith.constant 1.000000e+00 : f32
    %cst_82 = arith.constant 0.000000e+00 : f32
    %157 = vector.broadcast %cst_81 : f32 to vector<32x1xf32>
    %158 = vector.broadcast %cst_82 : f32 to vector<32x1xf32>
    %159 = arith.select %156, %157, %158 : vector<32x1xi1>, vector<32x1xf32>
    %160 = vector.broadcast %159 : vector<32x1xf32> to vector<32x128xf32>
    %161 = arith.mulf %154, %160 : vector<32x128xf32>
    %162 = vector.extract_strided_slice %131 {offsets = [0, 0, 0], sizes = [1, 1, 128], strides = [1, 1, 1]} : vector<3x1x128xf32> to vector<1x1x128xf32>
    %163 = vector.shape_cast %162 : vector<1x1x128xf32> to vector<1x128xf32>
    %164 = vector.broadcast %163 : vector<1x128xf32> to vector<32x128xf32>
    %165 = arith.mulf %161, %164 : vector<32x128xf32>
    %166 = arith.addf %153, %165 : vector<32x128xf32>
    %c29_i32 = arith.constant 29 : i32
    %167 = tpu.dynamic_rotate %147 by %c29_i32 dim 0 : vector<32x128xf32>, i32 -> vector<32x128xf32>
    %cst_83 = arith.constant 2.900000e+01 : f32
    %168 = vector.broadcast %cst_83 : f32 to vector<32x1xf32>
    %169 = arith.cmpf olt, %9, %168 : vector<32x1xf32>
    %cst_84 = arith.constant 1.000000e+00 : f32
    %cst_85 = arith.constant 0.000000e+00 : f32
    %170 = vector.broadcast %cst_84 : f32 to vector<32x1xf32>
    %171 = vector.broadcast %cst_85 : f32 to vector<32x1xf32>
    %172 = arith.select %169, %170, %171 : vector<32x1xi1>, vector<32x1xf32>
    %173 = vector.broadcast %172 : vector<32x1xf32> to vector<32x128xf32>
    %174 = arith.mulf %167, %173 : vector<32x128xf32>
    %175 = vector.extract_strided_slice %131 {offsets = [2, 0, 0], sizes = [1, 1, 128], strides = [1, 1, 1]} : vector<3x1x128xf32> to vector<1x1x128xf32>
    %176 = vector.shape_cast %175 : vector<1x1x128xf32> to vector<1x128xf32>
    %177 = vector.broadcast %176 : vector<1x128xf32> to vector<32x128xf32>
    %178 = arith.mulf %174, %177 : vector<32x128xf32>
    %179 = arith.addf %166, %178 : vector<32x128xf32>
    %cst_86 = arith.constant dense<0.000000e+00> : vector<32x1xf32>
    %180 = tpu.matmul %179, %10, %cst_86 {dimension_numbers = #tpu.dot_dimension_numbers<[1], [0], [0], [1], [0, 0, 1, 1], [], []>} : vector<32x128xf32>, vector<128x1xf32>, vector<32x1xf32> -> vector<32x1xf32>
    %cst_87 = arith.constant 7.812500e-03 : f32
    %181 = vector.broadcast %cst_87 : f32 to vector<32x1xf32>
    %182 = arith.mulf %180, %181 : vector<32x1xf32>
    %183 = vector.broadcast %182 : vector<32x1xf32> to vector<32x128xf32>
    %184 = arith.subf %179, %183 : vector<32x128xf32>
    %185 = arith.mulf %184, %184 : vector<32x128xf32>
    %cst_88 = arith.constant dense<0.000000e+00> : vector<32x1xf32>
    %186 = tpu.matmul %185, %10, %cst_88 {dimension_numbers = #tpu.dot_dimension_numbers<[1], [0], [0], [1], [0, 0, 1, 1], [], []>} : vector<32x128xf32>, vector<128x1xf32>, vector<32x1xf32> -> vector<32x1xf32>
    %cst_89 = arith.constant 7.812500e-03 : f32
    %187 = vector.broadcast %cst_89 : f32 to vector<32x1xf32>
    %188 = arith.mulf %186, %187 : vector<32x1xf32>
    %cst_90 = arith.constant 9.99999974E-6 : f32
    %189 = vector.broadcast %cst_90 : f32 to vector<32x1xf32>
    %190 = arith.addf %188, %189 : vector<32x1xf32>
    %191 = math.rsqrt %190 : vector<32x1xf32>
    %192 = vector.broadcast %191 : vector<32x1xf32> to vector<32x128xf32>
    %193 = arith.mulf %184, %192 : vector<32x128xf32>
    %194 = vector.broadcast %139 : vector<1x128xf32> to vector<32x128xf32>
    %195 = arith.mulf %193, %194 : vector<32x128xf32>
    %196 = vector.broadcast %141 : vector<1x128xf32> to vector<32x128xf32>
    %197 = arith.addf %195, %196 : vector<32x128xf32>
    %198 = arith.mulf %197, %197 : vector<32x128xf32>
    %199 = arith.mulf %197, %198 : vector<32x128xf32>
    %cst_91 = arith.constant 4.471500e-02 : f32
    %200 = vector.broadcast %cst_91 : f32 to vector<32x128xf32>
    %201 = arith.mulf %200, %199 : vector<32x128xf32>
    %202 = arith.addf %197, %201 : vector<32x128xf32>
    %cst_92 = arith.constant 0.797884583 : f32
    %203 = vector.broadcast %cst_92 : f32 to vector<32x128xf32>
    %204 = arith.mulf %203, %202 : vector<32x128xf32>
    %205 = math.tanh %204 : vector<32x128xf32>
    %cst_93 = arith.constant 1.000000e+00 : f32
    %206 = vector.broadcast %cst_93 : f32 to vector<32x128xf32>
    %207 = arith.addf %206, %205 : vector<32x128xf32>
    %cst_94 = arith.constant 5.000000e-01 : f32
    %208 = vector.broadcast %cst_94 : f32 to vector<32x128xf32>
    %209 = arith.mulf %208, %207 : vector<32x128xf32>
    %210 = arith.mulf %197, %209 : vector<32x128xf32>
    %211 = arith.truncf %210 : vector<32x128xf32> to vector<32x128xbf16>
    %cst_95 = arith.constant dense<0.000000e+00> : vector<32x128xf32>
    %212 = tpu.matmul %211, %135, %cst_95 {dimension_numbers = #tpu.dot_dimension_numbers<[1], [0], [0], [1], [0, 0, 1, 1], [], []>} : vector<32x128xbf16>, vector<128x128xbf16>, vector<32x128xf32> -> vector<32x128xf32>
    %213 = vector.broadcast %137 : vector<1x128xf32> to vector<32x128xf32>
    %214 = arith.addf %212, %213 : vector<32x128xf32>
    %cst_96 = arith.constant dense<0.000000e+00> : vector<32x1xf32>
    %215 = tpu.matmul %214, %10, %cst_96 {dimension_numbers = #tpu.dot_dimension_numbers<[1], [0], [0], [1], [0, 0, 1, 1], [], []>} : vector<32x128xf32>, vector<128x1xf32>, vector<32x1xf32> -> vector<32x1xf32>
    %cst_97 = arith.constant 7.812500e-03 : f32
    %216 = vector.broadcast %cst_97 : f32 to vector<32x1xf32>
    %217 = arith.mulf %215, %216 : vector<32x1xf32>
    %218 = vector.broadcast %217 : vector<32x1xf32> to vector<32x128xf32>
    %219 = arith.subf %214, %218 : vector<32x128xf32>
    %220 = arith.mulf %219, %219 : vector<32x128xf32>
    %cst_98 = arith.constant dense<0.000000e+00> : vector<32x1xf32>
    %221 = tpu.matmul %220, %10, %cst_98 {dimension_numbers = #tpu.dot_dimension_numbers<[1], [0], [0], [1], [0, 0, 1, 1], [], []>} : vector<32x128xf32>, vector<128x1xf32>, vector<32x1xf32> -> vector<32x1xf32>
    %cst_99 = arith.constant 7.812500e-03 : f32
    %222 = vector.broadcast %cst_99 : f32 to vector<32x1xf32>
    %223 = arith.mulf %221, %222 : vector<32x1xf32>
    %cst_100 = arith.constant 9.99999974E-6 : f32
    %224 = vector.broadcast %cst_100 : f32 to vector<32x1xf32>
    %225 = arith.addf %223, %224 : vector<32x1xf32>
    %226 = math.rsqrt %225 : vector<32x1xf32>
    %227 = vector.broadcast %226 : vector<32x1xf32> to vector<32x128xf32>
    %228 = arith.mulf %219, %227 : vector<32x128xf32>
    %229 = vector.broadcast %143 : vector<1x128xf32> to vector<32x128xf32>
    %230 = arith.mulf %228, %229 : vector<32x128xf32>
    %231 = vector.broadcast %145 : vector<1x128xf32> to vector<32x128xf32>
    %232 = arith.addf %230, %231 : vector<32x128xf32>
    %233 = arith.mulf %232, %232 : vector<32x128xf32>
    %234 = arith.mulf %232, %233 : vector<32x128xf32>
    %cst_101 = arith.constant 4.471500e-02 : f32
    %235 = vector.broadcast %cst_101 : f32 to vector<32x128xf32>
    %236 = arith.mulf %235, %234 : vector<32x128xf32>
    %237 = arith.addf %232, %236 : vector<32x128xf32>
    %cst_102 = arith.constant 0.797884583 : f32
    %238 = vector.broadcast %cst_102 : f32 to vector<32x128xf32>
    %239 = arith.mulf %238, %237 : vector<32x128xf32>
    %240 = math.tanh %239 : vector<32x128xf32>
    %cst_103 = arith.constant 1.000000e+00 : f32
    %241 = vector.broadcast %cst_103 : f32 to vector<32x128xf32>
    %242 = arith.addf %241, %240 : vector<32x128xf32>
    %cst_104 = arith.constant 5.000000e-01 : f32
    %243 = vector.broadcast %cst_104 : f32 to vector<32x128xf32>
    %244 = arith.mulf %243, %242 : vector<32x128xf32>
    %245 = arith.mulf %232, %244 : vector<32x128xf32>
    %246 = arith.addf %129, %245 : vector<32x128xf32>
    %c2 = arith.constant 2 : index
    %c0_105 = arith.constant 0 : index
    %c0_106 = arith.constant 0 : index
    %c0_107 = arith.constant 0 : index
    %247 = vector.load %arg3[%c2, %c0_105, %c0_106, %c0_107] : memref<3x3x1x128xf32, #tpu.memory_space<vmem>>, vector<1x3x1x128xf32>
    %248 = vector.shape_cast %247 : vector<1x3x1x128xf32> to vector<3x1x128xf32>
    %c2_108 = arith.constant 2 : index
    %c0_109 = arith.constant 0 : index
    %c0_110 = arith.constant 0 : index
    %249 = vector.load %arg4[%c2_108, %c0_109, %c0_110] : memref<3x1x128xf32, #tpu.memory_space<vmem>>, vector<1x1x128xf32>
    %250 = vector.shape_cast %249 : vector<1x1x128xf32> to vector<1x128xf32>
    %c2_111 = arith.constant 2 : index
    %c0_112 = arith.constant 0 : index
    %c0_113 = arith.constant 0 : index
    %251 = vector.load %arg5[%c2_111, %c0_112, %c0_113] : memref<3x128x128xbf16, #tpu.memory_space<vmem>>, vector<1x128x128xbf16>
    %252 = vector.shape_cast %251 : vector<1x128x128xbf16> to vector<128x128xbf16>
    %c2_114 = arith.constant 2 : index
    %c0_115 = arith.constant 0 : index
    %c0_116 = arith.constant 0 : index
    %253 = vector.load %arg6[%c2_114, %c0_115, %c0_116] : memref<3x1x128xf32, #tpu.memory_space<vmem>>, vector<1x1x128xf32>
    %254 = vector.shape_cast %253 : vector<1x1x128xf32> to vector<1x128xf32>
    %c2_117 = arith.constant 2 : index
    %c0_118 = arith.constant 0 : index
    %c0_119 = arith.constant 0 : index
    %255 = vector.load %arg7[%c2_117, %c0_118, %c0_119] : memref<3x1x128xf32, #tpu.memory_space<vmem>>, vector<1x1x128xf32>
    %256 = vector.shape_cast %255 : vector<1x1x128xf32> to vector<1x128xf32>
    %c2_120 = arith.constant 2 : index
    %c0_121 = arith.constant 0 : index
    %c0_122 = arith.constant 0 : index
    %257 = vector.load %arg8[%c2_120, %c0_121, %c0_122] : memref<3x1x128xf32, #tpu.memory_space<vmem>>, vector<1x1x128xf32>
    %258 = vector.shape_cast %257 : vector<1x1x128xf32> to vector<1x128xf32>
    %c2_123 = arith.constant 2 : index
    %c0_124 = arith.constant 0 : index
    %c0_125 = arith.constant 0 : index
    %259 = vector.load %arg9[%c2_123, %c0_124, %c0_125] : memref<3x1x128xf32, #tpu.memory_space<vmem>>, vector<1x1x128xf32>
    %260 = vector.shape_cast %259 : vector<1x1x128xf32> to vector<1x128xf32>
    %c2_126 = arith.constant 2 : index
    %c0_127 = arith.constant 0 : index
    %c0_128 = arith.constant 0 : index
    %261 = vector.load %arg10[%c2_126, %c0_127, %c0_128] : memref<3x1x128xf32, #tpu.memory_space<vmem>>, vector<1x1x128xf32>
    %262 = vector.shape_cast %261 : vector<1x1x128xf32> to vector<1x128xf32>
    %263 = vector.broadcast %12 : vector<32x1xf32> to vector<32x128xf32>
    %264 = arith.mulf %246, %263 : vector<32x128xf32>
    %265 = vector.extract_strided_slice %248 {offsets = [1, 0, 0], sizes = [1, 1, 128], strides = [1, 1, 1]} : vector<3x1x128xf32> to vector<1x1x128xf32>
    %266 = vector.shape_cast %265 : vector<1x1x128xf32> to vector<1x128xf32>
    %267 = vector.broadcast %266 : vector<1x128xf32> to vector<32x128xf32>
    %268 = arith.mulf %264, %267 : vector<32x128xf32>
    %269 = vector.broadcast %250 : vector<1x128xf32> to vector<32x128xf32>
    %270 = arith.addf %269, %268 : vector<32x128xf32>
    %c9_i32 = arith.constant 9 : i32
    %271 = tpu.dynamic_rotate %264 by %c9_i32 dim 0 : vector<32x128xf32>, i32 -> vector<32x128xf32>
    %cst_129 = arith.constant 9.000000e+00 : f32
    %272 = vector.broadcast %cst_129 : f32 to vector<32x1xf32>
    %273 = arith.cmpf oge, %9, %272 : vector<32x1xf32>
    %cst_130 = arith.constant 1.000000e+00 : f32
    %cst_131 = arith.constant 0.000000e+00 : f32
    %274 = vector.broadcast %cst_130 : f32 to vector<32x1xf32>
    %275 = vector.broadcast %cst_131 : f32 to vector<32x1xf32>
    %276 = arith.select %273, %274, %275 : vector<32x1xi1>, vector<32x1xf32>
    %277 = vector.broadcast %276 : vector<32x1xf32> to vector<32x128xf32>
    %278 = arith.mulf %271, %277 : vector<32x128xf32>
    %279 = vector.extract_strided_slice %248 {offsets = [0, 0, 0], sizes = [1, 1, 128], strides = [1, 1, 1]} : vector<3x1x128xf32> to vector<1x1x128xf32>
    %280 = vector.shape_cast %279 : vector<1x1x128xf32> to vector<1x128xf32>
    %281 = vector.broadcast %280 : vector<1x128xf32> to vector<32x128xf32>
    %282 = arith.mulf %278, %281 : vector<32x128xf32>
    %283 = arith.addf %270, %282 : vector<32x128xf32>
    %c23_i32 = arith.constant 23 : i32
    %284 = tpu.dynamic_rotate %264 by %c23_i32 dim 0 : vector<32x128xf32>, i32 -> vector<32x128xf32>
    %cst_132 = arith.constant 2.300000e+01 : f32
    %285 = vector.broadcast %cst_132 : f32 to vector<32x1xf32>
    %286 = arith.cmpf olt, %9, %285 : vector<32x1xf32>
    %cst_133 = arith.constant 1.000000e+00 : f32
    %cst_134 = arith.constant 0.000000e+00 : f32
    %287 = vector.broadcast %cst_133 : f32 to vector<32x1xf32>
    %288 = vector.broadcast %cst_134 : f32 to vector<32x1xf32>
    %289 = arith.select %286, %287, %288 : vector<32x1xi1>, vector<32x1xf32>
    %290 = vector.broadcast %289 : vector<32x1xf32> to vector<32x128xf32>
    %291 = arith.mulf %284, %290 : vector<32x128xf32>
    %292 = vector.extract_strided_slice %248 {offsets = [2, 0, 0], sizes = [1, 1, 128], strides = [1, 1, 1]} : vector<3x1x128xf32> to vector<1x1x128xf32>
    %293 = vector.shape_cast %292 : vector<1x1x128xf32> to vector<1x128xf32>
    %294 = vector.broadcast %293 : vector<1x128xf32> to vector<32x128xf32>
    %295 = arith.mulf %291, %294 : vector<32x128xf32>
    %296 = arith.addf %283, %295 : vector<32x128xf32>
    %cst_135 = arith.constant dense<0.000000e+00> : vector<32x1xf32>
    %297 = tpu.matmul %296, %10, %cst_135 {dimension_numbers = #tpu.dot_dimension_numbers<[1], [0], [0], [1], [0, 0, 1, 1], [], []>} : vector<32x128xf32>, vector<128x1xf32>, vector<32x1xf32> -> vector<32x1xf32>
    %cst_136 = arith.constant 7.812500e-03 : f32
    %298 = vector.broadcast %cst_136 : f32 to vector<32x1xf32>
    %299 = arith.mulf %297, %298 : vector<32x1xf32>
    %300 = vector.broadcast %299 : vector<32x1xf32> to vector<32x128xf32>
    %301 = arith.subf %296, %300 : vector<32x128xf32>
    %302 = arith.mulf %301, %301 : vector<32x128xf32>
    %cst_137 = arith.constant dense<0.000000e+00> : vector<32x1xf32>
    %303 = tpu.matmul %302, %10, %cst_137 {dimension_numbers = #tpu.dot_dimension_numbers<[1], [0], [0], [1], [0, 0, 1, 1], [], []>} : vector<32x128xf32>, vector<128x1xf32>, vector<32x1xf32> -> vector<32x1xf32>
    %cst_138 = arith.constant 7.812500e-03 : f32
    %304 = vector.broadcast %cst_138 : f32 to vector<32x1xf32>
    %305 = arith.mulf %303, %304 : vector<32x1xf32>
    %cst_139 = arith.constant 9.99999974E-6 : f32
    %306 = vector.broadcast %cst_139 : f32 to vector<32x1xf32>
    %307 = arith.addf %305, %306 : vector<32x1xf32>
    %308 = math.rsqrt %307 : vector<32x1xf32>
    %309 = vector.broadcast %308 : vector<32x1xf32> to vector<32x128xf32>
    %310 = arith.mulf %301, %309 : vector<32x128xf32>
    %311 = vector.broadcast %256 : vector<1x128xf32> to vector<32x128xf32>
    %312 = arith.mulf %310, %311 : vector<32x128xf32>
    %313 = vector.broadcast %258 : vector<1x128xf32> to vector<32x128xf32>
    %314 = arith.addf %312, %313 : vector<32x128xf32>
    %315 = arith.mulf %314, %314 : vector<32x128xf32>
    %316 = arith.mulf %314, %315 : vector<32x128xf32>
    %cst_140 = arith.constant 4.471500e-02 : f32
    %317 = vector.broadcast %cst_140 : f32 to vector<32x128xf32>
    %318 = arith.mulf %317, %316 : vector<32x128xf32>
    %319 = arith.addf %314, %318 : vector<32x128xf32>
    %cst_141 = arith.constant 0.797884583 : f32
    %320 = vector.broadcast %cst_141 : f32 to vector<32x128xf32>
    %321 = arith.mulf %320, %319 : vector<32x128xf32>
    %322 = math.tanh %321 : vector<32x128xf32>
    %cst_142 = arith.constant 1.000000e+00 : f32
    %323 = vector.broadcast %cst_142 : f32 to vector<32x128xf32>
    %324 = arith.addf %323, %322 : vector<32x128xf32>
    %cst_143 = arith.constant 5.000000e-01 : f32
    %325 = vector.broadcast %cst_143 : f32 to vector<32x128xf32>
    %326 = arith.mulf %325, %324 : vector<32x128xf32>
    %327 = arith.mulf %314, %326 : vector<32x128xf32>
    %328 = arith.truncf %327 : vector<32x128xf32> to vector<32x128xbf16>
    %cst_144 = arith.constant dense<0.000000e+00> : vector<32x128xf32>
    %329 = tpu.matmul %328, %252, %cst_144 {dimension_numbers = #tpu.dot_dimension_numbers<[1], [0], [0], [1], [0, 0, 1, 1], [], []>} : vector<32x128xbf16>, vector<128x128xbf16>, vector<32x128xf32> -> vector<32x128xf32>
    %330 = vector.broadcast %254 : vector<1x128xf32> to vector<32x128xf32>
    %331 = arith.addf %329, %330 : vector<32x128xf32>
    %cst_145 = arith.constant dense<0.000000e+00> : vector<32x1xf32>
    %332 = tpu.matmul %331, %10, %cst_145 {dimension_numbers = #tpu.dot_dimension_numbers<[1], [0], [0], [1], [0, 0, 1, 1], [], []>} : vector<32x128xf32>, vector<128x1xf32>, vector<32x1xf32> -> vector<32x1xf32>
    %cst_146 = arith.constant 7.812500e-03 : f32
    %333 = vector.broadcast %cst_146 : f32 to vector<32x1xf32>
    %334 = arith.mulf %332, %333 : vector<32x1xf32>
    %335 = vector.broadcast %334 : vector<32x1xf32> to vector<32x128xf32>
    %336 = arith.subf %331, %335 : vector<32x128xf32>
    %337 = arith.mulf %336, %336 : vector<32x128xf32>
    %cst_147 = arith.constant dense<0.000000e+00> : vector<32x1xf32>
    %338 = tpu.matmul %337, %10, %cst_147 {dimension_numbers = #tpu.dot_dimension_numbers<[1], [0], [0], [1], [0, 0, 1, 1], [], []>} : vector<32x128xf32>, vector<128x1xf32>, vector<32x1xf32> -> vector<32x1xf32>
    %cst_148 = arith.constant 7.812500e-03 : f32
    %339 = vector.broadcast %cst_148 : f32 to vector<32x1xf32>
    %340 = arith.mulf %338, %339 : vector<32x1xf32>
    %cst_149 = arith.constant 9.99999974E-6 : f32
    %341 = vector.broadcast %cst_149 : f32 to vector<32x1xf32>
    %342 = arith.addf %340, %341 : vector<32x1xf32>
    %343 = math.rsqrt %342 : vector<32x1xf32>
    %344 = vector.broadcast %343 : vector<32x1xf32> to vector<32x128xf32>
    %345 = arith.mulf %336, %344 : vector<32x128xf32>
    %346 = vector.broadcast %260 : vector<1x128xf32> to vector<32x128xf32>
    %347 = arith.mulf %345, %346 : vector<32x128xf32>
    %348 = vector.broadcast %262 : vector<1x128xf32> to vector<32x128xf32>
    %349 = arith.addf %347, %348 : vector<32x128xf32>
    %350 = arith.mulf %349, %349 : vector<32x128xf32>
    %351 = arith.mulf %349, %350 : vector<32x128xf32>
    %cst_150 = arith.constant 4.471500e-02 : f32
    %352 = vector.broadcast %cst_150 : f32 to vector<32x128xf32>
    %353 = arith.mulf %352, %351 : vector<32x128xf32>
    %354 = arith.addf %349, %353 : vector<32x128xf32>
    %cst_151 = arith.constant 0.797884583 : f32
    %355 = vector.broadcast %cst_151 : f32 to vector<32x128xf32>
    %356 = arith.mulf %355, %354 : vector<32x128xf32>
    %357 = math.tanh %356 : vector<32x128xf32>
    %cst_152 = arith.constant 1.000000e+00 : f32
    %358 = vector.broadcast %cst_152 : f32 to vector<32x128xf32>
    %359 = arith.addf %358, %357 : vector<32x128xf32>
    %cst_153 = arith.constant 5.000000e-01 : f32
    %360 = vector.broadcast %cst_153 : f32 to vector<32x128xf32>
    %361 = arith.mulf %360, %359 : vector<32x128xf32>
    %362 = arith.mulf %349, %361 : vector<32x128xf32>
    %363 = arith.addf %246, %362 : vector<32x128xf32>
    %364 = vector.broadcast %12 : vector<32x1xf32> to vector<32x128xf32>
    %365 = arith.mulf %363, %364 : vector<32x128xf32>
    %c0_154 = arith.constant 0 : index
    %c0_155 = arith.constant 0 : index
    %366 = vector.load %arg11[%c0_154, %c0_155] : memref<32x128xf32, #tpu.memory_space<vmem>>, vector<32x128xf32>
    tpu.vector_store %arg11[%c0_154, %c0_155], %365 {strides = array<i32>} : memref<32x128xf32, #tpu.memory_space<vmem>>, vector<32x128xf32>,
    return
  }
  func.func @transform_0(%arg0: i32) -> (i32, i32) {
    %c0_i32 = arith.constant 0 : i32
    %c0_i32_0 = arith.constant 0 : i32
    return %arg0, %c0_i32 : i32, i32
  }
  func.func @transform_1(%arg0: i32) -> (i32, i32) {
    %c0_i32 = arith.constant 0 : i32
    %c0_i32_0 = arith.constant 0 : i32
    return %arg0, %c0_i32 : i32, i32
  }
  func.func @transform_2(%arg0: i32) -> (i32, i32, i32, i32) {
    %c0_i32 = arith.constant 0 : i32
    %c0_i32_0 = arith.constant 0 : i32
    %c0_i32_1 = arith.constant 0 : i32
    %c0_i32_2 = arith.constant 0 : i32
    %c0_i32_3 = arith.constant 0 : i32
    return %c0_i32, %c0_i32_0, %c0_i32_1, %c0_i32_2 : i32, i32, i32, i32
  }
  func.func @transform_3(%arg0: i32) -> (i32, i32, i32) {
    %c0_i32 = arith.constant 0 : i32
    %c0_i32_0 = arith.constant 0 : i32
    %c0_i32_1 = arith.constant 0 : i32
    %c0_i32_2 = arith.constant 0 : i32
    return %c0_i32, %c0_i32_0, %c0_i32_1 : i32, i32, i32
  }
  func.func @transform_4(%arg0: i32) -> (i32, i32, i32) {
    %c0_i32 = arith.constant 0 : i32
    %c0_i32_0 = arith.constant 0 : i32
    %c0_i32_1 = arith.constant 0 : i32
    %c0_i32_2 = arith.constant 0 : i32
    return %c0_i32, %c0_i32_0, %c0_i32_1 : i32, i32, i32
  }
  func.func @transform_5(%arg0: i32) -> (i32, i32, i32) {
    %c0_i32 = arith.constant 0 : i32
    %c0_i32_0 = arith.constant 0 : i32
    %c0_i32_1 = arith.constant 0 : i32
    %c0_i32_2 = arith.constant 0 : i32
    return %c0_i32, %c0_i32_0, %c0_i32_1 : i32, i32, i32
  }
  func.func @transform_6(%arg0: i32) -> (i32, i32, i32) {
    %c0_i32 = arith.constant 0 : i32
    %c0_i32_0 = arith.constant 0 : i32
    %c0_i32_1 = arith.constant 0 : i32
    %c0_i32_2 = arith.constant 0 : i32
    return %c0_i32, %c0_i32_0, %c0_i32_1 : i32, i32, i32
  }
  func.func @transform_7(%arg0: i32) -> (i32, i32, i32) {
    %c0_i32 = arith.constant 0 : i32
    %c0_i32_0 = arith.constant 0 : i32
    %c0_i32_1 = arith.constant 0 : i32
    %c0_i32_2 = arith.constant 0 : i32
    return %c0_i32, %c0_i32_0, %c0_i32_1 : i32, i32, i32
  }
  func.func @transform_8(%arg0: i32) -> (i32, i32, i32) {
    %c0_i32 = arith.constant 0 : i32
    %c0_i32_0 = arith.constant 0 : i32
    %c0_i32_1 = arith.constant 0 : i32
    %c0_i32_2 = arith.constant 0 : i32
    return %c0_i32, %c0_i32_0, %c0_i32_1 : i32, i32, i32
  }
  func.func @transform_9(%arg0: i32) -> (i32, i32, i32) {
    %c0_i32 = arith.constant 0 : i32
    %c0_i32_0 = arith.constant 0 : i32
    %c0_i32_1 = arith.constant 0 : i32
    %c0_i32_2 = arith.constant 0 : i32
    return %c0_i32, %c0_i32_0, %c0_i32_1 : i32, i32, i32
  }
  func.func @transform_10(%arg0: i32) -> (i32, i32) {
    %c0_i32 = arith.constant 0 : i32
    %c0_i32_0 = arith.constant 0 : i32
    return %arg0, %c0_i32 : i32, i32
  }
}

</mosaic_0001>

<llo_original>
// kernel: tpu_custom_call.1
$region0: #{tpu_custom_call.1}
  #allocation0 [shape = 'u32[]', space=smem, size = 0x4, offset = 0x4, fixed_abs, tag = 'smem constant byte address 0x4 - core index']
  #allocation1 [shape = 'u32[144,128]{1,0:T(1,128)}', space=vmem, size = 0x12000, scoped, tag = 'internal scratch']
  %s0 = inlined_call_operand.vmem [shape: f32[64,128], index: 0, kind: input, shape index: {}]
  %s1 = inlined_call_operand.vmem [shape: f32[64,1], index: 1, kind: input, shape index: {}]
  %s2 = inlined_call_operand.hbm [shape: f32[3,3,1,128], index: 2, kind: input, shape index: {}]
  %s3 = inlined_call_operand.vmem [shape: f32[3,1,128], index: 3, kind: input, shape index: {}]
  %s4 = inlined_call_operand.hbm [shape: bf16[3,128,128], index: 4, kind: input, shape index: {}]
  %s5 = inlined_call_operand.vmem [shape: f32[3,1,128], index: 5, kind: input, shape index: {}]
  %s6 = inlined_call_operand.vmem [shape: f32[3,1,128], index: 6, kind: input, shape index: {}]
  %s7 = inlined_call_operand.vmem [shape: f32[3,1,128], index: 7, kind: input, shape index: {}]
  %s8 = inlined_call_operand.vmem [shape: f32[3,1,128], index: 8, kind: input, shape index: {}]
  %s9 = inlined_call_operand.hbm [shape: f32[3,1,128], index: 9, kind: input, shape index: {}]
  %s10 = inlined_call_operand.hbm [shape: f32[64,128], index: 10, kind: output, shape index: {}]
  %s11 = sld [smem:[#allocation0]]
  $region85: #{tpu_custom_call.1} parent=0
    _
  %s13 = ssub.s32 1, %s11
  %s14 = scalar_select 0, %s13, %s11
  $region1: #{tpu_custom_call.1} parent=0
    #allocation2 [shape = 'u8[4608]{0}', space=vmem, size = 0x1400, scoped, tag = 'input window, operand 2, single buffered']
    #allocation3 [shape = 's32[2]{0}', space=sflag, size = 0x8, scoped, tag = 'scoped memory for tpu_custom_call.1']
    #allocation4 [shape = 's32[2]{0}', space=sflag, size = 0x8, scoped, tag = 'scoped memory for tpu_custom_call.1']
    #allocation5 [shape = 'u8[98304]{0}', space=vmem, size = 0x18000, scoped, tag = 'input window, operand 4, single buffered']
    #allocation6 [shape = 's32[1]{0}', space=sflag, size = 0x4, scoped, tag = 'scoped memory for tpu_custom_call.1']
    #allocation7 [shape = 'u8[1536]{0}', space=vmem, size = 0x800, scoped, tag = 'input window, operand 9, single buffered']
    #allocation8 [shape = 'u8[32768]{0}', space=vmem, size = 0x8000, scoped, tag = 'output window, operand 0']
    %15 = vsyncpa [#allocation3], 0
    %16 = vsyncpa [#allocation6], 0
    %17 = vsyncpa [#allocation4], 0
    %s18 = scalar_lea.sflag [#allocation4], 1
    %19 = vsyncpa %s18, 0
    loop: start=0, step=1, limit=4
    $region2: #{tpu_custom_call.1} parent=1 // loop_pre_header
      _
    $region3: #{tpu_custom_call.1} parent=1 // loop_header
      %s21 = sphi 0, %s25
      %p22 = scmp.ge.s32.totalorder %s21, 4
      %s31 = sphi 0, %s33
      %s34 = sphi 0, %s31
      %s35 = sphi 0, %s34
      %s51 = sphi 0, %s35
      %s57 = sphi 0, %s59
      %s60 = sphi 0, %s57
      %s61 = sphi 0, %s60
      %s77 = sphi 0, %s61
      %s81 = sphi 0, %s81
      %s83 = sphi 0, %s81
      %s84 = sphi 0, %s83
      %s98 = sphi 0, %s84
      %s102 = sphi 0, %s102
      %s104 = sphi 0, %s102
      %s105 = sphi 0, %s104
      %s119 = sphi 0, %s105
      %s123 = sphi 0, %s123
      %s125 = sphi 0, %s123
      %s126 = sphi 0, %s125
      %s140 = sphi 0, %s126
      %s144 = sphi 0, %s144
      %s146 = sphi 0, %s144
      %s147 = sphi 0, %s146
      %s161 = sphi 0, %s147
      %s165 = sphi 0, %s165
      %s167 = sphi 0, %s165
      %s168 = sphi 0, %s167
      %s182 = sphi 0, %s168
      %s186 = sphi 0, %s186
      %s188 = sphi 0, %s186
      %s189 = sphi 0, %s188
      %s203 = sphi 0, %s189
      %s207 = sphi 0, %s207
      %s209 = sphi 0, %s207
      %s210 = sphi 0, %s209
      %s224 = sphi 0, %s210
      %s228 = sphi 0, %s228
      %s230 = sphi 0, %s228
      %s231 = sphi 0, %s230
      %s245 = sphi 0, %s231
      %s251 = sphi 0, %s253
      %s254 = sphi 0, %s251
      %s255 = sphi 0, %s254
      %s271 = sphi 0, %s255
    $region4: #{tpu_custom_call.1} parent=1 // loop_header_branch
      %24 = sbr.rel (%p22) target = $region8
    $region5: #{tpu_custom_call.1} parent=1 // loop_body
      %s26 = ssub.s32 %s21, 1
      %s27 = ssub.s32 %s21, 2
      %s28 = sadd.s32 %s21, 1
      %s29 = ssub.s32 %s21, %s28
      %p30 = scmp.eq.s32.totalorder %s29, 0
      %s32 = sadd.s32 %s31, 1
      %s33 = scalar_select %p30, %s31, %s32
      %p36 = pneg %p30
      %p37 = scmp.eq.s32.totalorder %s21, 1
      %p38 = por %p36, %p37
      %p39 = scmp.ne.s32.totalorder %s31, %s34
      %p40 = scmp.eq.s32.totalorder %s21, 0
      %p41 = por %p39, %p40
      %p42 = scmp.ne.s32.totalorder %s31, %s34
      %p43 = scmp.eq.s32.totalorder %s26, 1
      %p44 = por %p42, %p43
      %p45 = scmp.ne.s32.totalorder %s34, %s35
      %p46 = scmp.eq.s32.totalorder %s26, 0
      %p47 = por %p45, %p46
      %p48 = scmp.ne.s32.totalorder %s34, %s35
      %p49 = scmp.eq.s32.totalorder %s27, 1
      %p50 = por %p48, %p49
      %p52 = scmp.ne.s32.totalorder %s35, %s51
      %p53 = scmp.eq.s32.totalorder %s27, 0
      %p54 = por %p52, %p53
      %s55 = ssub.s32 %s21, %s28
      %p56 = scmp.eq.s32.totalorder %s55, 0
      %s58 = sadd.s32 %s57, 1
      %s59 = scalar_select %p56, %s57, %s58
      %p62 = pneg %p56
      %p63 = scmp.eq.s32.totalorder %s21, 1
      %p64 = por %p62, %p63
      %p65 = scmp.ne.s32.totalorder %s57, %s60
      %p66 = scmp.eq.s32.totalorder %s21, 0
      %p67 = por %p65, %p66
      %p68 = scmp.ne.s32.totalorder %s57, %s60
      %p69 = scmp.eq.s32.totalorder %s26, 1
      %p70 = por %p68, %p69
      %p71 = scmp.ne.s32.totalorder %s60, %s61
      %p72 = scmp.eq.s32.totalorder %s26, 0
      %p73 = por %p71, %p72
      %p74 = scmp.ne.s32.totalorder %s60, %s61
      %p75 = scmp.eq.s32.totalorder %s27, 1
      %p76 = por %p74, %p75
      %p78 = scmp.ne.s32.totalorder %s61, %s77
      %p79 = scmp.eq.s32.totalorder %s27, 0
      %p80 = por %p78, %p79
      %s82 = sadd.s32 %s81, 1
      %p85 = scmp.eq.s32.totalorder %s21, 1
      %p86 = scmp.ne.s32.totalorder %s81, %s83
      %p87 = scmp.eq.s32.totalorder %s21, 0
      %p88 = por %p86, %p87
      %p89 = scmp.ne.s32.totalorder %s81, %s83
      %p90 = scmp.eq.s32.totalorder %s26, 1
      %p91 = por %p89, %p90
      %p92 = scmp.ne.s32.totalorder %s83, %s84
      %p93 = scmp.eq.s32.totalorder %s26, 0
      %p94 = por %p92, %p93
      %p95 = scmp.ne.s32.totalorder %s83, %s84
      %p96 = scmp.eq.s32.totalorder %s27, 1
      %p97 = por %p95, %p96
      %p99 = scmp.ne.s32.totalorder %s84, %s98
      %p100 = scmp.eq.s32.totalorder %s27, 0
      %p101 = por %p99, %p100
      %s103 = sadd.s32 %s102, 1
      %p106 = scmp.eq.s32.totalorder %s21, 1
      %p107 = scmp.ne.s32.totalorder %s102, %s104
      %p108 = scmp.eq.s32.totalorder %s21, 0
      %p109 = por %p107, %p108
      %p110 = scmp.ne.s32.totalorder %s102, %s104
      %p111 = scmp.eq.s32.totalorder %s26, 1
      %p112 = por %p110, %p111
      %p113 = scmp.ne.s32.totalorder %s104, %s105
      %p114 = scmp.eq.s32.totalorder %s26, 0
      %p115 = por %p113, %p114
      %p116 = scmp.ne.s32.totalorder %s104, %s105
      %p117 = scmp.eq.s32.totalorder %s27, 1
      %p118 = por %p116, %p117
      %p120 = scmp.ne.s32.totalorder %s105, %s119
      %p121 = scmp.eq.s32.totalorder %s27, 0
      %p122 = por %p120, %p121
      %s124 = sadd.s32 %s123, 1
      %p127 = scmp.eq.s32.totalorder %s21, 1
      %p128 = scmp.ne.s32.totalorder %s123, %s125
      %p129 = scmp.eq.s32.totalorder %s21, 0
      %p130 = por %p128, %p129
      %p131 = scmp.ne.s32.totalorder %s123, %s125
      %p132 = scmp.eq.s32.totalorder %s26, 1
      %p133 = por %p131, %p132
      %p134 = scmp.ne.s32.totalorder %s125, %s126
      %p135 = scmp.eq.s32.totalorder %s26, 0
      %p136 = por %p134, %p135
      %p137 = scmp.ne.s32.totalorder %s125, %s126
      %p138 = scmp.eq.s32.totalorder %s27, 1
      %p139 = por %p137, %p138
      %p141 = scmp.ne.s32.totalorder %s126, %s140
      %p142 = scmp.eq.s32.totalorder %s27, 0
      %p143 = por %p141, %p142
      %s145 = sadd.s32 %s144, 1
      %p148 = scmp.eq.s32.totalorder %s21, 1
      %p149 = scmp.ne.s32.totalorder %s144, %s146
      %p150 = scmp.eq.s32.totalorder %s21, 0
      %p151 = por %p149, %p150
      %p152 = scmp.ne.s32.totalorder %s144, %s146
      %p153 = scmp.eq.s32.totalorder %s26, 1
      %p154 = por %p152, %p153
      %p155 = scmp.ne.s32.totalorder %s146, %s147
      %p156 = scmp.eq.s32.totalorder %s26, 0
      %p157 = por %p155, %p156
      %p158 = scmp.ne.s32.totalorder %s146, %s147
      %p159 = scmp.eq.s32.totalorder %s27, 1
      %p160 = por %p158, %p159
      %p162 = scmp.ne.s32.totalorder %s147, %s161
      %p163 = scmp.eq.s32.totalorder %s27, 0
      %p164 = por %p162, %p163
      %s166 = sadd.s32 %s165, 1
      %p169 = scmp.eq.s32.totalorder %s21, 1
      %p170 = scmp.ne.s32.totalorder %s165, %s167
      %p171 = scmp.eq.s32.totalorder %s21, 0
      %p172 = por %p170, %p171
      %p173 = scmp.ne.s32.totalorder %s165, %s167
      %p174 = scmp.eq.s32.totalorder %s26, 1
      %p175 = por %p173, %p174
      %p176 = scmp.ne.s32.totalorder %s167, %s168
      %p177 = scmp.eq.s32.totalorder %s26, 0
      %p178 = por %p176, %p177
      %p179 = scmp.ne.s32.totalorder %s167, %s168
      %p180 = scmp.eq.s32.totalorder %s27, 1
      %p181 = por %p179, %p180
      %p183 = scmp.ne.s32.totalorder %s168, %s182
      %p184 = scmp.eq.s32.totalorder %s27, 0
      %p185 = por %p183, %p184
      %s187 = sadd.s32 %s186, 1
      %p190 = scmp.eq.s32.totalorder %s21, 1
      %p191 = scmp.ne.s32.totalorder %s186, %s188
      %p192 = scmp.eq.s32.totalorder %s21, 0
      %p193 = por %p191, %p192
      %p194 = scmp.ne.s32.totalorder %s186, %s188
      %p195 = scmp.eq.s32.totalorder %s26, 1
      %p196 = por %p194, %p195
      %p197 = scmp.ne.s32.totalorder %s188, %s189
      %p198 = scmp.eq.s32.totalorder %s26, 0
      %p199 = por %p197, %p198
      %p200 = scmp.ne.s32.totalorder %s188, %s189
      %p201 = scmp.eq.s32.totalorder %s27, 1
      %p202 = por %p200, %p201
      %p204 = scmp.ne.s32.totalorder %s189, %s203
      %p205 = scmp.eq.s32.totalorder %s27, 0
      %p206 = por %p204, %p205
      %s208 = sadd.s32 %s207, 1
      %p211 = scmp.eq.s32.totalorder %s21, 1
      %p212 = scmp.ne.s32.totalorder %s207, %s209
      %p213 = scmp.eq.s32.totalorder %s21, 0
      %p214 = por %p212, %p213
      %p215 = scmp.ne.s32.totalorder %s207, %s209
      %p216 = scmp.eq.s32.totalorder %s26, 1
      %p217 = por %p215, %p216
      %p218 = scmp.ne.s32.totalorder %s209, %s210
      %p219 = scmp.eq.s32.totalorder %s26, 0
      %p220 = por %p218, %p219
      %p221 = scmp.ne.s32.totalorder %s209, %s210
      %p222 = scmp.eq.s32.totalorder %s27, 1
      %p223 = por %p221, %p222
      %p225 = scmp.ne.s32.totalorder %s210, %s224
      %p226 = scmp.eq.s32.totalorder %s27, 0
      %p227 = por %p225, %p226
      %s229 = sadd.s32 %s228, 1
      %p232 = scmp.eq.s32.totalorder %s21, 1
      %p233 = scmp.ne.s32.totalorder %s228, %s230
      %p234 = scmp.eq.s32.totalorder %s21, 0
      %p235 = por %p233, %p234
      %p236 = scmp.ne.s32.totalorder %s228, %s230
      %p237 = scmp.eq.s32.totalorder %s26, 1
      %p238 = por %p236, %p237
      %p239 = scmp.ne.s32.totalorder %s230, %s231
      %p240 = scmp.eq.s32.totalorder %s26, 0
      %p241 = por %p239, %p240
      %p242 = scmp.ne.s32.totalorder %s230, %s231
      %p243 = scmp.eq.s32.totalorder %s27, 1
      %p244 = por %p242, %p243
      %p246 = scmp.ne.s32.totalorder %s231, %s245
      %p247 = scmp.eq.s32.totalorder %s27, 0
      %p248 = por %p246, %p247
      %s249 = ssub.s32 %s21, %s28
      %p250 = scmp.eq.s32.totalorder %s249, 0
      %s252 = sadd.s32 %s251, 1
      %s253 = scalar_select %p250, %s251, %s252
      %p256 = pneg %p250
      %p257 = scmp.eq.s32.totalorder %s21, 1
      %p258 = por %p256, %p257
      %p259 = scmp.ne.s32.totalorder %s251, %s254
      %p260 = scmp.eq.s32.totalorder %s21, 0
      %p261 = por %p259, %p260
      %p262 = scmp.ne.s32.totalorder %s251, %s254
      %p263 = scmp.eq.s32.totalorder %s26, 1
      %p264 = por %p262, %p263
      %p265 = scmp.ne.s32.totalorder %s254, %s255
      %p266 = scmp.eq.s32.totalorder %s26, 0
      %p267 = por %p265, %p266
      %p268 = scmp.ne.s32.totalorder %s254, %s255
      %p269 = scmp.eq.s32.totalorder %s27, 1
      %p270 = por %p268, %p269
      %p272 = scmp.ne.s32.totalorder %s255, %s271
      %p273 = scmp.eq.s32.totalorder %s27, 0
      %p274 = por %p272, %p273
      %p275 = scmp.le.s32.totalorder 1, %s21
      %p276 = scmp.lt.s32.totalorder %s21, 3
      %p277 = pnand %p275, %p276
      %p278 = pneg %p277
      // Predicated region
      $region9: #{tpu_custom_call.1} parent=5 // pred_check
        _
      $region10: #{tpu_custom_call.1} parent=5 // pred_check_branch
        %280 = sbr.rel (%p277) target = $region12
      $region11: #{tpu_custom_call.1} parent=5 // pred_region
        %s281 = ssub.s32 %s21, 1
        // Predicated region
        $region13: #{tpu_custom_call.1} parent=11 // pred_check
          %p282 = pneg %p94
        $region14: #{tpu_custom_call.1} parent=11 // pred_check_branch
          %284 = sbr.rel (%p282) target = $region16
        $region15: #{tpu_custom_call.1} parent=11 // pred_region
          %s286 = ssub.s32 144, 144
          %287 = vsyncadd [#allocation3], %s286
          %s288 = sshll.u32 [#allocation2], 4
          %s289 = int_to_ptr.vmem [resolvable:$true] %s288
          %294 = dma.hbm_to_vmem [thread:$0]  %s2, 144, %s289, [#allocation3], 16, 16, 1
        $region16: #{tpu_custom_call.1} parent=11 // pred_fallthru
          _
        // Predicated region
        $region17: #{tpu_custom_call.1} parent=11 // pred_check
          %p295 = pneg %p115
        $region18: #{tpu_custom_call.1} parent=11 // pred_check_branch
          %297 = sbr.rel (%p295) target = $region20
        $region19: #{tpu_custom_call.1} parent=11 // pred_region
          _
        $region20: #{tpu_custom_call.1} parent=11 // pred_fallthru
          _
        // Predicated region
        $region21: #{tpu_custom_call.1} parent=11 // pred_check
          %p298 = pneg %p136
        $region22: #{tpu_custom_call.1} parent=11 // pred_check_branch
          %300 = sbr.rel (%p298) target = $region24
        $region23: #{tpu_custom_call.1} parent=11 // pred_region
          %s302 = ssub.s32 3072, 3072
          %303 = vsyncadd [#allocation6], %s302
          %s304 = sshll.u32 [#allocation5], 4
          %s305 = int_to_ptr.vmem [resolvable:$true] %s304
          %310 = dma.hbm_to_vmem [thread:$0]  %s4, 3072, %s305, [#allocation6], 64, 64, 4
        $region24: #{tpu_custom_call.1} parent=11 // pred_fallthru
          _
        // Predicated region
        $region25: #{tpu_custom_call.1} parent=11 // pred_check
          %p311 = pneg %p157
        $region26: #{tpu_custom_call.1} parent=11 // pred_check_branch
          %313 = sbr.rel (%p311) target = $region28
        $region27: #{tpu_custom_call.1} parent=11 // pred_region
          _
        $region28: #{tpu_custom_call.1} parent=11 // pred_fallthru
          _
        // Predicated region
        $region29: #{tpu_custom_call.1} parent=11 // pred_check
          %p314 = pneg %p178
        $region30: #{tpu_custom_call.1} parent=11 // pred_check_branch
          %316 = sbr.rel (%p314) target = $region32
        $region31: #{tpu_custom_call.1} parent=11 // pred_region
          _
        $region32: #{tpu_custom_call.1} parent=11 // pred_fallthru
          _
        // Predicated region
        $region33: #{tpu_custom_call.1} parent=11 // pred_check
          %p317 = pneg %p199
        $region34: #{tpu_custom_call.1} parent=11 // pred_check_branch
          %319 = sbr.rel (%p317) target = $region36
        $region35: #{tpu_custom_call.1} parent=11 // pred_region
          _
        $region36: #{tpu_custom_call.1} parent=11 // pred_fallthru
          _
        // Predicated region
        $region37: #{tpu_custom_call.1} parent=11 // pred_check
          %p320 = pneg %p220
        $region38: #{tpu_custom_call.1} parent=11 // pred_check_branch
          %322 = sbr.rel (%p320) target = $region40
        $region39: #{tpu_custom_call.1} parent=11 // pred_region
          _
        $region40: #{tpu_custom_call.1} parent=11 // pred_fallthru
          _
        // Predicated region
        $region41: #{tpu_custom_call.1} parent=11 // pred_check
          %p323 = pneg %p241
        $region42: #{tpu_custom_call.1} parent=11 // pred_check_branch
          %325 = sbr.rel (%p323) target = $region44
        $region43: #{tpu_custom_call.1} parent=11 // pred_region
          %s327 = ssub.s32 48, 48
          %328 = vsyncadd [#allocation6], %s327
          %s329 = sshll.u32 [#allocation7], 4
          %s330 = int_to_ptr.vmem [resolvable:$true] %s329
          %335 = dma.hbm_to_vmem [thread:$0]  %s9, 48, %s330, [#allocation6], 16, 16, 1
        $region44: #{tpu_custom_call.1} parent=11 // pred_fallthru
          _
      $region12: #{tpu_custom_call.1} parent=5 // pred_fallthru
        _
      %p336 = scmp.lt.s32.totalorder %s21, 2
      // Predicated region
      $region45: #{tpu_custom_call.1} parent=5 // pred_check
        %p337 = pneg %p336
      $region46: #{tpu_custom_call.1} parent=5 // pred_check_branch
        %339 = sbr.rel (%p337) target = $region48
      $region47: #{tpu_custom_call.1} parent=5 // pred_region
        // Predicated region
        $region49: #{tpu_custom_call.1} parent=47 // pred_check
          %p340 = pneg %p41
        $region50: #{tpu_custom_call.1} parent=47 // pred_check_branch
          %342 = sbr.rel (%p340) target = $region52
        $region51: #{tpu_custom_call.1} parent=47 // pred_region
          %s343 = smul.u32 4, %s21
          %p344 = scmp.lt.s32.totalorder %s343, 7
          %s345 = scalar_select %p344, %s343, 7
          %s346 = smul.addr %s345, 8
          %s347 = scalar_lea.vmem %s0, %s346
          %s348 = smul.u32 4, %s21
        $region52: #{tpu_custom_call.1} parent=47 // pred_fallthru
          _
        // Predicated region
        $region53: #{tpu_custom_call.1} parent=47 // pred_check
          %p349 = pneg %p67
        $region54: #{tpu_custom_call.1} parent=47 // pred_check_branch
          %351 = sbr.rel (%p349) target = $region56
        $region55: #{tpu_custom_call.1} parent=47 // pred_region
          %s352 = smul.u32 4, %s21
          %p353 = scmp.lt.s32.totalorder %s352, 7
          %s354 = scalar_select %p353, %s352, 7
          %s355 = smul.addr %s354, 8
          %s356 = scalar_lea.vmem %s1, %s355
          %s357 = smul.u32 4, %s21
        $region56: #{tpu_custom_call.1} parent=47 // pred_fallthru
          _
      $region48: #{tpu_custom_call.1} parent=5 // pred_fallthru
        _
      %p358 = scmp.le.s32.totalorder 1, %s21
      %p359 = scmp.lt.s32.totalorder %s21, 3
      %p360 = pnand %p358, %p359
      %p361 = pneg %p360
      // Predicated region
      $region57: #{tpu_custom_call.1} parent=5 // pred_check
        _
      $region58: #{tpu_custom_call.1} parent=5 // pred_check_branch
        %363 = sbr.rel (%p360) target = $region60
      $region59: #{tpu_custom_call.1} parent=5 // pred_region
        %s364 = ssub.s32 %s21, 1
        // Predicated region
        $region61: #{tpu_custom_call.1} parent=59 // pred_check
          %p365 = pneg %p94
        $region62: #{tpu_custom_call.1} parent=59 // pred_check_branch
          %367 = sbr.rel (%p365) target = $region64
        $region63: #{tpu_custom_call.1} parent=59 // pred_region
          %368 = dma.done [#allocation3], 144
        $region64: #{tpu_custom_call.1} parent=59 // pred_fallthru
          _
        // Predicated region
        $region65: #{tpu_custom_call.1} parent=59 // pred_check
          %p369 = pneg %p136
        $region66: #{tpu_custom_call.1} parent=59 // pred_check_branch
          %371 = sbr.rel (%p369) target = $region68
        $region67: #{tpu_custom_call.1} parent=59 // pred_region
          %372 = dma.done [#allocation6], 3072
        $region68: #{tpu_custom_call.1} parent=59 // pred_fallthru
          _
        // Predicated region
        $region69: #{tpu_custom_call.1} parent=59 // pred_check
          %p373 = pneg %p241
        $region70: #{tpu_custom_call.1} parent=59 // pred_check_branch
          %375 = sbr.rel (%p373) target = $region72
        $region71: #{tpu_custom_call.1} parent=59 // pred_region
          %376 = dma.done [#allocation6], 48
        $region72: #{tpu_custom_call.1} parent=59 // pred_fallthru
          _
        %s377 = smul.u32 4, %s26
        %p378 = scmp.lt.s32.totalorder %s377, 7
        %s379 = scalar_select %p378, %s377, 7
        %s380 = smul.addr %s379, 8
        %s381 = scalar_lea.vmem %s0, %s380
        %p382 = pneg %p47
        %p383 = pneg %p44
        %s384 = smul.u32 4, %s26
        %p385 = scmp.lt.s32.totalorder %s384, 7
        %s386 = scalar_select %p385, %s384, 7
        %s387 = smul.addr %s386, 8
        %s388 = scalar_lea.vmem %s1, %s387
        %p389 = pneg %p73
        %p390 = pneg %p70
        %p391 = pneg %p94
        %p392 = pneg %p91
        %p393 = pneg %p115
        %p394 = pneg %p112
        %p395 = pneg %p136
        %p396 = pneg %p133
        %p397 = pneg %p157
        %p398 = pneg %p154
        %p399 = pneg %p178
        %p400 = pneg %p175
        %p401 = pneg %p199
        %p402 = pneg %p196
        %p403 = pneg %p220
        %p404 = pneg %p217
        %p405 = pneg %p241
        %p406 = pneg %p238
        %p407 = pneg %p267
        %p408 = pneg %p264
        %s409 = sand.u32 %s254, 1
        %s410 = scalar_lea.sflag [#allocation4], %s409
        %s411 = sand.u32 %s254, 1
        %s412 = smul.addr %s411, 32
        %s413 = scalar_lea.vmem [#allocation8], %s412
        %s414 = smul.u32 4, %s26
        %p415 = scmp.lt.s32.totalorder %s414, 7
        %s416 = scalar_select %p415, %s414, 7
        %s417 = smul.addr %s416, 8
        %s418 = scalar_lea.vmem %s0, %s417
        %s419 = smul.u32 4, %s26
        %s420 = smul.u32 4, %s26
        %p421 = scmp.lt.s32.totalorder %s420, 7
        %s422 = scalar_select %p421, %s420, 7
        %s423 = smul.addr %s422, 8
        %s424 = scalar_lea.vmem %s1, %s423
        %s425 = smul.u32 4, %s26
        %s426 = smul.u32 4, %s26
        %v428 = vlaneseq
        %v429 = vshrl.u32 %v428, 7
        %v430 = vadd.s32 %v429, 8
        %v431 = vadd.s32 %v429, 16
        %v432 = vadd.s32 %v429, 24
        %v433 = vcvt.s32.f32 %v429
        %v434 = vcvt.s32.f32 %v430
        %v435 = vcvt.s32.f32 %v431
        %v436 = vcvt.s32.f32 %v432
        %v437 = vadd.f32 %v433, 0.5
        %v438 = vadd.f32 %v434, 0.5
        %v439 = vadd.f32 %v435, 0.5
        %v440 = vadd.f32 %v436, 0.5
        %v441 = vmul.f32 %v437, 0.03125
        %v442 = vmul.f32 %v438, 0.03125
        %v443 = vmul.f32 %v439, 0.03125
        %v444 = vmul.f32 %v440, 0.03125
        %v445 = vfloor.f32 %v441
        %v446 = vfloor.f32 %v442
        %v447 = vfloor.f32 %v443
        %v448 = vfloor.f32 %v444
        %v449 = vmul.f32 %v445, 32.0
        %v450 = vmul.f32 %v446, 32.0
        %v451 = vmul.f32 %v447, 32.0
        %v452 = vmul.f32 %v448, 32.0
        %v453 = vsub.f32 %v433, %v449
        %v454 = vsub.f32 %v434, %v450
        %v455 = vsub.f32 %v435, %v451
        %v456 = vsub.f32 %v436, %v452
        %v457 = vld [vmem:[%s418] sm:$0xff]
        %v458 = vld [vmem:[%s418 + $0x8] sm:$0xff]
        %v459 = vld [vmem:[%s418 + $0x10] sm:$0xff]
        %v460 = vld [vmem:[%s418 + $0x18] sm:$0xff]
        %v461 = vld [vmem:[%s424] sm:$0xff]
        %v462 = vld [vmem:[%s424 + $0x8] sm:$0xff]
        %v463 = vld [vmem:[%s424 + $0x10] sm:$0xff]
        %v464 = vld [vmem:[%s424 + $0x18] sm:$0xff]
        %v465 = vld [vmem:[#allocation2] sm:$0x1]
        %v466 = vld [vmem:[#allocation2 + $0x1] sm:$0x1]
        %v467 = vld [vmem:[#allocation2 + $0x2] sm:$0x1]
        %v468 = vld [vmem:[%s3] sm:$0x1]
        %v469 = vld [vmem:[#allocation5] sm:$0xf]
        %v470 = vld [vmem:[#allocation5 + $0x4] sm:$0xf]
        %v471 = vld [vmem:[#allocation5 + $0x8] sm:$0xf]
        %v472 = vld [vmem:[#allocation5 + $0xc] sm:$0xf]
        %v473 = vld [vmem:[#allocation5 + $0x10] sm:$0xf]
        %v474 = vld [vmem:[#allocation5 + $0x14] sm:$0xf]
        %v475 = vld [vmem:[#allocation5 + $0x18] sm:$0xf]
        %v476 = vld [vmem:[#allocation5 + $0x1c] sm:$0xf]
        %v477 = vld [vmem:[#allocation5 + $0x20] sm:$0xf]
        %v478 = vld [vmem:[#allocation5 + $0x24] sm:$0xf]
        %v479 = vld [vmem:[#allocation5 + $0x28] sm:$0xf]
        %v480 = vld [vmem:[#allocation5 + $0x2c] sm:$0xf]
        %v481 = vld [vmem:[#allocation5 + $0x30] sm:$0xf]
        %v482 = vld [vmem:[#allocation5 + $0x34] sm:$0xf]
        %v483 = vld [vmem:[#allocation5 + $0x38] sm:$0xf]
        %v484 = vld [vmem:[#allocation5 + $0x3c] sm:$0xf]
        %v485 = vld [vmem:[%s5] sm:$0x1]
        %v486 = vld [vmem:[%s6] sm:$0x1]
        %v487 = vld [vmem:[%s7] sm:$0x1]
        %v488 = vld [vmem:[%s8] sm:$0x1]
        %v489 = vld [vmem:[#allocation7] sm:$0x1]
        %491 = vset.pattern.permute.xlu0 0
        %492 = vperm.xlu0 %491, %v461
        %v493 = vpop.permute.xlu0 %492
        %496 = vset.pattern.permute.xlu0 0
        %497 = vperm.xlu0 %496, %v462
        %v498 = vpop.permute.xlu0 %497
        %501 = vset.pattern.permute.xlu0 0
        %502 = vperm.xlu0 %501, %v463
        %v503 = vpop.permute.xlu0 %502
        %506 = vset.pattern.permute.xlu0 0
        %507 = vperm.xlu0 %506, %v464
        %v508 = vpop.permute.xlu0 %507
        %v510 = vmul.f32 %v457, %v493
        %v511 = vmul.f32 %v458, %v498
        %v512 = vmul.f32 %v459, %v503
        %v513 = vmul.f32 %v460, %v508
        %v515 = vlaneseq
        %v516 = vshrl.u32 %v515, 7
        %v517 = vsub.s32 0, %v516
        %v518 = vrot.slane %v466, %v517
        %v520 = vmul.f32 %v510, %v518
        %v521 = vmul.f32 %v511, %v518
        %v522 = vmul.f32 %v512, %v518
        %v523 = vmul.f32 %v513, %v518
        %v525 = vlaneseq
        %v526 = vshrl.u32 %v525, 7
        %v527 = vsub.s32 0, %v526
        %v528 = vrot.slane %v468, %v527
        %v530 = vadd.f32 %v528, %v520
        %v531 = vadd.f32 %v528, %v521
        %v532 = vadd.f32 %v528, %v522
        %v533 = vadd.f32 %v528, %v523
        %v534 = vrot.slane %v510, 7
        %v535 = vrot.slane %v511, 7
        %v536 = vrot.slane %v512, 7
        %v537 = vrot.slane %v513, 7
        %vm538 = vcmp.lt.s32.totalorder %v429, 1
        %v539 = vsel %vm538, %v536, %v537
        %v540 = vsel %vm538, %v535, %v536
        %v541 = vsel %vm538, %v534, %v535
        %v542 = vsel %vm538, %v537, %v534
        %vm543 = vcmp.ge.f32.partialorder %v453, 1.0
        %vm544 = vcmp.ge.f32.partialorder %v454, 1.0
        %vm545 = vcmp.ge.f32.partialorder %v455, 1.0
        %vm546 = vcmp.ge.f32.partialorder %v456, 1.0
        %v547 = vsel %vm543, 1.0, 0.0
        %v548 = vsel %vm544, 1.0, 0.0
        %v549 = vsel %vm545, 1.0, 0.0
        %v550 = vsel %vm546, 1.0, 0.0
        %v551 = vmul.f32 %v542, %v547
        %v552 = vmul.f32 %v541, %v548
        %v553 = vmul.f32 %v540, %v549
        %v554 = vmul.f32 %v539, %v550
        %v556 = vlaneseq
        %v557 = vshrl.u32 %v556, 7
        %v558 = vsub.s32 0, %v557
        %v559 = vrot.slane %v465, %v558
        %v561 = vmul.f32 %v551, %v559
        %v562 = vmul.f32 %v552, %v559
        %v563 = vmul.f32 %v553, %v559
        %v564 = vmul.f32 %v554, %v559
        %v565 = vadd.f32 %v530, %v561
        %v566 = vadd.f32 %v531, %v562
        %v567 = vadd.f32 %v532, %v563
        %v568 = vadd.f32 %v533, %v564
        %v569 = vrot.slane %v510, 1
        %v570 = vrot.slane %v511, 1
        %v571 = vrot.slane %v512, 1
        %v572 = vrot.slane %v513, 1
        %vm573 = vcmp.lt.s32.totalorder %v429, 7
        %v574 = vsel %vm573, %v571, %v572
        %v575 = vsel %vm573, %v570, %v571
        %v576 = vsel %vm573, %v569, %v570
        %v577 = vsel %vm573, %v572, %v569
        %vm578 = vcmp.lt.f32.partialorder %v453, 31.0
        %vm579 = vcmp.lt.f32.partialorder %v454, 31.0
        %vm580 = vcmp.lt.f32.partialorder %v455, 31.0
        %vm581 = vcmp.lt.f32.partialorder %v456, 31.0
        %v582 = vsel %vm578, 1.0, 0.0
        %v583 = vsel %vm579, 1.0, 0.0
        %v584 = vsel %vm580, 1.0, 0.0
        %v585 = vsel %vm581, 1.0, 0.0
        %v586 = vmul.f32 %v576, %v582
        %v587 = vmul.f32 %v575, %v583
        %v588 = vmul.f32 %v574, %v584
        %v589 = vmul.f32 %v577, %v585
        %v591 = vlaneseq
        %v592 = vshrl.u32 %v591, 7
        %v593 = vsub.s32 0, %v592
        %v594 = vrot.slane %v467, %v593
        %v596 = vmul.f32 %v586, %v594
        %v597 = vmul.f32 %v587, %v594
        %v598 = vmul.f32 %v588, %v594
        %v599 = vmul.f32 %v589, %v594
        %v600 = vadd.f32 %v565, %v596
        %v601 = vadd.f32 %v566, %v597
        %v602 = vadd.f32 %v567, %v598
        %v603 = vadd.f32 %v568, %v599
        %604 = vmatprep.subr.mxu0 0.0
        %605 = vmatpush1.msra.mxu0 1.0
        %606 = vmatprep.subr.mxu0 0.0
        %607 = vmatpush1.msra.mxu0 1.0
        %608 = vmatprep.subr.mxu0 0.0
        %609 = vmatpush1.msra.mxu0 1.0
        %610 = vmatprep.subr.mxu0 0.0
        %611 = vmatpush1.msra.mxu0 1.0
        %612 = vmatprep.subr.mxu0 0.0
        %613 = vmatpush1.msra.mxu0 1.0
        %614 = vmatprep.subr.mxu0 0.0
        %615 = vmatpush1.msra.mxu0 1.0
        %616 = vmatprep.subr.mxu0 0.0
        %617 = vmatpush1.msra.mxu0 1.0
        %618 = vmatprep.subr.mxu0 0.0
        %619 = vmatpush1.msra.mxu0 1.0
        %620 = vmatprep.subr.mxu0 0.0
        %621 = vmatpush1.msra.mxu0 1.0
        %622 = vmatprep.subr.mxu0 0.0
        %623 = vmatpush1.msra.mxu0 1.0
        %624 = vmatprep.subr.mxu0 0.0
        %625 = vmatpush1.msra.mxu0 1.0
        %626 = vmatprep.subr.mxu0 0.0
        %627 = vmatpush1.msra.mxu0 1.0
        %628 = vmatprep.subr.mxu0 0.0
        %629 = vmatpush1.msra.mxu0 1.0
        %630 = vmatprep.subr.mxu0 0.0
        %631 = vmatpush1.msra.mxu0 1.0
        %632 = vmatprep.subr.mxu0 0.0
        %633 = vmatpush1.msra.mxu0 1.0
        %634 = vmatprep.subr.mxu0 0.0
        %635 = vmatpush1.msra.mxu0 1.0
        %636 = vmatprep.subr.mxu0 0.0
        %637 = vmatpush2.msra.mxu0 0.0
        %638 = vmatprep.subr.mxu0 0.0
        %639 = vmatpush2.msra.mxu0 0.0
        %640 = vmatprep.subr.mxu0 0.0
        %641 = vmatpush2.msra.mxu0 0.0
        %642 = vmatprep.subr.mxu0 0.0
        %643 = vmatpush2.msra.mxu0 0.0
        %644 = vmatprep.subr.mxu0 0.0
        %645 = vmatpush2.msra.mxu0 0.0
        %646 = vmatprep.subr.mxu0 0.0
        %647 = vmatpush2.msra.mxu0 0.0
        %648 = vmatprep.subr.mxu0 0.0
        %649 = vmatpush2.msra.mxu0 0.0
        %650 = vmatprep.subr.mxu0 0.0
        %651 = vmatpush2.msra.mxu0 0.0
        %652 = vmatprep.subr.mxu0 0.0
        %653 = vmatpush2.msra.mxu0 0.0
        %654 = vmatprep.subr.mxu0 0.0
        %655 = vmatpush2.msra.mxu0 0.0
        %656 = vmatprep.subr.mxu0 0.0
        %657 = vmatpush2.msra.mxu0 0.0
        %658 = vmatprep.subr.mxu0 0.0
        %659 = vmatpush2.msra.mxu0 0.0
        %660 = vmatprep.subr.mxu0 0.0
        %661 = vmatpush2.msra.mxu0 0.0
        %662 = vmatprep.subr.mxu0 0.0
        %663 = vmatpush2.msra.mxu0 0.0
        %664 = vmatprep.subr.mxu0 0.0
        %665 = vmatpush2.msra.mxu0 0.0
        %666 = vmatprep.subr.mxu0 0.0
        %667 = vmatpush2.msra.mxu0 0.0
        %668 = vmatprep.mubr.f32.mxu0 0.0
        %669 = vmatmul.mubr.f32.gmra.mxu0 %v600
        %v670 = vpop.f32.mrf.mxu0
        %v671 = vadd.f32 0.0, %v670
        %v672 = vpop.f32.mrf.mxu0
        %673 = vmatprep.mubr.f32.mxu0 0.0
        %674 = vmatmul.mubr.f32.gmra.mxu0 %v601
        %v675 = vpop.f32.mrf.mxu0
        %v676 = vadd.f32 0.0, %v675
        %v677 = vpop.f32.mrf.mxu0
        %678 = vmatprep.mubr.f32.mxu0 0.0
        %679 = vmatmul.mubr.f32.gmra.mxu0 %v602
        %v680 = vpop.f32.mrf.mxu0
        %v681 = vadd.f32 0.0, %v680
        %v682 = vpop.f32.mrf.mxu0
        %683 = vmatprep.mubr.f32.mxu0 0.0
        %684 = vmatmul.mubr.f32.gmra.mxu0 %v603
        %v685 = vpop.f32.mrf.mxu0
        %v686 = vadd.f32 0.0, %v685
        %v687 = vpop.f32.mrf.mxu0
        %688 = vdwg.mxu0
        %v689 = vmul.f32 %v671, 0.0078125
        %v690 = vmul.f32 %v676, 0.0078125
        %v691 = vmul.f32 %v681, 0.0078125
        %v692 = vmul.f32 %v686, 0.0078125
        %694 = vset.pattern.permute.xlu0 0
        %695 = vperm.xlu0 %694, %v689
        %v696 = vpop.permute.xlu0 %695
        %699 = vset.pattern.permute.xlu0 0
        %700 = vperm.xlu0 %699, %v690
        %v701 = vpop.permute.xlu0 %700
        %704 = vset.pattern.permute.xlu0 0
        %705 = vperm.xlu0 %704, %v691
        %v706 = vpop.permute.xlu0 %705
        %709 = vset.pattern.permute.xlu0 0
        %710 = vperm.xlu0 %709, %v692
        %v711 = vpop.permute.xlu0 %710
        %v713 = vsub.f32 %v600, %v696
        %v714 = vsub.f32 %v601, %v701
        %v715 = vsub.f32 %v602, %v706
        %v716 = vsub.f32 %v603, %v711
        %v717 = vmul.f32 %v713, %v713
        %v718 = vmul.f32 %v714, %v714
        %v719 = vmul.f32 %v715, %v715
        %v720 = vmul.f32 %v716, %v716
        %721 = vmatprep.subr.mxu0 0.0
        %722 = vmatpush1.msra.mxu0 1.0
        %723 = vmatprep.subr.mxu0 0.0
        %724 = vmatpush1.msra.mxu0 1.0
        %725 = vmatprep.subr.mxu0 0.0
        %726 = vmatpush1.msra.mxu0 1.0
        %727 = vmatprep.subr.mxu0 0.0
        %728 = vmatpush1.msra.mxu0 1.0
        %729 = vmatprep.subr.mxu0 0.0
        %730 = vmatpush1.msra.mxu0 1.0
        %731 = vmatprep.subr.mxu0 0.0
        %732 = vmatpush1.msra.mxu0 1.0
        %733 = vmatprep.subr.mxu0 0.0
        %734 = vmatpush1.msra.mxu0 1.0
        %735 = vmatprep.subr.mxu0 0.0
        %736 = vmatpush1.msra.mxu0 1.0
        %737 = vmatprep.subr.mxu0 0.0
        %738 = vmatpush1.msra.mxu0 1.0
        %739 = vmatprep.subr.mxu0 0.0
        %740 = vmatpush1.msra.mxu0 1.0
        %741 = vmatprep.subr.mxu0 0.0
        %742 = vmatpush1.msra.mxu0 1.0
        %743 = vmatprep.subr.mxu0 0.0
        %744 = vmatpush1.msra.mxu0 1.0
        %745 = vmatprep.subr.mxu0 0.0
        %746 = vmatpush1.msra.mxu0 1.0
        %747 = vmatprep.subr.mxu0 0.0
        %748 = vmatpush1.msra.mxu0 1.0
        %749 = vmatprep.subr.mxu0 0.0
        %750 = vmatpush1.msra.mxu0 1.0
        %751 = vmatprep.subr.mxu0 0.0
        %752 = vmatpush1.msra.mxu0 1.0
        %753 = vmatprep.subr.mxu0 0.0
        %754 = vmatpush2.msra.mxu0 0.0
        %755 = vmatprep.subr.mxu0 0.0
        %756 = vmatpush2.msra.mxu0 0.0
        %757 = vmatprep.subr.mxu0 0.0
        %758 = vmatpush2.msra.mxu0 0.0
        %759 = vmatprep.subr.mxu0 0.0
        %760 = vmatpush2.msra.mxu0 0.0
        %761 = vmatprep.subr.mxu0 0.0
        %762 = vmatpush2.msra.mxu0 0.0
        %763 = vmatprep.subr.mxu0 0.0
        %764 = vmatpush2.msra.mxu0 0.0
        %765 = vmatprep.subr.mxu0 0.0
        %766 = vmatpush2.msra.mxu0 0.0
        %767 = vmatprep.subr.mxu0 0.0
        %768 = vmatpush2.msra.mxu0 0.0
        %769 = vmatprep.subr.mxu0 0.0
        %770 = vmatpush2.msra.mxu0 0.0
        %771 = vmatprep.subr.mxu0 0.0
        %772 = vmatpush2.msra.mxu0 0.0
        %773 = vmatprep.subr.mxu0 0.0
        %774 = vmatpush2.msra.mxu0 0.0
        %775 = vmatprep.subr.mxu0 0.0
        %776 = vmatpush2.msra.mxu0 0.0
        %777 = vmatprep.subr.mxu0 0.0
        %778 = vmatpush2.msra.mxu0 0.0
        %779 = vmatprep.subr.mxu0 0.0
        %780 = vmatpush2.msra.mxu0 0.0
        %781 = vmatprep.subr.mxu0 0.0
        %782 = vmatpush2.msra.mxu0 0.0
        %783 = vmatprep.subr.mxu0 0.0
        %784 = vmatpush2.msra.mxu0 0.0
        %785 = vmatprep.mubr.f32.mxu0 0.0
        %786 = vmatmul.mubr.f32.gmra.mxu0 %v717
        %v787 = vpop.f32.mrf.mxu0
        %v788 = vadd.f32 0.0, %v787
        %v789 = vpop.f32.mrf.mxu0
        %790 = vmatprep.mubr.f32.mxu0 0.0
        %791 = vmatmul.mubr.f32.gmra.mxu0 %v718
        %v792 = vpop.f32.mrf.mxu0
        %v793 = vadd.f32 0.0, %v792
        %v794 = vpop.f32.mrf.mxu0
        %795 = vmatprep.mubr.f32.mxu0 0.0
        %796 = vmatmul.mubr.f32.gmra.mxu0 %v719
        %v797 = vpop.f32.mrf.mxu0
        %v798 = vadd.f32 0.0, %v797
        %v799 = vpop.f32.mrf.mxu0
        %800 = vmatprep.mubr.f32.mxu0 0.0
        %801 = vmatmul.mubr.f32.gmra.mxu0 %v720
        %v802 = vpop.f32.mrf.mxu0
        %v803 = vadd.f32 0.0, %v802
        %v804 = vpop.f32.mrf.mxu0
        %805 = vdwg.mxu0
        %v806 = vmul.f32 %v788, 0.0078125
        %v807 = vmul.f32 %v793, 0.0078125
        %v808 = vmul.f32 %v798, 0.0078125
        %v809 = vmul.f32 %v803, 0.0078125
        %v810 = vadd.f32 %v806, 1e-05
        %v811 = vadd.f32 %v807, 1e-05
        %v812 = vadd.f32 %v808, 1e-05
        %v813 = vadd.f32 %v809, 1e-05
        %v814 = vrsqrt.pop %v810
        %v815 = vrsqrt.pop %v811
        %v816 = vrsqrt.pop %v812
        %v817 = vrsqrt.pop %v813
        %819 = vset.pattern.permute.xlu0 0
        %820 = vperm.xlu0 %819, %v814
        %v821 = vpop.permute.xlu0 %820
        %824 = vset.pattern.permute.xlu0 0
        %825 = vperm.xlu0 %824, %v815
        %v826 = vpop.permute.xlu0 %825
        %829 = vset.pattern.permute.xlu0 0
        %830 = vperm.xlu0 %829, %v816
        %v831 = vpop.permute.xlu0 %830
        %834 = vset.pattern.permute.xlu0 0
        %835 = vperm.xlu0 %834, %v817
        %v836 = vpop.permute.xlu0 %835
        %v838 = vmul.f32 %v713, %v821
        %v839 = vmul.f32 %v714, %v826
        %v840 = vmul.f32 %v715, %v831
        %v841 = vmul.f32 %v716, %v836
        %v843 = vlaneseq
        %v844 = vshrl.u32 %v843, 7
        %v845 = vsub.s32 0, %v844
        %v846 = vrot.slane %v486, %v845
        %v848 = vmul.f32 %v838, %v846
        %v849 = vmul.f32 %v839, %v846
        %v850 = vmul.f32 %v840, %v846
        %v851 = vmul.f32 %v841, %v846
        %v853 = vlaneseq
        %v854 = vshrl.u32 %v853, 7
        %v855 = vsub.s32 0, %v854
        %v856 = vrot.slane %v487, %v855
        %v858 = vadd.f32 %v848, %v856
        %v859 = vadd.f32 %v849, %v856
        %v860 = vadd.f32 %v850, %v856
        %v861 = vadd.f32 %v851, %v856
        %v862 = vmul.f32 %v858, %v858
        %v863 = vmul.f32 %v859, %v859
        %v864 = vmul.f32 %v860, %v860
        %v865 = vmul.f32 %v861, %v861
        %v866 = vmul.f32 %v858, %v862
        %v867 = vmul.f32 %v859, %v863
        %v868 = vmul.f32 %v860, %v864
        %v869 = vmul.f32 %v861, %v865
        %v870 = vmul.f32 %v866, 0.044715
        %v871 = vmul.f32 %v867, 0.044715
        %v872 = vmul.f32 %v868, 0.044715
        %v873 = vmul.f32 %v869, 0.044715
        %v874 = vadd.f32 %v858, %v870
        %v875 = vadd.f32 %v859, %v871
        %v876 = vadd.f32 %v860, %v872
        %v877 = vadd.f32 %v861, %v873
        %v878 = vmul.f32 %v874, 0.7978846
        %v879 = vmul.f32 %v875, 0.7978846
        %v880 = vmul.f32 %v876, 0.7978846
        %v881 = vmul.f32 %v877, 0.7978846
        %v882 = vtanh.pop %v878
        %v883 = vtanh.pop %v879
        %v884 = vtanh.pop %v880
        %v885 = vtanh.pop %v881
        %v886 = vadd.f32 %v882, 1.0
        %v887 = vadd.f32 %v883, 1.0
        %v888 = vadd.f32 %v884, 1.0
        %v889 = vadd.f32 %v885, 1.0
        %v890 = vmul.f32 %v886, 0.5
        %v891 = vmul.f32 %v887, 0.5
        %v892 = vmul.f32 %v888, 0.5
        %v893 = vmul.f32 %v889, 0.5
        %v894 = vmul.f32 %v858, %v890
        %v895 = vmul.f32 %v859, %v891
        %v896 = vmul.f32 %v860, %v892
        %v897 = vmul.f32 %v861, %v893
        %v898 = vpack.c.bf16 %v895, %v894
        %v899 = vpack.c.bf16 %v897, %v896
        %v901 = vlaneseq
        %v902 = vshrl.u32 %v901, 7
        %v903 = vsub.s32 0, %v902
        %v904 = vrot.slane %v485, %v903
        %v922 = vunpack.c.l.b16 %v469
        %v923 = vunpack.c.l.b16 %v470
        %v924 = vunpack.c.l.b16 %v471
        %v925 = vunpack.c.l.b16 %v472
        %v926 = vunpack.c.l.b16 %v473
        %v927 = vunpack.c.l.b16 %v474
        %v928 = vunpack.c.l.b16 %v475
        %v929 = vunpack.c.l.b16 %v476
        %v930 = vunpack.c.l.b16 %v477
        %v931 = vunpack.c.l.b16 %v478
        %v932 = vunpack.c.l.b16 %v479
        %v933 = vunpack.c.l.b16 %v480
        %v934 = vunpack.c.l.b16 %v481
        %v935 = vunpack.c.l.b16 %v482
        %v936 = vunpack.c.l.b16 %v483
        %v937 = vunpack.c.l.b16 %v484
        %v938 = vpack.c.b16 %v923, %v922
        %v939 = vpack.c.b16 %v925, %v924
        %v940 = vpack.c.b16 %v927, %v926
        %v941 = vpack.c.b16 %v929, %v928
        %v942 = vpack.c.b16 %v931, %v930
        %v943 = vpack.c.b16 %v933, %v932
        %v944 = vpack.c.b16 %v935, %v934
        %v945 = vpack.c.b16 %v937, %v936
        %954 = vmatprep.subr.bf16.mxu0 0
        %955 = vmatpush1.bf16.msra.mxu0 %v945
        %956 = vmatprep.subr.bf16.mxu0 0
        %957 = vmatpush1.bf16.msra.mxu0 %v944
        %958 = vmatprep.subr.bf16.mxu0 0
        %959 = vmatpush1.bf16.msra.mxu0 %v943
        %960 = vmatprep.subr.bf16.mxu0 0
        %961 = vmatpush1.bf16.msra.mxu0 %v942
        %962 = vmatprep.subr.bf16.mxu0 0
        %963 = vmatpush1.bf16.msra.mxu0 %v941
        %964 = vmatprep.subr.bf16.mxu0 0
        %965 = vmatpush1.bf16.msra.mxu0 %v940
        %966 = vmatprep.subr.bf16.mxu0 0
        %967 = vmatpush1.bf16.msra.mxu0 %v939
        %968 = vmatprep.subr.bf16.mxu0 0
        %969 = vmatpush1.bf16.msra.mxu0 %v938
        %970 = vmatprep.subr.bf16.mxu0 0
        %971 = vmatpush2.bf16.msra.mxu0 0
        %972 = vmatprep.subr.bf16.mxu0 0
        %973 = vmatpush2.bf16.msra.mxu0 0
        %974 = vmatprep.subr.bf16.mxu0 0
        %975 = vmatpush2.bf16.msra.mxu0 0
        %976 = vmatprep.subr.bf16.mxu0 0
        %977 = vmatpush2.bf16.msra.mxu0 0
        %978 = vmatprep.subr.bf16.mxu0 0
        %979 = vmatpush2.bf16.msra.mxu0 0
        %980 = vmatprep.subr.bf16.mxu0 0
        %981 = vmatpush2.bf16.msra.mxu0 0
        %982 = vmatprep.subr.bf16.mxu0 0
        %983 = vmatpush2.bf16.msra.mxu0 0
        %984 = vmatprep.subr.bf16.mxu0 0
        %985 = vmatpush2.bf16.msra.mxu0 0
        %986 = vmatprep.mubr.bf16.mxu0 0
        %987 = vmatmul.mubr.bf16.gmra.mxu0 %v898
        %v988 = vpop.f32.mrf.mxu0
        %v989 = vadd.f32 %v904, %v988
        %v990 = vpop.f32.mrf.mxu0
        %v991 = vpop.f32.mrf.mxu0
        %v992 = vadd.f32 %v904, %v991
        %v993 = vpop.f32.mrf.mxu0
        %994 = vmatprep.mubr.bf16.mxu0 0
        %995 = vmatmul.mubr.bf16.gmra.mxu0 %v899
        %v996 = vpop.f32.mrf.mxu0
        %v997 = vadd.f32 %v904, %v996
        %v998 = vpop.f32.mrf.mxu0
        %v999 = vpop.f32.mrf.mxu0
        %v1000 = vadd.f32 %v904, %v999
        %v1001 = vpop.f32.mrf.mxu0
        %1002 = vdwg.mxu0
        %1003 = vmatprep.subr.mxu0 0.0
        %1004 = vmatpush1.msra.mxu0 1.0
        %1005 = vmatprep.subr.mxu0 0.0
        %1006 = vmatpush1.msra.mxu0 1.0
        %1007 = vmatprep.subr.mxu0 0.0
        %1008 = vmatpush1.msra.mxu0 1.0
        %1009 = vmatprep.subr.mxu0 0.0
        %1010 = vmatpush1.msra.mxu0 1.0
        %1011 = vmatprep.subr.mxu0 0.0
        %1012 = vmatpush1.msra.mxu0 1.0
        %1013 = vmatprep.subr.mxu0 0.0
        %1014 = vmatpush1.msra.mxu0 1.0
        %1015 = vmatprep.subr.mxu0 0.0
        %1016 = vmatpush1.msra.mxu0 1.0
        %1017 = vmatprep.subr.mxu0 0.0
        %1018 = vmatpush1.msra.mxu0 1.0
        %1019 = vmatprep.subr.mxu0 0.0
        %1020 = vmatpush1.msra.mxu0 1.0
        %1021 = vmatprep.subr.mxu0 0.0
        %1022 = vmatpush1.msra.mxu0 1.0
        %1023 = vmatprep.subr.mxu0 0.0
        %1024 = vmatpush1.msra.mxu0 1.0
        %1025 = vmatprep.subr.mxu0 0.0
        %1026 = vmatpush1.msra.mxu0 1.0
        %1027 = vmatprep.subr.mxu0 0.0
        %1028 = vmatpush1.msra.mxu0 1.0
        %1029 = vmatprep.subr.mxu0 0.0
        %1030 = vmatpush1.msra.mxu0 1.0
        %1031 = vmatprep.subr.mxu0 0.0
        %1032 = vmatpush1.msra.mxu0 1.0
        %1033 = vmatprep.subr.mxu0 0.0
        %1034 = vmatpush1.msra.mxu0 1.0
        %1035 = vmatprep.subr.mxu0 0.0
        %1036 = vmatpush2.msra.mxu0 0.0
        %1037 = vmatprep.subr.mxu0 0.0
        %1038 = vmatpush2.msra.mxu0 0.0
        %1039 = vmatprep.subr.mxu0 0.0
        %1040 = vmatpush2.msra.mxu0 0.0
        %1041 = vmatprep.subr.mxu0 0.0
        %1042 = vmatpush2.msra.mxu0 0.0
        %1043 = vmatprep.subr.mxu0 0.0
        %1044 = vmatpush2.msra.mxu0 0.0
        %1045 = vmatprep.subr.mxu0 0.0
        %1046 = vmatpush2.msra.mxu0 0.0
        %1047 = vmatprep.subr.mxu0 0.0
        %1048 = vmatpush2.msra.mxu0 0.0
        %1049 = vmatprep.subr.mxu0 0.0
        %1050 = vmatpush2.msra.mxu0 0.0
        %1051 = vmatprep.subr.mxu0 0.0
        %1052 = vmatpush2.msra.mxu0 0.0
        %1053 = vmatprep.subr.mxu0 0.0
        %1054 = vmatpush2.msra.mxu0 0.0
        %1055 = vmatprep.subr.mxu0 0.0
        %1056 = vmatpush2.msra.mxu0 0.0
        %1057 = vmatprep.subr.mxu0 0.0
        %1058 = vmatpush2.msra.mxu0 0.0
        %1059 = vmatprep.subr.mxu0 0.0
        %1060 = vmatpush2.msra.mxu0 0.0
        %1061 = vmatprep.subr.mxu0 0.0
        %1062 = vmatpush2.msra.mxu0 0.0
        %1063 = vmatprep.subr.mxu0 0.0
        %1064 = vmatpush2.msra.mxu0 0.0
        %1065 = vmatprep.subr.mxu0 0.0
        %1066 = vmatpush2.msra.mxu0 0.0
        %1067 = vmatprep.mubr.f32.mxu0 0.0
        %1068 = vmatmul.mubr.f32.gmra.mxu0 %v989
        %v1069 = vpop.f32.mrf.mxu0
        %v1070 = vadd.f32 0.0, %v1069
        %v1071 = vpop.f32.mrf.mxu0
        %1072 = vmatprep.mubr.f32.mxu0 0.0
        %1073 = vmatmul.mubr.f32.gmra.mxu0 %v992
        %v1074 = vpop.f32.mrf.mxu0
        %v1075 = vadd.f32 0.0, %v1074
        %v1076 = vpop.f32.mrf.mxu0
        %1077 = vmatprep.mubr.f32.mxu0 0.0
        %1078 = vmatmul.mubr.f32.gmra.mxu0 %v997
        %v1079 = vpop.f32.mrf.mxu0
        %v1080 = vadd.f32 0.0, %v1079
        %v1081 = vpop.f32.mrf.mxu0
        %1082 = vmatprep.mubr.f32.mxu0 0.0
        %1083 = vmatmul.mubr.f32.gmra.mxu0 %v1000
        %v1084 = vpop.f32.mrf.mxu0
        %v1085 = vadd.f32 0.0, %v1084
        %v1086 = vpop.f32.mrf.mxu0
        %1087 = vdwg.mxu0
        %v1088 = vmul.f32 %v1070, 0.0078125
        %v1089 = vmul.f32 %v1075, 0.0078125
        %v1090 = vmul.f32 %v1080, 0.0078125
        %v1091 = vmul.f32 %v1085, 0.0078125
        %1093 = vset.pattern.permute.xlu0 0
        %1094 = vperm.xlu0 %1093, %v1088
        %v1095 = vpop.permute.xlu0 %1094
        %1098 = vset.pattern.permute.xlu0 0
        %1099 = vperm.xlu0 %1098, %v1089
        %v1100 = vpop.permute.xlu0 %1099
        %1103 = vset.pattern.permute.xlu0 0
        %1104 = vperm.xlu0 %1103, %v1090
        %v1105 = vpop.permute.xlu0 %1104
        %1108 = vset.pattern.permute.xlu0 0
        %1109 = vperm.xlu0 %1108, %v1091
        %v1110 = vpop.permute.xlu0 %1109
        %v1112 = vsub.f32 %v989, %v1095
        %v1113 = vsub.f32 %v992, %v1100
        %v1114 = vsub.f32 %v997, %v1105
        %v1115 = vsub.f32 %v1000, %v1110
        %v1116 = vmul.f32 %v1112, %v1112
        %v1117 = vmul.f32 %v1113, %v1113
        %v1118 = vmul.f32 %v1114, %v1114
        %v1119 = vmul.f32 %v1115, %v1115
        %1120 = vmatprep.subr.mxu0 0.0
        %1121 = vmatpush1.msra.mxu0 1.0
        %1122 = vmatprep.subr.mxu0 0.0
        %1123 = vmatpush1.msra.mxu0 1.0
        %1124 = vmatprep.subr.mxu0 0.0
        %1125 = vmatpush1.msra.mxu0 1.0
        %1126 = vmatprep.subr.mxu0 0.0
        %1127 = vmatpush1.msra.mxu0 1.0
        %1128 = vmatprep.subr.mxu0 0.0
        %1129 = vmatpush1.msra.mxu0 1.0
        %1130 = vmatprep.subr.mxu0 0.0
        %1131 = vmatpush1.msra.mxu0 1.0
        %1132 = vmatprep.subr.mxu0 0.0
        %1133 = vmatpush1.msra.mxu0 1.0
        %1134 = vmatprep.subr.mxu0 0.0
        %1135 = vmatpush1.msra.mxu0 1.0
        %1136 = vmatprep.subr.mxu0 0.0
        %1137 = vmatpush1.msra.mxu0 1.0
        %1138 = vmatprep.subr.mxu0 0.0
        %1139 = vmatpush1.msra.mxu0 1.0
        %1140 = vmatprep.subr.mxu0 0.0
        %1141 = vmatpush1.msra.mxu0 1.0
        %1142 = vmatprep.subr.mxu0 0.0
        %1143 = vmatpush1.msra.mxu0 1.0
        %1144 = vmatprep.subr.mxu0 0.0
        %1145 = vmatpush1.msra.mxu0 1.0
        %1146 = vmatprep.subr.mxu0 0.0
        %1147 = vmatpush1.msra.mxu0 1.0
        %1148 = vmatprep.subr.mxu0 0.0
        %1149 = vmatpush1.msra.mxu0 1.0
        %1150 = vmatprep.subr.mxu0 0.0
        %1151 = vmatpush1.msra.mxu0 1.0
        %1152 = vmatprep.subr.mxu0 0.0
        %1153 = vmatpush2.msra.mxu0 0.0
        %1154 = vmatprep.subr.mxu0 0.0
        %1155 = vmatpush2.msra.mxu0 0.0
        %1156 = vmatprep.subr.mxu0 0.0
        %1157 = vmatpush2.msra.mxu0 0.0
        %1158 = vmatprep.subr.mxu0 0.0
        %1159 = vmatpush2.msra.mxu0 0.0
        %1160 = vmatprep.subr.mxu0 0.0
        %1161 = vmatpush2.msra.mxu0 0.0
        %1162 = vmatprep.subr.mxu0 0.0
        %1163 = vmatpush2.msra.mxu0 0.0
        %1164 = vmatprep.subr.mxu0 0.0
        %1165 = vmatpush2.msra.mxu0 0.0
        %1166 = vmatprep.subr.mxu0 0.0
        %1167 = vmatpush2.msra.mxu0 0.0
        %1168 = vmatprep.subr.mxu0 0.0
        %1169 = vmatpush2.msra.mxu0 0.0
        %1170 = vmatprep.subr.mxu0 0.0
        %1171 = vmatpush2.msra.mxu0 0.0
        %1172 = vmatprep.subr.mxu0 0.0
        %1173 = vmatpush2.msra.mxu0 0.0
        %1174 = vmatprep.subr.mxu0 0.0
        %1175 = vmatpush2.msra.mxu0 0.0
        %1176 = vmatprep.subr.mxu0 0.0
        %1177 = vmatpush2.msra.mxu0 0.0
        %1178 = vmatprep.subr.mxu0 0.0
        %1179 = vmatpush2.msra.mxu0 0.0
        %1180 = vmatprep.subr.mxu0 0.0
        %1181 = vmatpush2.msra.mxu0 0.0
        %1182 = vmatprep.subr.mxu0 0.0
        %1183 = vmatpush2.msra.mxu0 0.0
        %1184 = vmatprep.mubr.f32.mxu0 0.0
        %1185 = vmatmul.mubr.f32.gmra.mxu0 %v1116
        %v1186 = vpop.f32.mrf.mxu0
        %v1187 = vadd.f32 0.0, %v1186
        %v1188 = vpop.f32.mrf.mxu0
        %1189 = vmatprep.mubr.f32.mxu0 0.0
        %1190 = vmatmul.mubr.f32.gmra.mxu0 %v1117
        %v1191 = vpop.f32.mrf.mxu0
        %v1192 = vadd.f32 0.0, %v1191
        %v1193 = vpop.f32.mrf.mxu0
        %1194 = vmatprep.mubr.f32.mxu0 0.0
        %1195 = vmatmul.mubr.f32.gmra.mxu0 %v1118
        %v1196 = vpop.f32.mrf.mxu0
        %v1197 = vadd.f32 0.0, %v1196
        %v1198 = vpop.f32.mrf.mxu0
        %1199 = vmatprep.mubr.f32.mxu0 0.0
        %1200 = vmatmul.mubr.f32.gmra.mxu0 %v1119
        %v1201 = vpop.f32.mrf.mxu0
        %v1202 = vadd.f32 0.0, %v1201
        %v1203 = vpop.f32.mrf.mxu0
        %1204 = vdwg.mxu0
        %v1205 = vmul.f32 %v1187, 0.0078125
        %v1206 = vmul.f32 %v1192, 0.0078125
        %v1207 = vmul.f32 %v1197, 0.0078125
        %v1208 = vmul.f32 %v1202, 0.0078125
        %v1209 = vadd.f32 %v1205, 1e-05
        %v1210 = vadd.f32 %v1206, 1e-05
        %v1211 = vadd.f32 %v1207, 1e-05
        %v1212 = vadd.f32 %v1208, 1e-05
        %v1213 = vrsqrt.pop %v1209
        %v1214 = vrsqrt.pop %v1210
        %v1215 = vrsqrt.pop %v1211
        %v1216 = vrsqrt.pop %v1212
        %1218 = vset.pattern.permute.xlu0 0
        %1219 = vperm.xlu0 %1218, %v1213
        %v1220 = vpop.permute.xlu0 %1219
        %1223 = vset.pattern.permute.xlu0 0
        %1224 = vperm.xlu0 %1223, %v1214
        %v1225 = vpop.permute.xlu0 %1224
        %1228 = vset.pattern.permute.xlu0 0
        %1229 = vperm.xlu0 %1228, %v1215
        %v1230 = vpop.permute.xlu0 %1229
        %1233 = vset.pattern.permute.xlu0 0
        %1234 = vperm.xlu0 %1233, %v1216
        %v1235 = vpop.permute.xlu0 %1234
        %v1237 = vmul.f32 %v1112, %v1220
        %v1238 = vmul.f32 %v1113, %v1225
        %v1239 = vmul.f32 %v1114, %v1230
        %v1240 = vmul.f32 %v1115, %v1235
        %v1242 = vlaneseq
        %v1243 = vshrl.u32 %v1242, 7
        %v1244 = vsub.s32 0, %v1243
        %v1245 = vrot.slane %v488, %v1244
        %v1247 = vmul.f32 %v1237, %v1245
        %v1248 = vmul.f32 %v1238, %v1245
        %v1249 = vmul.f32 %v1239, %v1245
        %v1250 = vmul.f32 %v1240, %v1245
        %v1252 = vlaneseq
        %v1253 = vshrl.u32 %v1252, 7
        %v1254 = vsub.s32 0, %v1253
        %v1255 = vrot.slane %v489, %v1254
        %v1257 = vadd.f32 %v1247, %v1255
        %v1258 = vadd.f32 %v1248, %v1255
        %v1259 = vadd.f32 %v1249, %v1255
        %v1260 = vadd.f32 %v1250, %v1255
        %v1261 = vmul.f32 %v1257, %v1257
        %v1262 = vmul.f32 %v1258, %v1258
        %v1263 = vmul.f32 %v1259, %v1259
        %v1264 = vmul.f32 %v1260, %v1260
        %v1265 = vmul.f32 %v1257, %v1261
        %v1266 = vmul.f32 %v1258, %v1262
        %v1267 = vmul.f32 %v1259, %v1263
        %v1268 = vmul.f32 %v1260, %v1264
        %v1269 = vmul.f32 %v1265, 0.044715
        %v1270 = vmul.f32 %v1266, 0.044715
        %v1271 = vmul.f32 %v1267, 0.044715
        %v1272 = vmul.f32 %v1268, 0.044715
        %v1273 = vadd.f32 %v1257, %v1269
        %v1274 = vadd.f32 %v1258, %v1270
        %v1275 = vadd.f32 %v1259, %v1271
        %v1276 = vadd.f32 %v1260, %v1272
        %v1277 = vmul.f32 %v1273, 0.7978846
        %v1278 = vmul.f32 %v1274, 0.7978846
        %v1279 = vmul.f32 %v1275, 0.7978846
        %v1280 = vmul.f32 %v1276, 0.7978846
        %v1281 = vtanh.pop %v1277
        %v1282 = vtanh.pop %v1278
        %v1283 = vtanh.pop %v1279
        %v1284 = vtanh.pop %v1280
        %v1285 = vadd.f32 %v1281, 1.0
        %v1286 = vadd.f32 %v1282, 1.0
        %v1287 = vadd.f32 %v1283, 1.0
        %v1288 = vadd.f32 %v1284, 1.0
        %v1289 = vmul.f32 %v1285, 0.5
        %v1290 = vmul.f32 %v1286, 0.5
        %v1291 = vmul.f32 %v1287, 0.5
        %v1292 = vmul.f32 %v1288, 0.5
        %v1293 = vmul.f32 %v1257, %v1289
        %v1294 = vmul.f32 %v1258, %v1290
        %v1295 = vmul.f32 %v1259, %v1291
        %v1296 = vmul.f32 %v1260, %v1292
        %v1297 = vadd.f32 %v457, %v1293
        %v1298 = vadd.f32 %v458, %v1294
        %v1299 = vadd.f32 %v459, %v1295
        %v1300 = vadd.f32 %v460, %v1296
        %s1301 = scalar_lea.vmem [#allocation2], 3
        %v1302 = vld [vmem:[%s1301] sm:$0x1]
        %v1303 = vld [vmem:[%s1301 + $0x1] sm:$0x1]
        %v1304 = vld [vmem:[%s1301 + $0x2] sm:$0x1]
        %s1305 = scalar_lea.vmem %s3, 1
        %v1306 = vld [vmem:[%s1305] sm:$0x1]
        %s1307 = scalar_lea.vmem [#allocation5], 64
        %v1308 = vld [vmem:[%s1307] sm:$0xf]
        %v1309 = vld [vmem:[%s1307 + $0x4] sm:$0xf]
        %v1310 = vld [vmem:[%s1307 + $0x8] sm:$0xf]
        %v1311 = vld [vmem:[%s1307 + $0xc] sm:$0xf]
        %v1312 = vld [vmem:[%s1307 + $0x10] sm:$0xf]
        %v1313 = vld [vmem:[%s1307 + $0x14] sm:$0xf]
        %v1314 = vld [vmem:[%s1307 + $0x18] sm:$0xf]
        %v1315 = vld [vmem:[%s1307 + $0x1c] sm:$0xf]
        %v1316 = vld [vmem:[%s1307 + $0x20] sm:$0xf]
        %v1317 = vld [vmem:[%s1307 + $0x24] sm:$0xf]
        %v1318 = vld [vmem:[%s1307 + $0x28] sm:$0xf]
        %v1319 = vld [vmem:[%s1307 + $0x2c] sm:$0xf]
        %v1320 = vld [vmem:[%s1307 + $0x30] sm:$0xf]
        %v1321 = vld [vmem:[%s1307 + $0x34] sm:$0xf]
        %v1322 = vld [vmem:[%s1307 + $0x38] sm:$0xf]
        %v1323 = vld [vmem:[%s1307 + $0x3c] sm:$0xf]
        %s1324 = scalar_lea.vmem %s5, 1
        %v1325 = vld [vmem:[%s1324] sm:$0x1]
        %s1326 = scalar_lea.vmem %s6, 1
        %v1327 = vld [vmem:[%s1326] sm:$0x1]
        %s1328 = scalar_lea.vmem %s7, 1
        %v1329 = vld [vmem:[%s1328] sm:$0x1]
        %s1330 = scalar_lea.vmem %s8, 1
        %v1331 = vld [vmem:[%s1330] sm:$0x1]
        %s1332 = scalar_lea.vmem [#allocation7], 1
        %v1333 = vld [vmem:[%s1332] sm:$0x1]
        %v1334 = vmul.f32 %v1297, %v493
        %v1335 = vmul.f32 %v1298, %v498
        %v1336 = vmul.f32 %v1299, %v503
        %v1337 = vmul.f32 %v1300, %v508
        %v1339 = vlaneseq
        %v1340 = vshrl.u32 %v1339, 7
        %v1341 = vsub.s32 0, %v1340
        %v1342 = vrot.slane %v1303, %v1341
        %v1344 = vmul.f32 %v1334, %v1342
        %v1345 = vmul.f32 %v1335, %v1342
        %v1346 = vmul.f32 %v1336, %v1342
        %v1347 = vmul.f32 %v1337, %v1342
        %v1349 = vlaneseq
        %v1350 = vshrl.u32 %v1349, 7
        %v1351 = vsub.s32 0, %v1350
        %v1352 = vrot.slane %v1306, %v1351
        %v1354 = vadd.f32 %v1352, %v1344
        %v1355 = vadd.f32 %v1352, %v1345
        %v1356 = vadd.f32 %v1352, %v1346
        %v1357 = vadd.f32 %v1352, %v1347
        %v1358 = vrot.slane %v1334, 5
        %v1359 = vrot.slane %v1335, 5
        %v1360 = vrot.slane %v1336, 5
        %v1361 = vrot.slane %v1337, 5
        %vm1362 = vcmp.lt.s32.totalorder %v429, 3
        %v1363 = vsel %vm1362, %v1360, %v1361
        %v1364 = vsel %vm1362, %v1359, %v1360
        %v1365 = vsel %vm1362, %v1358, %v1359
        %v1366 = vsel %vm1362, %v1361, %v1358
        %vm1367 = vcmp.ge.f32.partialorder %v453, 3.0
        %vm1368 = vcmp.ge.f32.partialorder %v454, 3.0
        %vm1369 = vcmp.ge.f32.partialorder %v455, 3.0
        %vm1370 = vcmp.ge.f32.partialorder %v456, 3.0
        %v1371 = vsel %vm1367, 1.0, 0.0
        %v1372 = vsel %vm1368, 1.0, 0.0
        %v1373 = vsel %vm1369, 1.0, 0.0
        %v1374 = vsel %vm1370, 1.0, 0.0
        %v1375 = vmul.f32 %v1366, %v1371
        %v1376 = vmul.f32 %v1365, %v1372
        %v1377 = vmul.f32 %v1364, %v1373
        %v1378 = vmul.f32 %v1363, %v1374
        %v1380 = vlaneseq
        %v1381 = vshrl.u32 %v1380, 7
        %v1382 = vsub.s32 0, %v1381
        %v1383 = vrot.slane %v1302, %v1382
        %v1385 = vmul.f32 %v1375, %v1383
        %v1386 = vmul.f32 %v1376, %v1383
        %v1387 = vmul.f32 %v1377, %v1383
        %v1388 = vmul.f32 %v1378, %v1383
        %v1389 = vadd.f32 %v1354, %v1385
        %v1390 = vadd.f32 %v1355, %v1386
        %v1391 = vadd.f32 %v1356, %v1387
        %v1392 = vadd.f32 %v1357, %v1388
        %v1393 = vrot.slane %v1334, 3
        %v1394 = vrot.slane %v1335, 3
        %v1395 = vrot.slane %v1336, 3
        %v1396 = vrot.slane %v1337, 3
        %vm1397 = vcmp.lt.s32.totalorder %v429, 5
        %v1398 = vsel %vm1397, %v1395, %v1396
        %v1399 = vsel %vm1397, %v1394, %v1395
        %v1400 = vsel %vm1397, %v1393, %v1394
        %v1401 = vsel %vm1397, %v1396, %v1393
        %vm1402 = vcmp.lt.f32.partialorder %v453, 29.0
        %vm1403 = vcmp.lt.f32.partialorder %v454, 29.0
        %vm1404 = vcmp.lt.f32.partialorder %v455, 29.0
        %vm1405 = vcmp.lt.f32.partialorder %v456, 29.0
        %v1406 = vsel %vm1402, 1.0, 0.0
        %v1407 = vsel %vm1403, 1.0, 0.0
        %v1408 = vsel %vm1404, 1.0, 0.0
        %v1409 = vsel %vm1405, 1.0, 0.0
        %v1410 = vmul.f32 %v1400, %v1406
        %v1411 = vmul.f32 %v1399, %v1407
        %v1412 = vmul.f32 %v1398, %v1408
        %v1413 = vmul.f32 %v1401, %v1409
        %v1415 = vlaneseq
        %v1416 = vshrl.u32 %v1415, 7
        %v1417 = vsub.s32 0, %v1416
        %v1418 = vrot.slane %v1304, %v1417
        %v1420 = vmul.f32 %v1410, %v1418
        %v1421 = vmul.f32 %v1411, %v1418
        %v1422 = vmul.f32 %v1412, %v1418
        %v1423 = vmul.f32 %v1413, %v1418
        %v1424 = vadd.f32 %v1389, %v1420
        %v1425 = vadd.f32 %v1390, %v1421
        %v1426 = vadd.f32 %v1391, %v1422
        %v1427 = vadd.f32 %v1392, %v1423
        %1428 = vmatprep.subr.mxu0 0.0
        %1429 = vmatpush1.msra.mxu0 1.0
        %1430 = vmatprep.subr.mxu0 0.0
        %1431 = vmatpush1.msra.mxu0 1.0
        %1432 = vmatprep.subr.mxu0 0.0
        %1433 = vmatpush1.msra.mxu0 1.0
        %1434 = vmatprep.subr.mxu0 0.0
        %1435 = vmatpush1.msra.mxu0 1.0
        %1436 = vmatprep.subr.mxu0 0.0
        %1437 = vmatpush1.msra.mxu0 1.0
        %1438 = vmatprep.subr.mxu0 0.0
        %1439 = vmatpush1.msra.mxu0 1.0
        %1440 = vmatprep.subr.mxu0 0.0
        %1441 = vmatpush1.msra.mxu0 1.0
        %1442 = vmatprep.subr.mxu0 0.0
        %1443 = vmatpush1.msra.mxu0 1.0
        %1444 = vmatprep.subr.mxu0 0.0
        %1445 = vmatpush1.msra.mxu0 1.0
        %1446 = vmatprep.subr.mxu0 0.0
        %1447 = vmatpush1.msra.mxu0 1.0
        %1448 = vmatprep.subr.mxu0 0.0
        %1449 = vmatpush1.msra.mxu0 1.0
        %1450 = vmatprep.subr.mxu0 0.0
        %1451 = vmatpush1.msra.mxu0 1.0
        %1452 = vmatprep.subr.mxu0 0.0
        %1453 = vmatpush1.msra.mxu0 1.0
        %1454 = vmatprep.subr.mxu0 0.0
        %1455 = vmatpush1.msra.mxu0 1.0
        %1456 = vmatprep.subr.mxu0 0.0
        %1457 = vmatpush1.msra.mxu0 1.0
        %1458 = vmatprep.subr.mxu0 0.0
        %1459 = vmatpush1.msra.mxu0 1.0
        %1460 = vmatprep.subr.mxu0 0.0
        %1461 = vmatpush2.msra.mxu0 0.0
        %1462 = vmatprep.subr.mxu0 0.0
        %1463 = vmatpush2.msra.mxu0 0.0
        %1464 = vmatprep.subr.mxu0 0.0
        %1465 = vmatpush2.msra.mxu0 0.0
        %1466 = vmatprep.subr.mxu0 0.0
        %1467 = vmatpush2.msra.mxu0 0.0
        %1468 = vmatprep.subr.mxu0 0.0
        %1469 = vmatpush2.msra.mxu0 0.0
        %1470 = vmatprep.subr.mxu0 0.0
        %1471 = vmatpush2.msra.mxu0 0.0
        %1472 = vmatprep.subr.mxu0 0.0
        %1473 = vmatpush2.msra.mxu0 0.0
        %1474 = vmatprep.subr.mxu0 0.0
        %1475 = vmatpush2.msra.mxu0 0.0
        %1476 = vmatprep.subr.mxu0 0.0
        %1477 = vmatpush2.msra.mxu0 0.0
        %1478 = vmatprep.subr.mxu0 0.0
        %1479 = vmatpush2.msra.mxu0 0.0
        %1480 = vmatprep.subr.mxu0 0.0
        %1481 = vmatpush2.msra.mxu0 0.0
        %1482 = vmatprep.subr.mxu0 0.0
        %1483 = vmatpush2.msra.mxu0 0.0
        %1484 = vmatprep.subr.mxu0 0.0
        %1485 = vmatpush2.msra.mxu0 0.0
        %1486 = vmatprep.subr.mxu0 0.0
        %1487 = vmatpush2.msra.mxu0 0.0
        %1488 = vmatprep.subr.mxu0 0.0
        %1489 = vmatpush2.msra.mxu0 0.0
        %1490 = vmatprep.subr.mxu0 0.0
        %1491 = vmatpush2.msra.mxu0 0.0
        %1492 = vmatprep.mubr.f32.mxu0 0.0
        %1493 = vmatmul.mubr.f32.gmra.mxu0 %v1424
        %v1494 = vpop.f32.mrf.mxu0
        %v1495 = vadd.f32 0.0, %v1494
        %v1496 = vpop.f32.mrf.mxu0
        %1497 = vmatprep.mubr.f32.mxu0 0.0
        %1498 = vmatmul.mubr.f32.gmra.mxu0 %v1425
        %v1499 = vpop.f32.mrf.mxu0
        %v1500 = vadd.f32 0.0, %v1499
        %v1501 = vpop.f32.mrf.mxu0
        %1502 = vmatprep.mubr.f32.mxu0 0.0
        %1503 = vmatmul.mubr.f32.gmra.mxu0 %v1426
        %v1504 = vpop.f32.mrf.mxu0
        %v1505 = vadd.f32 0.0, %v1504
        %v1506 = vpop.f32.mrf.mxu0
        %1507 = vmatprep.mubr.f32.mxu0 0.0
        %1508 = vmatmul.mubr.f32.gmra.mxu0 %v1427
        %v1509 = vpop.f32.mrf.mxu0
        %v1510 = vadd.f32 0.0, %v1509
        %v1511 = vpop.f32.mrf.mxu0
        %1512 = vdwg.mxu0
        %v1513 = vmul.f32 %v1495, 0.0078125
        %v1514 = vmul.f32 %v1500, 0.0078125
        %v1515 = vmul.f32 %v1505, 0.0078125
        %v1516 = vmul.f32 %v1510, 0.0078125
        %1518 = vset.pattern.permute.xlu0 0
        %1519 = vperm.xlu0 %1518, %v1513
        %v1520 = vpop.permute.xlu0 %1519
        %1523 = vset.pattern.permute.xlu0 0
        %1524 = vperm.xlu0 %1523, %v1514
        %v1525 = vpop.permute.xlu0 %1524
        %1528 = vset.pattern.permute.xlu0 0
        %1529 = vperm.xlu0 %1528, %v1515
        %v1530 = vpop.permute.xlu0 %1529
        %1533 = vset.pattern.permute.xlu0 0
        %1534 = vperm.xlu0 %1533, %v1516
        %v1535 = vpop.permute.xlu0 %1534
        %v1537 = vsub.f32 %v1424, %v1520
        %v1538 = vsub.f32 %v1425, %v1525
        %v1539 = vsub.f32 %v1426, %v1530
        %v1540 = vsub.f32 %v1427, %v1535
        %v1541 = vmul.f32 %v1537, %v1537
        %v1542 = vmul.f32 %v1538, %v1538
        %v1543 = vmul.f32 %v1539, %v1539
        %v1544 = vmul.f32 %v1540, %v1540
        %1545 = vmatprep.subr.mxu0 0.0
        %1546 = vmatpush1.msra.mxu0 1.0
        %1547 = vmatprep.subr.mxu0 0.0
        %1548 = vmatpush1.msra.mxu0 1.0
        %1549 = vmatprep.subr.mxu0 0.0
        %1550 = vmatpush1.msra.mxu0 1.0
        %1551 = vmatprep.subr.mxu0 0.0
        %1552 = vmatpush1.msra.mxu0 1.0
        %1553 = vmatprep.subr.mxu0 0.0
        %1554 = vmatpush1.msra.mxu0 1.0
        %1555 = vmatprep.subr.mxu0 0.0
        %1556 = vmatpush1.msra.mxu0 1.0
        %1557 = vmatprep.subr.mxu0 0.0
        %1558 = vmatpush1.msra.mxu0 1.0
        %1559 = vmatprep.subr.mxu0 0.0
        %1560 = vmatpush1.msra.mxu0 1.0
        %1561 = vmatprep.subr.mxu0 0.0
        %1562 = vmatpush1.msra.mxu0 1.0
        %1563 = vmatprep.subr.mxu0 0.0
        %1564 = vmatpush1.msra.mxu0 1.0
        %1565 = vmatprep.subr.mxu0 0.0
        %1566 = vmatpush1.msra.mxu0 1.0
        %1567 = vmatprep.subr.mxu0 0.0
        %1568 = vmatpush1.msra.mxu0 1.0
        %1569 = vmatprep.subr.mxu0 0.0
        %1570 = vmatpush1.msra.mxu0 1.0
        %1571 = vmatprep.subr.mxu0 0.0
        %1572 = vmatpush1.msra.mxu0 1.0
        %1573 = vmatprep.subr.mxu0 0.0
        %1574 = vmatpush1.msra.mxu0 1.0
        %1575 = vmatprep.subr.mxu0 0.0
        %1576 = vmatpush1.msra.mxu0 1.0
        %1577 = vmatprep.subr.mxu0 0.0
        %1578 = vmatpush2.msra.mxu0 0.0
        %1579 = vmatprep.subr.mxu0 0.0
        %1580 = vmatpush2.msra.mxu0 0.0
        %1581 = vmatprep.subr.mxu0 0.0
        %1582 = vmatpush2.msra.mxu0 0.0
        %1583 = vmatprep.subr.mxu0 0.0
        %1584 = vmatpush2.msra.mxu0 0.0
        %1585 = vmatprep.subr.mxu0 0.0
        %1586 = vmatpush2.msra.mxu0 0.0
        %1587 = vmatprep.subr.mxu0 0.0
        %1588 = vmatpush2.msra.mxu0 0.0
        %1589 = vmatprep.subr.mxu0 0.0
        %1590 = vmatpush2.msra.mxu0 0.0
        %1591 = vmatprep.subr.mxu0 0.0
        %1592 = vmatpush2.msra.mxu0 0.0
        %1593 = vmatprep.subr.mxu0 0.0
        %1594 = vmatpush2.msra.mxu0 0.0
        %1595 = vmatprep.subr.mxu0 0.0
        %1596 = vmatpush2.msra.mxu0 0.0
        %1597 = vmatprep.subr.mxu0 0.0
        %1598 = vmatpush2.msra.mxu0 0.0
        %1599 = vmatprep.subr.mxu0 0.0
        %1600 = vmatpush2.msra.mxu0 0.0
        %1601 = vmatprep.subr.mxu0 0.0
        %1602 = vmatpush2.msra.mxu0 0.0
        %1603 = vmatprep.subr.mxu0 0.0
        %1604 = vmatpush2.msra.mxu0 0.0
        %1605 = vmatprep.subr.mxu0 0.0
        %1606 = vmatpush2.msra.mxu0 0.0
        %1607 = vmatprep.subr.mxu0 0.0
        %1608 = vmatpush2.msra.mxu0 0.0
        %1609 = vmatprep.mubr.f32.mxu0 0.0
        %1610 = vmatmul.mubr.f32.gmra.mxu0 %v1541
        %v1611 = vpop.f32.mrf.mxu0
        %v1612 = vadd.f32 0.0, %v1611
        %v1613 = vpop.f32.mrf.mxu0
        %1614 = vmatprep.mubr.f32.mxu0 0.0
        %1615 = vmatmul.mubr.f32.gmra.mxu0 %v1542
        %v1616 = vpop.f32.mrf.mxu0
        %v1617 = vadd.f32 0.0, %v1616
        %v1618 = vpop.f32.mrf.mxu0
        %1619 = vmatprep.mubr.f32.mxu0 0.0
        %1620 = vmatmul.mubr.f32.gmra.mxu0 %v1543
        %v1621 = vpop.f32.mrf.mxu0
        %v1622 = vadd.f32 0.0, %v1621
        %v1623 = vpop.f32.mrf.mxu0
        %1624 = vmatprep.mubr.f32.mxu0 0.0
        %1625 = vmatmul.mubr.f32.gmra.mxu0 %v1544
        %v1626 = vpop.f32.mrf.mxu0
        %v1627 = vadd.f32 0.0, %v1626
        %v1628 = vpop.f32.mrf.mxu0
        %1629 = vdwg.mxu0
        %v1630 = vmul.f32 %v1612, 0.0078125
        %v1631 = vmul.f32 %v1617, 0.0078125
        %v1632 = vmul.f32 %v1622, 0.0078125
        %v1633 = vmul.f32 %v1627, 0.0078125
        %v1634 = vadd.f32 %v1630, 1e-05
        %v1635 = vadd.f32 %v1631, 1e-05
        %v1636 = vadd.f32 %v1632, 1e-05
        %v1637 = vadd.f32 %v1633, 1e-05
        %v1638 = vrsqrt.pop %v1634
        %v1639 = vrsqrt.pop %v1635
        %v1640 = vrsqrt.pop %v1636
        %v1641 = vrsqrt.pop %v1637
        %1643 = vset.pattern.permute.xlu0 0
        %1644 = vperm.xlu0 %1643, %v1638
        %v1645 = vpop.permute.xlu0 %1644
        %1648 = vset.pattern.permute.xlu0 0
        %1649 = vperm.xlu0 %1648, %v1639
        %v1650 = vpop.permute.xlu0 %1649
        %1653 = vset.pattern.permute.xlu0 0
        %1654 = vperm.xlu0 %1653, %v1640
        %v1655 = vpop.permute.xlu0 %1654
        %1658 = vset.pattern.permute.xlu0 0
        %1659 = vperm.xlu0 %1658, %v1641
        %v1660 = vpop.permute.xlu0 %1659
        %v1662 = vmul.f32 %v1537, %v1645
        %v1663 = vmul.f32 %v1538, %v1650
        %v1664 = vmul.f32 %v1539, %v1655
        %v1665 = vmul.f32 %v1540, %v1660
        %v1667 = vlaneseq
        %v1668 = vshrl.u32 %v1667, 7
        %v1669 = vsub.s32 0, %v1668
        %v1670 = vrot.slane %v1327, %v1669
        %v1672 = vmul.f32 %v1662, %v1670
        %v1673 = vmul.f32 %v1663, %v1670
        %v1674 = vmul.f32 %v1664, %v1670
        %v1675 = vmul.f32 %v1665, %v1670
        %v1677 = vlaneseq
        %v1678 = vshrl.u32 %v1677, 7
        %v1679 = vsub.s32 0, %v1678
        %v1680 = vrot.slane %v1329, %v1679
        %v1682 = vadd.f32 %v1672, %v1680
        %v1683 = vadd.f32 %v1673, %v1680
        %v1684 = vadd.f32 %v1674, %v1680
        %v1685 = vadd.f32 %v1675, %v1680
        %v1686 = vmul.f32 %v1682, %v1682
        %v1687 = vmul.f32 %v1683, %v1683
        %v1688 = vmul.f32 %v1684, %v1684
        %v1689 = vmul.f32 %v1685, %v1685
        %v1690 = vmul.f32 %v1682, %v1686
        %v1691 = vmul.f32 %v1683, %v1687
        %v1692 = vmul.f32 %v1684, %v1688
        %v1693 = vmul.f32 %v1685, %v1689
        %v1694 = vmul.f32 %v1690, 0.044715
        %v1695 = vmul.f32 %v1691, 0.044715
        %v1696 = vmul.f32 %v1692, 0.044715
        %v1697 = vmul.f32 %v1693, 0.044715
        %v1698 = vadd.f32 %v1682, %v1694
        %v1699 = vadd.f32 %v1683, %v1695
        %v1700 = vadd.f32 %v1684, %v1696
        %v1701 = vadd.f32 %v1685, %v1697
        %v1702 = vmul.f32 %v1698, 0.7978846
        %v1703 = vmul.f32 %v1699, 0.7978846
        %v1704 = vmul.f32 %v1700, 0.7978846
        %v1705 = vmul.f32 %v1701, 0.7978846
        %v1706 = vtanh.pop %v1702
        %v1707 = vtanh.pop %v1703
        %v1708 = vtanh.pop %v1704
        %v1709 = vtanh.pop %v1705
        %v1710 = vadd.f32 %v1706, 1.0
        %v1711 = vadd.f32 %v1707, 1.0
        %v1712 = vadd.f32 %v1708, 1.0
        %v1713 = vadd.f32 %v1709, 1.0
        %v1714 = vmul.f32 %v1710, 0.5
        %v1715 = vmul.f32 %v1711, 0.5
        %v1716 = vmul.f32 %v1712, 0.5
        %v1717 = vmul.f32 %v1713, 0.5
        %v1718 = vmul.f32 %v1682, %v1714
        %v1719 = vmul.f32 %v1683, %v1715
        %v1720 = vmul.f32 %v1684, %v1716
        %v1721 = vmul.f32 %v1685, %v1717
        %v1722 = vpack.c.bf16 %v1719, %v1718
        %v1723 = vpack.c.bf16 %v1721, %v1720
        %v1725 = vlaneseq
        %v1726 = vshrl.u32 %v1725, 7
        %v1727 = vsub.s32 0, %v1726
        %v1728 = vrot.slane %v1325, %v1727
        %v1746 = vunpack.c.l.b16 %v1308
        %v1747 = vunpack.c.l.b16 %v1309
        %v1748 = vunpack.c.l.b16 %v1310
        %v1749 = vunpack.c.l.b16 %v1311
        %v1750 = vunpack.c.l.b16 %v1312
        %v1751 = vunpack.c.l.b16 %v1313
        %v1752 = vunpack.c.l.b16 %v1314
        %v1753 = vunpack.c.l.b16 %v1315
        %v1754 = vunpack.c.l.b16 %v1316
        %v1755 = vunpack.c.l.b16 %v1317
        %v1756 = vunpack.c.l.b16 %v1318
        %v1757 = vunpack.c.l.b16 %v1319
        %v1758 = vunpack.c.l.b16 %v1320
        %v1759 = vunpack.c.l.b16 %v1321
        %v1760 = vunpack.c.l.b16 %v1322
        %v1761 = vunpack.c.l.b16 %v1323
        %v1762 = vpack.c.b16 %v1747, %v1746
        %v1763 = vpack.c.b16 %v1749, %v1748
        %v1764 = vpack.c.b16 %v1751, %v1750
        %v1765 = vpack.c.b16 %v1753, %v1752
        %v1766 = vpack.c.b16 %v1755, %v1754
        %v1767 = vpack.c.b16 %v1757, %v1756
        %v1768 = vpack.c.b16 %v1759, %v1758
        %v1769 = vpack.c.b16 %v1761, %v1760
        %1778 = vmatprep.subr.bf16.mxu0 0
        %1779 = vmatpush1.bf16.msra.mxu0 %v1769
        %1780 = vmatprep.subr.bf16.mxu0 0
        %1781 = vmatpush1.bf16.msra.mxu0 %v1768
        %1782 = vmatprep.subr.bf16.mxu0 0
        %1783 = vmatpush1.bf16.msra.mxu0 %v1767
        %1784 = vmatprep.subr.bf16.mxu0 0
        %1785 = vmatpush1.bf16.msra.mxu0 %v1766
        %1786 = vmatprep.subr.bf16.mxu0 0
        %1787 = vmatpush1.bf16.msra.mxu0 %v1765
        %1788 = vmatprep.subr.bf16.mxu0 0
        %1789 = vmatpush1.bf16.msra.mxu0 %v1764
        %1790 = vmatprep.subr.bf16.mxu0 0
        %1791 = vmatpush1.bf16.msra.mxu0 %v1763
        %1792 = vmatprep.subr.bf16.mxu0 0
        %1793 = vmatpush1.bf16.msra.mxu0 %v1762
        %1794 = vmatprep.subr.bf16.mxu0 0
        %1795 = vmatpush2.bf16.msra.mxu0 0
        %1796 = vmatprep.subr.bf16.mxu0 0
        %1797 = vmatpush2.bf16.msra.mxu0 0
        %1798 = vmatprep.subr.bf16.mxu0 0
        %1799 = vmatpush2.bf16.msra.mxu0 0
        %1800 = vmatprep.subr.bf16.mxu0 0
        %1801 = vmatpush2.bf16.msra.mxu0 0
        %1802 = vmatprep.subr.bf16.mxu0 0
        %1803 = vmatpush2.bf16.msra.mxu0 0
        %1804 = vmatprep.subr.bf16.mxu0 0
        %1805 = vmatpush2.bf16.msra.mxu0 0
        %1806 = vmatprep.subr.bf16.mxu0 0
        %1807 = vmatpush2.bf16.msra.mxu0 0
        %1808 = vmatprep.subr.bf16.mxu0 0
        %1809 = vmatpush2.bf16.msra.mxu0 0
        %1810 = vmatprep.mubr.bf16.mxu0 0
        %1811 = vmatmul.mubr.bf16.gmra.mxu0 %v1722
        %v1812 = vpop.f32.mrf.mxu0
        %v1813 = vadd.f32 %v1728, %v1812
        %v1814 = vpop.f32.mrf.mxu0
        %v1815 = vpop.f32.mrf.mxu0
        %v1816 = vadd.f32 %v1728, %v1815
        %v1817 = vpop.f32.mrf.mxu0
        %1818 = vmatprep.mubr.bf16.mxu0 0
        %1819 = vmatmul.mubr.bf16.gmra.mxu0 %v1723
        %v1820 = vpop.f32.mrf.mxu0
        %v1821 = vadd.f32 %v1728, %v1820
        %v1822 = vpop.f32.mrf.mxu0
        %v1823 = vpop.f32.mrf.mxu0
        %v1824 = vadd.f32 %v1728, %v1823
        %v1825 = vpop.f32.mrf.mxu0
        %1826 = vdwg.mxu0
        %1827 = vmatprep.subr.mxu0 0.0
        %1828 = vmatpush1.msra.mxu0 1.0
        %1829 = vmatprep.subr.mxu0 0.0
        %1830 = vmatpush1.msra.mxu0 1.0
        %1831 = vmatprep.subr.mxu0 0.0
        %1832 = vmatpush1.msra.mxu0 1.0
        %1833 = vmatprep.subr.mxu0 0.0
        %1834 = vmatpush1.msra.mxu0 1.0
        %1835 = vmatprep.subr.mxu0 0.0
        %1836 = vmatpush1.msra.mxu0 1.0
        %1837 = vmatprep.subr.mxu0 0.0
        %1838 = vmatpush1.msra.mxu0 1.0
        %1839 = vmatprep.subr.mxu0 0.0
        %1840 = vmatpush1.msra.mxu0 1.0
        %1841 = vmatprep.subr.mxu0 0.0
        %1842 = vmatpush1.msra.mxu0 1.0
        %1843 = vmatprep.subr.mxu0 0.0
        %1844 = vmatpush1.msra.mxu0 1.0
        %1845 = vmatprep.subr.mxu0 0.0
        %1846 = vmatpush1.msra.mxu0 1.0
        %1847 = vmatprep.subr.mxu0 0.0
        %1848 = vmatpush1.msra.mxu0 1.0
        %1849 = vmatprep.subr.mxu0 0.0
        %1850 = vmatpush1.msra.mxu0 1.0
        %1851 = vmatprep.subr.mxu0 0.0
        %1852 = vmatpush1.msra.mxu0 1.0
        %1853 = vmatprep.subr.mxu0 0.0
        %1854 = vmatpush1.msra.mxu0 1.0
        %1855 = vmatprep.subr.mxu0 0.0
        %1856 = vmatpush1.msra.mxu0 1.0
        %1857 = vmatprep.subr.mxu0 0.0
        %1858 = vmatpush1.msra.mxu0 1.0
        %1859 = vmatprep.subr.mxu0 0.0
        %1860 = vmatpush2.msra.mxu0 0.0
        %1861 = vmatprep.subr.mxu0 0.0
        %1862 = vmatpush2.msra.mxu0 0.0
        %1863 = vmatprep.subr.mxu0 0.0
        %1864 = vmatpush2.msra.mxu0 0.0
        %1865 = vmatprep.subr.mxu0 0.0
        %1866 = vmatpush2.msra.mxu0 0.0
        %1867 = vmatprep.subr.mxu0 0.0
        %1868 = vmatpush2.msra.mxu0 0.0
        %1869 = vmatprep.subr.mxu0 0.0
        %1870 = vmatpush2.msra.mxu0 0.0
        %1871 = vmatprep.subr.mxu0 0.0
        %1872 = vmatpush2.msra.mxu0 0.0
        %1873 = vmatprep.subr.mxu0 0.0
        %1874 = vmatpush2.msra.mxu0 0.0
        %1875 = vmatprep.subr.mxu0 0.0
        %1876 = vmatpush2.msra.mxu0 0.0
        %1877 = vmatprep.subr.mxu0 0.0
        %1878 = vmatpush2.msra.mxu0 0.0
        %1879 = vmatprep.subr.mxu0 0.0
        %1880 = vmatpush2.msra.mxu0 0.0
        %1881 = vmatprep.subr.mxu0 0.0
        %1882 = vmatpush2.msra.mxu0 0.0
        %1883 = vmatprep.subr.mxu0 0.0
        %1884 = vmatpush2.msra.mxu0 0.0
        %1885 = vmatprep.subr.mxu0 0.0
        %1886 = vmatpush2.msra.mxu0 0.0
        %1887 = vmatprep.subr.mxu0 0.0
        %1888 = vmatpush2.msra.mxu0 0.0
        %1889 = vmatprep.subr.mxu0 0.0
        %1890 = vmatpush2.msra.mxu0 0.0
        %1891 = vmatprep.mubr.f32.mxu0 0.0
        %1892 = vmatmul.mubr.f32.gmra.mxu0 %v1813
        %v1893 = vpop.f32.mrf.mxu0
        %v1894 = vadd.f32 0.0, %v1893
        %v1895 = vpop.f32.mrf.mxu0
        %1896 = vmatprep.mubr.f32.mxu0 0.0
        %1897 = vmatmul.mubr.f32.gmra.mxu0 %v1816
        %v1898 = vpop.f32.mrf.mxu0
        %v1899 = vadd.f32 0.0, %v1898
        %v1900 = vpop.f32.mrf.mxu0
        %1901 = vmatprep.mubr.f32.mxu0 0.0
        %1902 = vmatmul.mubr.f32.gmra.mxu0 %v1821
        %v1903 = vpop.f32.mrf.mxu0
        %v1904 = vadd.f32 0.0, %v1903
        %v1905 = vpop.f32.mrf.mxu0
        %1906 = vmatprep.mubr.f32.mxu0 0.0
        %1907 = vmatmul.mubr.f32.gmra.mxu0 %v1824
        %v1908 = vpop.f32.mrf.mxu0
        %v1909 = vadd.f32 0.0, %v1908
        %v1910 = vpop.f32.mrf.mxu0
        %1911 = vdwg.mxu0
        %v1912 = vmul.f32 %v1894, 0.0078125
        %v1913 = vmul.f32 %v1899, 0.0078125
        %v1914 = vmul.f32 %v1904, 0.0078125
        %v1915 = vmul.f32 %v1909, 0.0078125
        %1917 = vset.pattern.permute.xlu0 0
        %1918 = vperm.xlu0 %1917, %v1912
        %v1919 = vpop.permute.xlu0 %1918
        %1922 = vset.pattern.permute.xlu0 0
        %1923 = vperm.xlu0 %1922, %v1913
        %v1924 = vpop.permute.xlu0 %1923
        %1927 = vset.pattern.permute.xlu0 0
        %1928 = vperm.xlu0 %1927, %v1914
        %v1929 = vpop.permute.xlu0 %1928
        %1932 = vset.pattern.permute.xlu0 0
        %1933 = vperm.xlu0 %1932, %v1915
        %v1934 = vpop.permute.xlu0 %1933
        %v1936 = vsub.f32 %v1813, %v1919
        %v1937 = vsub.f32 %v1816, %v1924
        %v1938 = vsub.f32 %v1821, %v1929
        %v1939 = vsub.f32 %v1824, %v1934
        %v1940 = vmul.f32 %v1936, %v1936
        %v1941 = vmul.f32 %v1937, %v1937
        %v1942 = vmul.f32 %v1938, %v1938
        %v1943 = vmul.f32 %v1939, %v1939
        %1944 = vmatprep.subr.mxu0 0.0
        %1945 = vmatpush1.msra.mxu0 1.0
        %1946 = vmatprep.subr.mxu0 0.0
        %1947 = vmatpush1.msra.mxu0 1.0
        %1948 = vmatprep.subr.mxu0 0.0
        %1949 = vmatpush1.msra.mxu0 1.0
        %1950 = vmatprep.subr.mxu0 0.0
        %1951 = vmatpush1.msra.mxu0 1.0
        %1952 = vmatprep.subr.mxu0 0.0
        %1953 = vmatpush1.msra.mxu0 1.0
        %1954 = vmatprep.subr.mxu0 0.0
        %1955 = vmatpush1.msra.mxu0 1.0
        %1956 = vmatprep.subr.mxu0 0.0
        %1957 = vmatpush1.msra.mxu0 1.0
        %1958 = vmatprep.subr.mxu0 0.0
        %1959 = vmatpush1.msra.mxu0 1.0
        %1960 = vmatprep.subr.mxu0 0.0
        %1961 = vmatpush1.msra.mxu0 1.0
        %1962 = vmatprep.subr.mxu0 0.0
        %1963 = vmatpush1.msra.mxu0 1.0
        %1964 = vmatprep.subr.mxu0 0.0
        %1965 = vmatpush1.msra.mxu0 1.0
        %1966 = vmatprep.subr.mxu0 0.0
        %1967 = vmatpush1.msra.mxu0 1.0
        %1968 = vmatprep.subr.mxu0 0.0
        %1969 = vmatpush1.msra.mxu0 1.0
        %1970 = vmatprep.subr.mxu0 0.0
        %1971 = vmatpush1.msra.mxu0 1.0
        %1972 = vmatprep.subr.mxu0 0.0
        %1973 = vmatpush1.msra.mxu0 1.0
        %1974 = vmatprep.subr.mxu0 0.0
        %1975 = vmatpush1.msra.mxu0 1.0
        %1976 = vmatprep.subr.mxu0 0.0
        %1977 = vmatpush2.msra.mxu0 0.0
        %1978 = vmatprep.subr.mxu0 0.0
        %1979 = vmatpush2.msra.mxu0 0.0
        %1980 = vmatprep.subr.mxu0 0.0
        %1981 = vmatpush2.msra.mxu0 0.0
        %1982 = vmatprep.subr.mxu0 0.0
        %1983 = vmatpush2.msra.mxu0 0.0
        %1984 = vmatprep.subr.mxu0 0.0
        %1985 = vmatpush2.msra.mxu0 0.0
        %1986 = vmatprep.subr.mxu0 0.0
        %1987 = vmatpush2.msra.mxu0 0.0
        %1988 = vmatprep.subr.mxu0 0.0
        %1989 = vmatpush2.msra.mxu0 0.0
        %1990 = vmatprep.subr.mxu0 0.0
        %1991 = vmatpush2.msra.mxu0 0.0
        %1992 = vmatprep.subr.mxu0 0.0
        %1993 = vmatpush2.msra.mxu0 0.0
        %1994 = vmatprep.subr.mxu0 0.0
        %1995 = vmatpush2.msra.mxu0 0.0
        %1996 = vmatprep.subr.mxu0 0.0
        %1997 = vmatpush2.msra.mxu0 0.0
        %1998 = vmatprep.subr.mxu0 0.0
        %1999 = vmatpush2.msra.mxu0 0.0
        %2000 = vmatprep.subr.mxu0 0.0
        %2001 = vmatpush2.msra.mxu0 0.0
        %2002 = vmatprep.subr.mxu0 0.0
        %2003 = vmatpush2.msra.mxu0 0.0
        %2004 = vmatprep.subr.mxu0 0.0
        %2005 = vmatpush2.msra.mxu0 0.0
        %2006 = vmatprep.subr.mxu0 0.0
        %2007 = vmatpush2.msra.mxu0 0.0
        %2008 = vmatprep.mubr.f32.mxu0 0.0
        %2009 = vmatmul.mubr.f32.gmra.mxu0 %v1940
        %v2010 = vpop.f32.mrf.mxu0
        %v2011 = vadd.f32 0.0, %v2010
        %v2012 = vpop.f32.mrf.mxu0
        %2013 = vmatprep.mubr.f32.mxu0 0.0
        %2014 = vmatmul.mubr.f32.gmra.mxu0 %v1941
        %v2015 = vpop.f32.mrf.mxu0
        %v2016 = vadd.f32 0.0, %v2015
        %v2017 = vpop.f32.mrf.mxu0
        %2018 = vmatprep.mubr.f32.mxu0 0.0
        %2019 = vmatmul.mubr.f32.gmra.mxu0 %v1942
        %v2020 = vpop.f32.mrf.mxu0
        %v2021 = vadd.f32 0.0, %v2020
        %v2022 = vpop.f32.mrf.mxu0
        %2023 = vmatprep.mubr.f32.mxu0 0.0
        %2024 = vmatmul.mubr.f32.gmra.mxu0 %v1943
        %v2025 = vpop.f32.mrf.mxu0
        %v2026 = vadd.f32 0.0, %v2025
        %v2027 = vpop.f32.mrf.mxu0
        %2028 = vdwg.mxu0
        %v2029 = vmul.f32 %v2011, 0.0078125
        %v2030 = vmul.f32 %v2016, 0.0078125
        %v2031 = vmul.f32 %v2021, 0.0078125
        %v2032 = vmul.f32 %v2026, 0.0078125
        %v2033 = vadd.f32 %v2029, 1e-05
        %v2034 = vadd.f32 %v2030, 1e-05
        %v2035 = vadd.f32 %v2031, 1e-05
        %v2036 = vadd.f32 %v2032, 1e-05
        %v2037 = vrsqrt.pop %v2033
        %v2038 = vrsqrt.pop %v2034
        %v2039 = vrsqrt.pop %v2035
        %v2040 = vrsqrt.pop %v2036
        %2042 = vset.pattern.permute.xlu0 0
        %2043 = vperm.xlu0 %2042, %v2037
        %v2044 = vpop.permute.xlu0 %2043
        %2047 = vset.pattern.permute.xlu0 0
        %2048 = vperm.xlu0 %2047, %v2038
        %v2049 = vpop.permute.xlu0 %2048
        %2052 = vset.pattern.permute.xlu0 0
        %2053 = vperm.xlu0 %2052, %v2039
        %v2054 = vpop.permute.xlu0 %2053
        %2057 = vset.pattern.permute.xlu0 0
        %2058 = vperm.xlu0 %2057, %v2040
        %v2059 = vpop.permute.xlu0 %2058
        %v2061 = vmul.f32 %v1936, %v2044
        %v2062 = vmul.f32 %v1937, %v2049
        %v2063 = vmul.f32 %v1938, %v2054
        %v2064 = vmul.f32 %v1939, %v2059
        %v2066 = vlaneseq
        %v2067 = vshrl.u32 %v2066, 7
        %v2068 = vsub.s32 0, %v2067
        %v2069 = vrot.slane %v1331, %v2068
        %v2071 = vmul.f32 %v2061, %v2069
        %v2072 = vmul.f32 %v2062, %v2069
        %v2073 = vmul.f32 %v2063, %v2069
        %v2074 = vmul.f32 %v2064, %v2069
        %v2076 = vlaneseq
        %v2077 = vshrl.u32 %v2076, 7
        %v2078 = vsub.s32 0, %v2077
        %v2079 = vrot.slane %v1333, %v2078
        %v2081 = vadd.f32 %v2071, %v2079
        %v2082 = vadd.f32 %v2072, %v2079
        %v2083 = vadd.f32 %v2073, %v2079
        %v2084 = vadd.f32 %v2074, %v2079
        %v2085 = vmul.f32 %v2081, %v2081
        %v2086 = vmul.f32 %v2082, %v2082
        %v2087 = vmul.f32 %v2083, %v2083
        %v2088 = vmul.f32 %v2084, %v2084
        %v2089 = vmul.f32 %v2081, %v2085
        %v2090 = vmul.f32 %v2082, %v2086
        %v2091 = vmul.f32 %v2083, %v2087
        %v2092 = vmul.f32 %v2084, %v2088
        %v2093 = vmul.f32 %v2089, 0.044715
        %v2094 = vmul.f32 %v2090, 0.044715
        %v2095 = vmul.f32 %v2091, 0.044715
        %v2096 = vmul.f32 %v2092, 0.044715
        %v2097 = vadd.f32 %v2081, %v2093
        %v2098 = vadd.f32 %v2082, %v2094
        %v2099 = vadd.f32 %v2083, %v2095
        %v2100 = vadd.f32 %v2084, %v2096
        %v2101 = vmul.f32 %v2097, 0.7978846
        %v2102 = vmul.f32 %v2098, 0.7978846
        %v2103 = vmul.f32 %v2099, 0.7978846
        %v2104 = vmul.f32 %v2100, 0.7978846
        %v2105 = vtanh.pop %v2101
        %v2106 = vtanh.pop %v2102
        %v2107 = vtanh.pop %v2103
        %v2108 = vtanh.pop %v2104
        %v2109 = vadd.f32 %v2105, 1.0
        %v2110 = vadd.f32 %v2106, 1.0
        %v2111 = vadd.f32 %v2107, 1.0
        %v2112 = vadd.f32 %v2108, 1.0
        %v2113 = vmul.f32 %v2109, 0.5
        %v2114 = vmul.f32 %v2110, 0.5
        %v2115 = vmul.f32 %v2111, 0.5
        %v2116 = vmul.f32 %v2112, 0.5
        %v2117 = vmul.f32 %v2081, %v2113
        %v2118 = vmul.f32 %v2082, %v2114
        %v2119 = vmul.f32 %v2083, %v2115
        %v2120 = vmul.f32 %v2084, %v2116
        %v2121 = vadd.f32 %v1297, %v2117
        %v2122 = vadd.f32 %v1298, %v2118
        %v2123 = vadd.f32 %v1299, %v2119
        %v2124 = vadd.f32 %v1300, %v2120
        %s2125 = scalar_lea.vmem [#allocation2], 6
        %v2126 = vld [vmem:[%s2125] sm:$0x1]
        %v2127 = vld [vmem:[%s2125 + $0x1] sm:$0x1]
        %v2128 = vld [vmem:[%s2125 + $0x2] sm:$0x1]
        %s2129 = scalar_lea.vmem %s3, 2
        %v2130 = vld [vmem:[%s2129] sm:$0x1]
        %s2131 = scalar_lea.vmem [#allocation5], 128
        %v2132 = vld [vmem:[%s2131] sm:$0xf]
        %v2133 = vld [vmem:[%s2131 + $0x4] sm:$0xf]
        %v2134 = vld [vmem:[%s2131 + $0x8] sm:$0xf]
        %v2135 = vld [vmem:[%s2131 + $0xc] sm:$0xf]
        %v2136 = vld [vmem:[%s2131 + $0x10] sm:$0xf]
        %v2137 = vld [vmem:[%s2131 + $0x14] sm:$0xf]
        %v2138 = vld [vmem:[%s2131 + $0x18] sm:$0xf]
        %v2139 = vld [vmem:[%s2131 + $0x1c] sm:$0xf]
        %v2140 = vld [vmem:[%s2131 + $0x20] sm:$0xf]
        %v2141 = vld [vmem:[%s2131 + $0x24] sm:$0xf]
        %v2142 = vld [vmem:[%s2131 + $0x28] sm:$0xf]
        %v2143 = vld [vmem:[%s2131 + $0x2c] sm:$0xf]
        %v2144 = vld [vmem:[%s2131 + $0x30] sm:$0xf]
        %v2145 = vld [vmem:[%s2131 + $0x34] sm:$0xf]
        %v2146 = vld [vmem:[%s2131 + $0x38] sm:$0xf]
        %v2147 = vld [vmem:[%s2131 + $0x3c] sm:$0xf]
        %s2148 = scalar_lea.vmem %s5, 2
        %v2149 = vld [vmem:[%s2148] sm:$0x1]
        %s2150 = scalar_lea.vmem %s6, 2
        %v2151 = vld [vmem:[%s2150] sm:$0x1]
        %s2152 = scalar_lea.vmem %s7, 2
        %v2153 = vld [vmem:[%s2152] sm:$0x1]
        %s2154 = scalar_lea.vmem %s8, 2
        %v2155 = vld [vmem:[%s2154] sm:$0x1]
        %s2156 = scalar_lea.vmem [#allocation7], 2
        %v2157 = vld [vmem:[%s2156] sm:$0x1]
        %v2158 = vmul.f32 %v2121, %v493
        %v2159 = vmul.f32 %v2122, %v498
        %v2160 = vmul.f32 %v2123, %v503
        %v2161 = vmul.f32 %v2124, %v508
        %v2163 = vlaneseq
        %v2164 = vshrl.u32 %v2163, 7
        %v2165 = vsub.s32 0, %v2164
        %v2166 = vrot.slane %v2127, %v2165
        %v2168 = vmul.f32 %v2158, %v2166
        %v2169 = vmul.f32 %v2159, %v2166
        %v2170 = vmul.f32 %v2160, %v2166
        %v2171 = vmul.f32 %v2161, %v2166
        %v2173 = vlaneseq
        %v2174 = vshrl.u32 %v2173, 7
        %v2175 = vsub.s32 0, %v2174
        %v2176 = vrot.slane %v2130, %v2175
        %v2178 = vadd.f32 %v2176, %v2168
        %v2179 = vadd.f32 %v2176, %v2169
        %v2180 = vadd.f32 %v2176, %v2170
        %v2181 = vadd.f32 %v2176, %v2171
        %v2182 = vrot.slane %v2158, 7
        %v2183 = vrot.slane %v2159, 7
        %v2184 = vrot.slane %v2160, 7
        %v2185 = vrot.slane %v2161, 7
        %v2186 = vsel %vm538, %v2184, %v2185
        %v2187 = vsel %vm538, %v2183, %v2184
        %v2188 = vsel %vm538, %v2182, %v2183
        %v2189 = vsel %vm538, %v2185, %v2182
        %vm2190 = vcmp.ge.f32.partialorder %v453, 9.0
        %vm2191 = vcmp.ge.f32.partialorder %v454, 9.0
        %vm2192 = vcmp.ge.f32.partialorder %v455, 9.0
        %vm2193 = vcmp.ge.f32.partialorder %v456, 9.0
        %v2194 = vsel %vm2190, 1.0, 0.0
        %v2195 = vsel %vm2191, 1.0, 0.0
        %v2196 = vsel %vm2192, 1.0, 0.0
        %v2197 = vsel %vm2193, 1.0, 0.0
        %v2198 = vmul.f32 %v2186, %v2194
        %v2199 = vmul.f32 %v2189, %v2195
        %v2200 = vmul.f32 %v2188, %v2196
        %v2201 = vmul.f32 %v2187, %v2197
        %v2203 = vlaneseq
        %v2204 = vshrl.u32 %v2203, 7
        %v2205 = vsub.s32 0, %v2204
        %v2206 = vrot.slane %v2126, %v2205
        %v2208 = vmul.f32 %v2198, %v2206
        %v2209 = vmul.f32 %v2199, %v2206
        %v2210 = vmul.f32 %v2200, %v2206
        %v2211 = vmul.f32 %v2201, %v2206
        %v2212 = vadd.f32 %v2178, %v2208
        %v2213 = vadd.f32 %v2179, %v2209
        %v2214 = vadd.f32 %v2180, %v2210
        %v2215 = vadd.f32 %v2181, %v2211
        %v2216 = vrot.slane %v2158, 1
        %v2217 = vrot.slane %v2159, 1
        %v2218 = vrot.slane %v2160, 1
        %v2219 = vrot.slane %v2161, 1
        %v2220 = vsel %vm573, %v2218, %v2219
        %v2221 = vsel %vm573, %v2217, %v2218
        %v2222 = vsel %vm573, %v2216, %v2217
        %v2223 = vsel %vm573, %v2219, %v2216
        %vm2224 = vcmp.lt.f32.partialorder %v453, 23.0
        %vm2225 = vcmp.lt.f32.partialorder %v454, 23.0
        %vm2226 = vcmp.lt.f32.partialorder %v455, 23.0
        %vm2227 = vcmp.lt.f32.partialorder %v456, 23.0
        %v2228 = vsel %vm2224, 1.0, 0.0
        %v2229 = vsel %vm2225, 1.0, 0.0
        %v2230 = vsel %vm2226, 1.0, 0.0
        %v2231 = vsel %vm2227, 1.0, 0.0
        %v2232 = vmul.f32 %v2221, %v2228
        %v2233 = vmul.f32 %v2220, %v2229
        %v2234 = vmul.f32 %v2223, %v2230
        %v2235 = vmul.f32 %v2222, %v2231
        %v2237 = vlaneseq
        %v2238 = vshrl.u32 %v2237, 7
        %v2239 = vsub.s32 0, %v2238
        %v2240 = vrot.slane %v2128, %v2239
        %v2242 = vmul.f32 %v2232, %v2240
        %v2243 = vmul.f32 %v2233, %v2240
        %v2244 = vmul.f32 %v2234, %v2240
        %v2245 = vmul.f32 %v2235, %v2240
        %v2246 = vadd.f32 %v2212, %v2242
        %v2247 = vadd.f32 %v2213, %v2243
        %v2248 = vadd.f32 %v2214, %v2244
        %v2249 = vadd.f32 %v2215, %v2245
        %2250 = vmatprep.subr.mxu0 0.0
        %2251 = vmatpush1.msra.mxu0 1.0
        %2252 = vmatprep.subr.mxu0 0.0
        %2253 = vmatpush1.msra.mxu0 1.0
        %2254 = vmatprep.subr.mxu0 0.0
        %2255 = vmatpush1.msra.mxu0 1.0
        %2256 = vmatprep.subr.mxu0 0.0
        %2257 = vmatpush1.msra.mxu0 1.0
        %2258 = vmatprep.subr.mxu0 0.0
        %2259 = vmatpush1.msra.mxu0 1.0
        %2260 = vmatprep.subr.mxu0 0.0
        %2261 = vmatpush1.msra.mxu0 1.0
        %2262 = vmatprep.subr.mxu0 0.0
        %2263 = vmatpush1.msra.mxu0 1.0
        %2264 = vmatprep.subr.mxu0 0.0
        %2265 = vmatpush1.msra.mxu0 1.0
        %2266 = vmatprep.subr.mxu0 0.0
        %2267 = vmatpush1.msra.mxu0 1.0
        %2268 = vmatprep.subr.mxu0 0.0
        %2269 = vmatpush1.msra.mxu0 1.0
        %2270 = vmatprep.subr.mxu0 0.0
        %2271 = vmatpush1.msra.mxu0 1.0
        %2272 = vmatprep.subr.mxu0 0.0
        %2273 = vmatpush1.msra.mxu0 1.0
        %2274 = vmatprep.subr.mxu0 0.0
        %2275 = vmatpush1.msra.mxu0 1.0
        %2276 = vmatprep.subr.mxu0 0.0
        %2277 = vmatpush1.msra.mxu0 1.0
        %2278 = vmatprep.subr.mxu0 0.0
        %2279 = vmatpush1.msra.mxu0 1.0
        %2280 = vmatprep.subr.mxu0 0.0
        %2281 = vmatpush1.msra.mxu0 1.0
        %2282 = vmatprep.subr.mxu0 0.0
        %2283 = vmatpush2.msra.mxu0 0.0
        %2284 = vmatprep.subr.mxu0 0.0
        %2285 = vmatpush2.msra.mxu0 0.0
        %2286 = vmatprep.subr.mxu0 0.0
        %2287 = vmatpush2.msra.mxu0 0.0
        %2288 = vmatprep.subr.mxu0 0.0
        %2289 = vmatpush2.msra.mxu0 0.0
        %2290 = vmatprep.subr.mxu0 0.0
        %2291 = vmatpush2.msra.mxu0 0.0
        %2292 = vmatprep.subr.mxu0 0.0
        %2293 = vmatpush2.msra.mxu0 0.0
        %2294 = vmatprep.subr.mxu0 0.0
        %2295 = vmatpush2.msra.mxu0 0.0
        %2296 = vmatprep.subr.mxu0 0.0
        %2297 = vmatpush2.msra.mxu0 0.0
        %2298 = vmatprep.subr.mxu0 0.0
        %2299 = vmatpush2.msra.mxu0 0.0
        %2300 = vmatprep.subr.mxu0 0.0
        %2301 = vmatpush2.msra.mxu0 0.0
        %2302 = vmatprep.subr.mxu0 0.0
        %2303 = vmatpush2.msra.mxu0 0.0
        %2304 = vmatprep.subr.mxu0 0.0
        %2305 = vmatpush2.msra.mxu0 0.0
        %2306 = vmatprep.subr.mxu0 0.0
        %2307 = vmatpush2.msra.mxu0 0.0
        %2308 = vmatprep.subr.mxu0 0.0
        %2309 = vmatpush2.msra.mxu0 0.0
        %2310 = vmatprep.subr.mxu0 0.0
        %2311 = vmatpush2.msra.mxu0 0.0
        %2312 = vmatprep.subr.mxu0 0.0
        %2313 = vmatpush2.msra.mxu0 0.0
        %2314 = vmatprep.mubr.f32.mxu0 0.0
        %2315 = vmatmul.mubr.f32.gmra.mxu0 %v2246
        %v2316 = vpop.f32.mrf.mxu0
        %v2317 = vadd.f32 0.0, %v2316
        %v2318 = vpop.f32.mrf.mxu0
        %2319 = vmatprep.mubr.f32.mxu0 0.0
        %2320 = vmatmul.mubr.f32.gmra.mxu0 %v2247
        %v2321 = vpop.f32.mrf.mxu0
        %v2322 = vadd.f32 0.0, %v2321
        %v2323 = vpop.f32.mrf.mxu0
        %2324 = vmatprep.mubr.f32.mxu0 0.0
        %2325 = vmatmul.mubr.f32.gmra.mxu0 %v2248
        %v2326 = vpop.f32.mrf.mxu0
        %v2327 = vadd.f32 0.0, %v2326
        %v2328 = vpop.f32.mrf.mxu0
        %2329 = vmatprep.mubr.f32.mxu0 0.0
        %2330 = vmatmul.mubr.f32.gmra.mxu0 %v2249
        %v2331 = vpop.f32.mrf.mxu0
        %v2332 = vadd.f32 0.0, %v2331
        %v2333 = vpop.f32.mrf.mxu0
        %2334 = vdwg.mxu0
        %v2335 = vmul.f32 %v2317, 0.0078125
        %v2336 = vmul.f32 %v2322, 0.0078125
        %v2337 = vmul.f32 %v2327, 0.0078125
        %v2338 = vmul.f32 %v2332, 0.0078125
        %2340 = vset.pattern.permute.xlu0 0
        %2341 = vperm.xlu0 %2340, %v2335
        %v2342 = vpop.permute.xlu0 %2341
        %2345 = vset.pattern.permute.xlu0 0
        %2346 = vperm.xlu0 %2345, %v2336
        %v2347 = vpop.permute.xlu0 %2346
        %2350 = vset.pattern.permute.xlu0 0
        %2351 = vperm.xlu0 %2350, %v2337
        %v2352 = vpop.permute.xlu0 %2351
        %2355 = vset.pattern.permute.xlu0 0
        %2356 = vperm.xlu0 %2355, %v2338
        %v2357 = vpop.permute.xlu0 %2356
        %v2359 = vsub.f32 %v2246, %v2342
        %v2360 = vsub.f32 %v2247, %v2347
        %v2361 = vsub.f32 %v2248, %v2352
        %v2362 = vsub.f32 %v2249, %v2357
        %v2363 = vmul.f32 %v2359, %v2359
        %v2364 = vmul.f32 %v2360, %v2360
        %v2365 = vmul.f32 %v2361, %v2361
        %v2366 = vmul.f32 %v2362, %v2362
        %2367 = vmatprep.subr.mxu0 0.0
        %2368 = vmatpush1.msra.mxu0 1.0
        %2369 = vmatprep.subr.mxu0 0.0
        %2370 = vmatpush1.msra.mxu0 1.0
        %2371 = vmatprep.subr.mxu0 0.0
        %2372 = vmatpush1.msra.mxu0 1.0
        %2373 = vmatprep.subr.mxu0 0.0
        %2374 = vmatpush1.msra.mxu0 1.0
        %2375 = vmatprep.subr.mxu0 0.0
        %2376 = vmatpush1.msra.mxu0 1.0
        %2377 = vmatprep.subr.mxu0 0.0
        %2378 = vmatpush1.msra.mxu0 1.0
        %2379 = vmatprep.subr.mxu0 0.0
        %2380 = vmatpush1.msra.mxu0 1.0
        %2381 = vmatprep.subr.mxu0 0.0
        %2382 = vmatpush1.msra.mxu0 1.0
        %2383 = vmatprep.subr.mxu0 0.0
        %2384 = vmatpush1.msra.mxu0 1.0
        %2385 = vmatprep.subr.mxu0 0.0
        %2386 = vmatpush1.msra.mxu0 1.0
        %2387 = vmatprep.subr.mxu0 0.0
        %2388 = vmatpush1.msra.mxu0 1.0
        %2389 = vmatprep.subr.mxu0 0.0
        %2390 = vmatpush1.msra.mxu0 1.0
        %2391 = vmatprep.subr.mxu0 0.0
        %2392 = vmatpush1.msra.mxu0 1.0
        %2393 = vmatprep.subr.mxu0 0.0
        %2394 = vmatpush1.msra.mxu0 1.0
        %2395 = vmatprep.subr.mxu0 0.0
        %2396 = vmatpush1.msra.mxu0 1.0
        %2397 = vmatprep.subr.mxu0 0.0
        %2398 = vmatpush1.msra.mxu0 1.0
        %2399 = vmatprep.subr.mxu0 0.0
        %2400 = vmatpush2.msra.mxu0 0.0
        %2401 = vmatprep.subr.mxu0 0.0
        %2402 = vmatpush2.msra.mxu0 0.0
        %2403 = vmatprep.subr.mxu0 0.0
        %2404 = vmatpush2.msra.mxu0 0.0
        %2405 = vmatprep.subr.mxu0 0.0
        %2406 = vmatpush2.msra.mxu0 0.0
        %2407 = vmatprep.subr.mxu0 0.0
        %2408 = vmatpush2.msra.mxu0 0.0
        %2409 = vmatprep.subr.mxu0 0.0
        %2410 = vmatpush2.msra.mxu0 0.0
        %2411 = vmatprep.subr.mxu0 0.0
        %2412 = vmatpush2.msra.mxu0 0.0
        %2413 = vmatprep.subr.mxu0 0.0
        %2414 = vmatpush2.msra.mxu0 0.0
        %2415 = vmatprep.subr.mxu0 0.0
        %2416 = vmatpush2.msra.mxu0 0.0
        %2417 = vmatprep.subr.mxu0 0.0
        %2418 = vmatpush2.msra.mxu0 0.0
        %2419 = vmatprep.subr.mxu0 0.0
        %2420 = vmatpush2.msra.mxu0 0.0
        %2421 = vmatprep.subr.mxu0 0.0
        %2422 = vmatpush2.msra.mxu0 0.0
        %2423 = vmatprep.subr.mxu0 0.0
        %2424 = vmatpush2.msra.mxu0 0.0
        %2425 = vmatprep.subr.mxu0 0.0
        %2426 = vmatpush2.msra.mxu0 0.0
        %2427 = vmatprep.subr.mxu0 0.0
        %2428 = vmatpush2.msra.mxu0 0.0
        %2429 = vmatprep.subr.mxu0 0.0
        %2430 = vmatpush2.msra.mxu0 0.0
        %2431 = vmatprep.mubr.f32.mxu0 0.0
        %2432 = vmatmul.mubr.f32.gmra.mxu0 %v2363
        %v2433 = vpop.f32.mrf.mxu0
        %v2434 = vadd.f32 0.0, %v2433
        %v2435 = vpop.f32.mrf.mxu0
        %2436 = vmatprep.mubr.f32.mxu0 0.0
        %2437 = vmatmul.mubr.f32.gmra.mxu0 %v2364
        %v2438 = vpop.f32.mrf.mxu0
        %v2439 = vadd.f32 0.0, %v2438
        %v2440 = vpop.f32.mrf.mxu0
        %2441 = vmatprep.mubr.f32.mxu0 0.0
        %2442 = vmatmul.mubr.f32.gmra.mxu0 %v2365
        %v2443 = vpop.f32.mrf.mxu0
        %v2444 = vadd.f32 0.0, %v2443
        %v2445 = vpop.f32.mrf.mxu0
        %2446 = vmatprep.mubr.f32.mxu0 0.0
        %2447 = vmatmul.mubr.f32.gmra.mxu0 %v2366
        %v2448 = vpop.f32.mrf.mxu0
        %v2449 = vadd.f32 0.0, %v2448
        %v2450 = vpop.f32.mrf.mxu0
        %2451 = vdwg.mxu0
        %v2452 = vmul.f32 %v2434, 0.0078125
        %v2453 = vmul.f32 %v2439, 0.0078125
        %v2454 = vmul.f32 %v2444, 0.0078125
        %v2455 = vmul.f32 %v2449, 0.0078125
        %v2456 = vadd.f32 %v2452, 1e-05
        %v2457 = vadd.f32 %v2453, 1e-05
        %v2458 = vadd.f32 %v2454, 1e-05
        %v2459 = vadd.f32 %v2455, 1e-05
        %v2460 = vrsqrt.pop %v2456
        %v2461 = vrsqrt.pop %v2457
        %v2462 = vrsqrt.pop %v2458
        %v2463 = vrsqrt.pop %v2459
        %2465 = vset.pattern.permute.xlu0 0
        %2466 = vperm.xlu0 %2465, %v2460
        %v2467 = vpop.permute.xlu0 %2466
        %2470 = vset.pattern.permute.xlu0 0
        %2471 = vperm.xlu0 %2470, %v2461
        %v2472 = vpop.permute.xlu0 %2471
        %2475 = vset.pattern.permute.xlu0 0
        %2476 = vperm.xlu0 %2475, %v2462
        %v2477 = vpop.permute.xlu0 %2476
        %2480 = vset.pattern.permute.xlu0 0
        %2481 = vperm.xlu0 %2480, %v2463
        %v2482 = vpop.permute.xlu0 %2481
        %v2484 = vmul.f32 %v2359, %v2467
        %v2485 = vmul.f32 %v2360, %v2472
        %v2486 = vmul.f32 %v2361, %v2477
        %v2487 = vmul.f32 %v2362, %v2482
        %v2489 = vlaneseq
        %v2490 = vshrl.u32 %v2489, 7
        %v2491 = vsub.s32 0, %v2490
        %v2492 = vrot.slane %v2151, %v2491
        %v2494 = vmul.f32 %v2484, %v2492
        %v2495 = vmul.f32 %v2485, %v2492
        %v2496 = vmul.f32 %v2486, %v2492
        %v2497 = vmul.f32 %v2487, %v2492
        %v2499 = vlaneseq
        %v2500 = vshrl.u32 %v2499, 7
        %v2501 = vsub.s32 0, %v2500
        %v2502 = vrot.slane %v2153, %v2501
        %v2504 = vadd.f32 %v2494, %v2502
        %v2505 = vadd.f32 %v2495, %v2502
        %v2506 = vadd.f32 %v2496, %v2502
        %v2507 = vadd.f32 %v2497, %v2502
        %v2508 = vmul.f32 %v2504, %v2504
        %v2509 = vmul.f32 %v2505, %v2505
        %v2510 = vmul.f32 %v2506, %v2506
        %v2511 = vmul.f32 %v2507, %v2507
        %v2512 = vmul.f32 %v2504, %v2508
        %v2513 = vmul.f32 %v2505, %v2509
        %v2514 = vmul.f32 %v2506, %v2510
        %v2515 = vmul.f32 %v2507, %v2511
        %v2516 = vmul.f32 %v2512, 0.044715
        %v2517 = vmul.f32 %v2513, 0.044715
        %v2518 = vmul.f32 %v2514, 0.044715
        %v2519 = vmul.f32 %v2515, 0.044715
        %v2520 = vadd.f32 %v2504, %v2516
        %v2521 = vadd.f32 %v2505, %v2517
        %v2522 = vadd.f32 %v2506, %v2518
        %v2523 = vadd.f32 %v2507, %v2519
        %v2524 = vmul.f32 %v2520, 0.7978846
        %v2525 = vmul.f32 %v2521, 0.7978846
        %v2526 = vmul.f32 %v2522, 0.7978846
        %v2527 = vmul.f32 %v2523, 0.7978846
        %v2528 = vtanh.pop %v2524
        %v2529 = vtanh.pop %v2525
        %v2530 = vtanh.pop %v2526
        %v2531 = vtanh.pop %v2527
        %v2532 = vadd.f32 %v2528, 1.0
        %v2533 = vadd.f32 %v2529, 1.0
        %v2534 = vadd.f32 %v2530, 1.0
        %v2535 = vadd.f32 %v2531, 1.0
        %v2536 = vmul.f32 %v2532, 0.5
        %v2537 = vmul.f32 %v2533, 0.5
        %v2538 = vmul.f32 %v2534, 0.5
        %v2539 = vmul.f32 %v2535, 0.5
        %v2540 = vmul.f32 %v2504, %v2536
        %v2541 = vmul.f32 %v2505, %v2537
        %v2542 = vmul.f32 %v2506, %v2538
        %v2543 = vmul.f32 %v2507, %v2539
        %v2544 = vpack.c.bf16 %v2541, %v2540
        %v2545 = vpack.c.bf16 %v2543, %v2542
        %v2547 = vlaneseq
        %v2548 = vshrl.u32 %v2547, 7
        %v2549 = vsub.s32 0, %v2548
        %v2550 = vrot.slane %v2149, %v2549
        %v2568 = vunpack.c.l.b16 %v2132
        %v2569 = vunpack.c.l.b16 %v2133
        %v2570 = vunpack.c.l.b16 %v2134
        %v2571 = vunpack.c.l.b16 %v2135
        %v2572 = vunpack.c.l.b16 %v2136
        %v2573 = vunpack.c.l.b16 %v2137
        %v2574 = vunpack.c.l.b16 %v2138
        %v2575 = vunpack.c.l.b16 %v2139
        %v2576 = vunpack.c.l.b16 %v2140
        %v2577 = vunpack.c.l.b16 %v2141
        %v2578 = vunpack.c.l.b16 %v2142
        %v2579 = vunpack.c.l.b16 %v2143
        %v2580 = vunpack.c.l.b16 %v2144
        %v2581 = vunpack.c.l.b16 %v2145
        %v2582 = vunpack.c.l.b16 %v2146
        %v2583 = vunpack.c.l.b16 %v2147
        %v2584 = vpack.c.b16 %v2569, %v2568
        %v2585 = vpack.c.b16 %v2571, %v2570
        %v2586 = vpack.c.b16 %v2573, %v2572
        %v2587 = vpack.c.b16 %v2575, %v2574
        %v2588 = vpack.c.b16 %v2577, %v2576
        %v2589 = vpack.c.b16 %v2579, %v2578
        %v2590 = vpack.c.b16 %v2581, %v2580
        %v2591 = vpack.c.b16 %v2583, %v2582
        %2600 = vmatprep.subr.bf16.mxu0 0
        %2601 = vmatpush1.bf16.msra.mxu0 %v2591
        %2602 = vmatprep.subr.bf16.mxu0 0
        %2603 = vmatpush1.bf16.msra.mxu0 %v2590
        %2604 = vmatprep.subr.bf16.mxu0 0
        %2605 = vmatpush1.bf16.msra.mxu0 %v2589
        %2606 = vmatprep.subr.bf16.mxu0 0
        %2607 = vmatpush1.bf16.msra.mxu0 %v2588
        %2608 = vmatprep.subr.bf16.mxu0 0
        %2609 = vmatpush1.bf16.msra.mxu0 %v2587
        %2610 = vmatprep.subr.bf16.mxu0 0
        %2611 = vmatpush1.bf16.msra.mxu0 %v2586
        %2612 = vmatprep.subr.bf16.mxu0 0
        %2613 = vmatpush1.bf16.msra.mxu0 %v2585
        %2614 = vmatprep.subr.bf16.mxu0 0
        %2615 = vmatpush1.bf16.msra.mxu0 %v2584
        %2616 = vmatprep.subr.bf16.mxu0 0
        %2617 = vmatpush2.bf16.msra.mxu0 0
        %2618 = vmatprep.subr.bf16.mxu0 0
        %2619 = vmatpush2.bf16.msra.mxu0 0
        %2620 = vmatprep.subr.bf16.mxu0 0
        %2621 = vmatpush2.bf16.msra.mxu0 0
        %2622 = vmatprep.subr.bf16.mxu0 0
        %2623 = vmatpush2.bf16.msra.mxu0 0
        %2624 = vmatprep.subr.bf16.mxu0 0
        %2625 = vmatpush2.bf16.msra.mxu0 0
        %2626 = vmatprep.subr.bf16.mxu0 0
        %2627 = vmatpush2.bf16.msra.mxu0 0
        %2628 = vmatprep.subr.bf16.mxu0 0
        %2629 = vmatpush2.bf16.msra.mxu0 0
        %2630 = vmatprep.subr.bf16.mxu0 0
        %2631 = vmatpush2.bf16.msra.mxu0 0
        %2632 = vmatprep.mubr.bf16.mxu0 0
        %2633 = vmatmul.mubr.bf16.gmra.mxu0 %v2544
        %v2634 = vpop.f32.mrf.mxu0
        %v2635 = vadd.f32 %v2550, %v2634
        %v2636 = vpop.f32.mrf.mxu0
        %v2637 = vpop.f32.mrf.mxu0
        %v2638 = vadd.f32 %v2550, %v2637
        %v2639 = vpop.f32.mrf.mxu0
        %2640 = vmatprep.mubr.bf16.mxu0 0
        %2641 = vmatmul.mubr.bf16.gmra.mxu0 %v2545
        %v2642 = vpop.f32.mrf.mxu0
        %v2643 = vadd.f32 %v2550, %v2642
        %v2644 = vpop.f32.mrf.mxu0
        %v2645 = vpop.f32.mrf.mxu0
        %v2646 = vadd.f32 %v2550, %v2645
        %v2647 = vpop.f32.mrf.mxu0
        %2648 = vdwg.mxu0
        %2649 = vmatprep.subr.mxu0 0.0
        %2650 = vmatpush1.msra.mxu0 1.0
        %2651 = vmatprep.subr.mxu0 0.0
        %2652 = vmatpush1.msra.mxu0 1.0
        %2653 = vmatprep.subr.mxu0 0.0
        %2654 = vmatpush1.msra.mxu0 1.0
        %2655 = vmatprep.subr.mxu0 0.0
        %2656 = vmatpush1.msra.mxu0 1.0
        %2657 = vmatprep.subr.mxu0 0.0
        %2658 = vmatpush1.msra.mxu0 1.0
        %2659 = vmatprep.subr.mxu0 0.0
        %2660 = vmatpush1.msra.mxu0 1.0
        %2661 = vmatprep.subr.mxu0 0.0
        %2662 = vmatpush1.msra.mxu0 1.0
        %2663 = vmatprep.subr.mxu0 0.0
        %2664 = vmatpush1.msra.mxu0 1.0
        %2665 = vmatprep.subr.mxu0 0.0
        %2666 = vmatpush1.msra.mxu0 1.0
        %2667 = vmatprep.subr.mxu0 0.0
        %2668 = vmatpush1.msra.mxu0 1.0
        %2669 = vmatprep.subr.mxu0 0.0
        %2670 = vmatpush1.msra.mxu0 1.0
        %2671 = vmatprep.subr.mxu0 0.0
        %2672 = vmatpush1.msra.mxu0 1.0
        %2673 = vmatprep.subr.mxu0 0.0
        %2674 = vmatpush1.msra.mxu0 1.0
        %2675 = vmatprep.subr.mxu0 0.0
        %2676 = vmatpush1.msra.mxu0 1.0
        %2677 = vmatprep.subr.mxu0 0.0
        %2678 = vmatpush1.msra.mxu0 1.0
        %2679 = vmatprep.subr.mxu0 0.0
        %2680 = vmatpush1.msra.mxu0 1.0
        %2681 = vmatprep.subr.mxu0 0.0
        %2682 = vmatpush2.msra.mxu0 0.0
        %2683 = vmatprep.subr.mxu0 0.0
        %2684 = vmatpush2.msra.mxu0 0.0
        %2685 = vmatprep.subr.mxu0 0.0
        %2686 = vmatpush2.msra.mxu0 0.0
        %2687 = vmatprep.subr.mxu0 0.0
        %2688 = vmatpush2.msra.mxu0 0.0
        %2689 = vmatprep.subr.mxu0 0.0
        %2690 = vmatpush2.msra.mxu0 0.0
        %2691 = vmatprep.subr.mxu0 0.0
        %2692 = vmatpush2.msra.mxu0 0.0
        %2693 = vmatprep.subr.mxu0 0.0
        %2694 = vmatpush2.msra.mxu0 0.0
        %2695 = vmatprep.subr.mxu0 0.0
        %2696 = vmatpush2.msra.mxu0 0.0
        %2697 = vmatprep.subr.mxu0 0.0
        %2698 = vmatpush2.msra.mxu0 0.0
        %2699 = vmatprep.subr.mxu0 0.0
        %2700 = vmatpush2.msra.mxu0 0.0
        %2701 = vmatprep.subr.mxu0 0.0
        %2702 = vmatpush2.msra.mxu0 0.0
        %2703 = vmatprep.subr.mxu0 0.0
        %2704 = vmatpush2.msra.mxu0 0.0
        %2705 = vmatprep.subr.mxu0 0.0
        %2706 = vmatpush2.msra.mxu0 0.0
        %2707 = vmatprep.subr.mxu0 0.0
        %2708 = vmatpush2.msra.mxu0 0.0
        %2709 = vmatprep.subr.mxu0 0.0
        %2710 = vmatpush2.msra.mxu0 0.0
        %2711 = vmatprep.subr.mxu0 0.0
        %2712 = vmatpush2.msra.mxu0 0.0
        %2713 = vmatprep.mubr.f32.mxu0 0.0
        %2714 = vmatmul.mubr.f32.gmra.mxu0 %v2635
        %v2715 = vpop.f32.mrf.mxu0
        %v2716 = vadd.f32 0.0, %v2715
        %v2717 = vpop.f32.mrf.mxu0
        %2718 = vmatprep.mubr.f32.mxu0 0.0
        %2719 = vmatmul.mubr.f32.gmra.mxu0 %v2638
        %v2720 = vpop.f32.mrf.mxu0
        %v2721 = vadd.f32 0.0, %v2720
        %v2722 = vpop.f32.mrf.mxu0
        %2723 = vmatprep.mubr.f32.mxu0 0.0
        %2724 = vmatmul.mubr.f32.gmra.mxu0 %v2643
        %v2725 = vpop.f32.mrf.mxu0
        %v2726 = vadd.f32 0.0, %v2725
        %v2727 = vpop.f32.mrf.mxu0
        %2728 = vmatprep.mubr.f32.mxu0 0.0
        %2729 = vmatmul.mubr.f32.gmra.mxu0 %v2646
        %v2730 = vpop.f32.mrf.mxu0
        %v2731 = vadd.f32 0.0, %v2730
        %v2732 = vpop.f32.mrf.mxu0
        %2733 = vdwg.mxu0
        %v2734 = vmul.f32 %v2716, 0.0078125
        %v2735 = vmul.f32 %v2721, 0.0078125
        %v2736 = vmul.f32 %v2726, 0.0078125
        %v2737 = vmul.f32 %v2731, 0.0078125
        %2739 = vset.pattern.permute.xlu0 0
        %2740 = vperm.xlu0 %2739, %v2734
        %v2741 = vpop.permute.xlu0 %2740
        %2744 = vset.pattern.permute.xlu0 0
        %2745 = vperm.xlu0 %2744, %v2735
        %v2746 = vpop.permute.xlu0 %2745
        %2749 = vset.pattern.permute.xlu0 0
        %2750 = vperm.xlu0 %2749, %v2736
        %v2751 = vpop.permute.xlu0 %2750
        %2754 = vset.pattern.permute.xlu0 0
        %2755 = vperm.xlu0 %2754, %v2737
        %v2756 = vpop.permute.xlu0 %2755
        %v2758 = vsub.f32 %v2635, %v2741
        %v2759 = vsub.f32 %v2638, %v2746
        %v2760 = vsub.f32 %v2643, %v2751
        %v2761 = vsub.f32 %v2646, %v2756
        %v2762 = vmul.f32 %v2758, %v2758
        %v2763 = vmul.f32 %v2759, %v2759
        %v2764 = vmul.f32 %v2760, %v2760
        %v2765 = vmul.f32 %v2761, %v2761
        %2766 = vmatprep.subr.mxu0 0.0
        %2767 = vmatpush1.msra.mxu0 1.0
        %2768 = vmatprep.subr.mxu0 0.0
        %2769 = vmatpush1.msra.mxu0 1.0
        %2770 = vmatprep.subr.mxu0 0.0
        %2771 = vmatpush1.msra.mxu0 1.0
        %2772 = vmatprep.subr.mxu0 0.0
        %2773 = vmatpush1.msra.mxu0 1.0
        %2774 = vmatprep.subr.mxu0 0.0
        %2775 = vmatpush1.msra.mxu0 1.0
        %2776 = vmatprep.subr.mxu0 0.0
        %2777 = vmatpush1.msra.mxu0 1.0
        %2778 = vmatprep.subr.mxu0 0.0
        %2779 = vmatpush1.msra.mxu0 1.0
        %2780 = vmatprep.subr.mxu0 0.0
        %2781 = vmatpush1.msra.mxu0 1.0
        %2782 = vmatprep.subr.mxu0 0.0
        %2783 = vmatpush1.msra.mxu0 1.0
        %2784 = vmatprep.subr.mxu0 0.0
        %2785 = vmatpush1.msra.mxu0 1.0
        %2786 = vmatprep.subr.mxu0 0.0
        %2787 = vmatpush1.msra.mxu0 1.0
        %2788 = vmatprep.subr.mxu0 0.0
        %2789 = vmatpush1.msra.mxu0 1.0
        %2790 = vmatprep.subr.mxu0 0.0
        %2791 = vmatpush1.msra.mxu0 1.0
        %2792 = vmatprep.subr.mxu0 0.0
        %2793 = vmatpush1.msra.mxu0 1.0
        %2794 = vmatprep.subr.mxu0 0.0
        %2795 = vmatpush1.msra.mxu0 1.0
        %2796 = vmatprep.subr.mxu0 0.0
        %2797 = vmatpush1.msra.mxu0 1.0
        %2798 = vmatprep.subr.mxu0 0.0
        %2799 = vmatpush2.msra.mxu0 0.0
        %2800 = vmatprep.subr.mxu0 0.0
        %2801 = vmatpush2.msra.mxu0 0.0
        %2802 = vmatprep.subr.mxu0 0.0
        %2803 = vmatpush2.msra.mxu0 0.0
        %2804 = vmatprep.subr.mxu0 0.0
        %2805 = vmatpush2.msra.mxu0 0.0
        %2806 = vmatprep.subr.mxu0 0.0
        %2807 = vmatpush2.msra.mxu0 0.0
        %2808 = vmatprep.subr.mxu0 0.0
        %2809 = vmatpush2.msra.mxu0 0.0
        %2810 = vmatprep.subr.mxu0 0.0
        %2811 = vmatpush2.msra.mxu0 0.0
        %2812 = vmatprep.subr.mxu0 0.0
        %2813 = vmatpush2.msra.mxu0 0.0
        %2814 = vmatprep.subr.mxu0 0.0
        %2815 = vmatpush2.msra.mxu0 0.0
        %2816 = vmatprep.subr.mxu0 0.0
        %2817 = vmatpush2.msra.mxu0 0.0
        %2818 = vmatprep.subr.mxu0 0.0
        %2819 = vmatpush2.msra.mxu0 0.0
        %2820 = vmatprep.subr.mxu0 0.0
        %2821 = vmatpush2.msra.mxu0 0.0
        %2822 = vmatprep.subr.mxu0 0.0
        %2823 = vmatpush2.msra.mxu0 0.0
        %2824 = vmatprep.subr.mxu0 0.0
        %2825 = vmatpush2.msra.mxu0 0.0
        %2826 = vmatprep.subr.mxu0 0.0
        %2827 = vmatpush2.msra.mxu0 0.0
        %2828 = vmatprep.subr.mxu0 0.0
        %2829 = vmatpush2.msra.mxu0 0.0
        %2830 = vmatprep.mubr.f32.mxu0 0.0
        %2831 = vmatmul.mubr.f32.gmra.mxu0 %v2762
        %v2832 = vpop.f32.mrf.mxu0
        %v2833 = vadd.f32 0.0, %v2832
        %v2834 = vpop.f32.mrf.mxu0
        %2835 = vmatprep.mubr.f32.mxu0 0.0
        %2836 = vmatmul.mubr.f32.gmra.mxu0 %v2763
        %v2837 = vpop.f32.mrf.mxu0
        %v2838 = vadd.f32 0.0, %v2837
        %v2839 = vpop.f32.mrf.mxu0
        %2840 = vmatprep.mubr.f32.mxu0 0.0
        %2841 = vmatmul.mubr.f32.gmra.mxu0 %v2764
        %v2842 = vpop.f32.mrf.mxu0
        %v2843 = vadd.f32 0.0, %v2842
        %v2844 = vpop.f32.mrf.mxu0
        %2845 = vmatprep.mubr.f32.mxu0 0.0
        %2846 = vmatmul.mubr.f32.gmra.mxu0 %v2765
        %v2847 = vpop.f32.mrf.mxu0
        %v2848 = vadd.f32 0.0, %v2847
        %v2849 = vpop.f32.mrf.mxu0
        %2850 = vdwg.mxu0
        %v2851 = vmul.f32 %v2833, 0.0078125
        %v2852 = vmul.f32 %v2838, 0.0078125
        %v2853 = vmul.f32 %v2843, 0.0078125
        %v2854 = vmul.f32 %v2848, 0.0078125
        %v2855 = vadd.f32 %v2851, 1e-05
        %v2856 = vadd.f32 %v2852, 1e-05
        %v2857 = vadd.f32 %v2853, 1e-05
        %v2858 = vadd.f32 %v2854, 1e-05
        %v2859 = vrsqrt.pop %v2855
        %v2860 = vrsqrt.pop %v2856
        %v2861 = vrsqrt.pop %v2857
        %v2862 = vrsqrt.pop %v2858
        %2864 = vset.pattern.permute.xlu0 0
        %2865 = vperm.xlu0 %2864, %v2859
        %v2866 = vpop.permute.xlu0 %2865
        %2869 = vset.pattern.permute.xlu0 0
        %2870 = vperm.xlu0 %2869, %v2860
        %v2871 = vpop.permute.xlu0 %2870
        %2874 = vset.pattern.permute.xlu0 0
        %2875 = vperm.xlu0 %2874, %v2861
        %v2876 = vpop.permute.xlu0 %2875
        %2879 = vset.pattern.permute.xlu0 0
        %2880 = vperm.xlu0 %2879, %v2862
        %v2881 = vpop.permute.xlu0 %2880
        %v2883 = vmul.f32 %v2758, %v2866
        %v2884 = vmul.f32 %v2759, %v2871
        %v2885 = vmul.f32 %v2760, %v2876
        %v2886 = vmul.f32 %v2761, %v2881
        %v2888 = vlaneseq
        %v2889 = vshrl.u32 %v2888, 7
        %v2890 = vsub.s32 0, %v2889
        %v2891 = vrot.slane %v2155, %v2890
        %v2893 = vmul.f32 %v2883, %v2891
        %v2894 = vmul.f32 %v2884, %v2891
        %v2895 = vmul.f32 %v2885, %v2891
        %v2896 = vmul.f32 %v2886, %v2891
        %v2898 = vlaneseq
        %v2899 = vshrl.u32 %v2898, 7
        %v2900 = vsub.s32 0, %v2899
        %v2901 = vrot.slane %v2157, %v2900
        %v2903 = vadd.f32 %v2893, %v2901
        %v2904 = vadd.f32 %v2894, %v2901
        %v2905 = vadd.f32 %v2895, %v2901
        %v2906 = vadd.f32 %v2896, %v2901
        %v2907 = vmul.f32 %v2903, %v2903
        %v2908 = vmul.f32 %v2904, %v2904
        %v2909 = vmul.f32 %v2905, %v2905
        %v2910 = vmul.f32 %v2906, %v2906
        %v2911 = vmul.f32 %v2903, %v2907
        %v2912 = vmul.f32 %v2904, %v2908
        %v2913 = vmul.f32 %v2905, %v2909
        %v2914 = vmul.f32 %v2906, %v2910
        %v2915 = vmul.f32 %v2911, 0.044715
        %v2916 = vmul.f32 %v2912, 0.044715
        %v2917 = vmul.f32 %v2913, 0.044715
        %v2918 = vmul.f32 %v2914, 0.044715
        %v2919 = vadd.f32 %v2903, %v2915
        %v2920 = vadd.f32 %v2904, %v2916
        %v2921 = vadd.f32 %v2905, %v2917
        %v2922 = vadd.f32 %v2906, %v2918
        %v2923 = vmul.f32 %v2919, 0.7978846
        %v2924 = vmul.f32 %v2920, 0.7978846
        %v2925 = vmul.f32 %v2921, 0.7978846
        %v2926 = vmul.f32 %v2922, 0.7978846
        %v2927 = vtanh.pop %v2923
        %v2928 = vtanh.pop %v2924
        %v2929 = vtanh.pop %v2925
        %v2930 = vtanh.pop %v2926
        %v2931 = vadd.f32 %v2927, 1.0
        %v2932 = vadd.f32 %v2928, 1.0
        %v2933 = vadd.f32 %v2929, 1.0
        %v2934 = vadd.f32 %v2930, 1.0
        %v2935 = vmul.f32 %v2931, 0.5
        %v2936 = vmul.f32 %v2932, 0.5
        %v2937 = vmul.f32 %v2933, 0.5
        %v2938 = vmul.f32 %v2934, 0.5
        %v2939 = vmul.f32 %v2903, %v2935
        %v2940 = vmul.f32 %v2904, %v2936
        %v2941 = vmul.f32 %v2905, %v2937
        %v2942 = vmul.f32 %v2906, %v2938
        %v2943 = vadd.f32 %v2121, %v2939
        %v2944 = vadd.f32 %v2122, %v2940
        %v2945 = vadd.f32 %v2123, %v2941
        %v2946 = vadd.f32 %v2124, %v2942
        %v2947 = vmul.f32 %v2943, %v493
        %v2948 = vmul.f32 %v2944, %v498
        %v2949 = vmul.f32 %v2945, %v503
        %v2950 = vmul.f32 %v2946, %v508
        %2951 = vst [vmem:[%s413] sm:$0xff] %v2947
        %2952 = vst [vmem:[%s413 + $0x8] sm:$0xff] %v2948
        %2953 = vst [vmem:[%s413 + $0x10] sm:$0xff] %v2949
        %2954 = vst [vmem:[%s413 + $0x18] sm:$0xff] %v2950
        %s2955 = sand.u32 %s254, 1
        %s2956 = scalar_lea.sflag [#allocation4], %s2955
        %s2957 = sand.u32 %s254, 1
        %s2958 = smul.addr %s2957, 32
        %s2959 = scalar_lea.vmem [#allocation8], %s2958
        // Predicated region
        $region73: #{tpu_custom_call.1} parent=59 // pred_check
          %p2960 = pneg %p264
        $region74: #{tpu_custom_call.1} parent=59 // pred_check_branch
          %2962 = sbr.rel (%p2960) target = $region76
        $region75: #{tpu_custom_call.1} parent=59 // pred_region
          %s2963 = smul.u32 4, %s26
          %s2965 = ssub.s32 512, 512
          %2966 = vsyncadd %s2956, %s2965
          %s2967 = smul.addr %s2963, 128
          %s2968 = scalar_lea.hbm %s10, %s2967
          %s2969 = sshll.u32 %s2959, 4
          %s2970 = int_to_ptr.vmem [resolvable:$true] %s2969
          %2975 = dma.vmem_to_hbm [thread:$0]  %s2970, 512, %s2968, %s2956, 128, 128, 8
        $region76: #{tpu_custom_call.1} parent=59 // pred_fallthru
          _
      $region60: #{tpu_custom_call.1} parent=5 // pred_fallthru
        _
      %p2976 = scmp.le.s32.totalorder 2, %s21
      // Predicated region
      $region77: #{tpu_custom_call.1} parent=5 // pred_check
        %p2977 = pneg %p2976
      $region78: #{tpu_custom_call.1} parent=5 // pred_check_branch
        %2979 = sbr.rel (%p2977) target = $region80
      $region79: #{tpu_custom_call.1} parent=5 // pred_region
        %s2980 = ssub.s32 %s21, 2
        // Predicated region
        $region81: #{tpu_custom_call.1} parent=79 // pred_check
          %p2981 = pneg %p270
        $region82: #{tpu_custom_call.1} parent=79 // pred_check_branch
          %2983 = sbr.rel (%p2981) target = $region84
        $region83: #{tpu_custom_call.1} parent=79 // pred_region
          %s2984 = sand.u32 %s255, 1
          %s2985 = scalar_lea.sflag [#allocation4], %s2984
          %s2986 = sand.u32 %s255, 1
          %s2987 = smul.addr %s2986, 32
          %s2988 = scalar_lea.vmem [#allocation8], %s2987
          %2989 = dma.done %s2985, 512
        $region84: #{tpu_custom_call.1} parent=79 // pred_fallthru
          _
      $region80: #{tpu_custom_call.1} parent=5 // pred_fallthru
        _
    $region6: #{tpu_custom_call.1} parent=1 // loop_footer
      %s25 = sadd.s32 1, %s21
    $region7: #{tpu_custom_call.1} parent=1 // loop_footer_branch
      %20 = sbr.rel target = $region3
    $region8: #{tpu_custom_call.1} parent=1 // loop_exit
      _
    %2990 = vsyncpa [#allocation3], 1
    %s2991 = scalar_lea.sflag [#allocation3], 1
    %2992 = vsyncpa %s2991, 1
    %2993 = vsyncpa [#allocation6], 1
    %2994 = vsyncpa [#allocation4], 1
    %s2995 = scalar_lea.sflag [#allocation4], 1
    %2996 = vsyncpa %s2995, 1

</llo_original>
